<compile_context>
chip_gen: v7x
topology: tpu7x:2x2x1
jax: 0.10.0
libtpu: 0.0.40
codegen_flags: <defaults>
</compile_context>

<pallas_src>
import functools

import jax
import jax.numpy as jnp
from jax import lax
from jax.experimental import pallas as pl
from jax.experimental.pallas import tpu as pltpu

CHAR_SEQ_SET_LEN = 21 + 4 + 7   # 32
CHAR_SMI_SET_LEN = 64
C = 128                         # channel-slab width (every branch ends at 128)
COUT0 = 32                      # first Conv1d output channels (all branches)

# (cin, cout, dilation) per DenseConvLayer, from _make_dense(32, 128, n)
SEQ_DENSE = ((32, 24, 1), (56, 24, 2), (80, 24, 4), (104, 24, 8))   # 4 layers
PKT_DENSE = ((32, 32, 1), (64, 32, 2), (96, 32, 4))                 # 3 layers
SMI_DENSE = ((32, 32, 1), (64, 32, 2), (96, 32, 4))                 # 3 layers

MATMUL_DTYPE = jnp.float32      # flip to jnp.bfloat16 after tolerance re-check


# ----------------------------------------------------------------------------
# Pallas kernels
# ----------------------------------------------------------------------------
def _branch_kernel(x_ref, wc0_ref, b0_ref, scales_ref, shifts_ref,
                   wcs_ref, bcs_ref, alphas_ref, o_ref, *, L, cfg, embed):
    Bblk = o_ref.shape[0]
    M = Bblk * L
    n_l = len(cfg)

    # Row position within its own sequence, (M,1); the only integer mod in the
    # kernel, computed once per grid step.  Boundary masks for every distinct
    # dilation are hoisted out of the layer loop.
    pos = lax.broadcasted_iota(jnp.int32, (M, 1), 0) % L
    dils = sorted({1} | {d for _, _, d in cfg})
    m_lo = {d: pos >= d for d in dils}             # left tap has a valid source
    m_hi = {d: pos < (L - d) for d in dils}        # right tap has a valid source
    lane = lax.broadcasted_iota(jnp.int32, (1, C), 1)

    def dilconv(a, wc, d, off, cout, b_lo, b_c, b_hi):
        """3-tap dilated conv; output channels land at slab lanes [off,off+cout).

        wc packs tap t at lane columns [t*cout,(t+1)*cout) (compact N<=128
        matmul).  Taps are moved to [off,off+cout) with static lane rolls + one
        lane mask; the dilation shift is a sublane roll gated by the hoisted
        boundary masks (zero conv padding).  Per-tap biases (fused embedding
        bias) are added inside the boundary mask so padding stays exactly zero.
        """
        p = jnp.dot(a.astype(MATMUL_DTYPE), wc,
                    preferred_element_type=jnp.float32)           # (M, <=128)

        def place(t):                                             # lane placement
            s = (off - t * cout) % C
            return p if s == 0 else pltpu.roll(p, s, axis=1)

        t0 = pltpu.roll(place(0), d % M, axis=0)                  # x[l - d] tap
        t0 = jnp.where(m_lo[d], t0 if b_lo is None else t0 + b_lo, 0.0)
        t1 = place(1)                                             # x[l] tap
        t2 = pltpu.roll(place(2), (M - d) % M, axis=0)            # x[l + d] tap
        t2 = jnp.where(m_hi[d], t2 if b_hi is None else t2 + b_hi, 0.0)
        lmask = (lane >= off) & (lane < off + cout)
        return jnp.where(lmask, t0 + t1 + t2, 0.0) + b_c

    # ---- fused embedding + first Conv1d  ->  slab channels [0, 32) ----------
    if embed == "linear":
        a0 = x_ref[...]                                           # (M, F)
    else:   # nn.Embedding lookup: one-hot against the vocab-padded fused table
        a0 = (x_ref[...] == lane).astype(jnp.float32)             # (M, 128)
    x = dilconv(a0, wc0_ref[...], 1, 0, COUT0, b0_ref[0], b0_ref[1], b0_ref[2])

    # ---- dense block: x = concat(x, conv(prelu(bn(x)))) per layer -----------
    for i, (cin, cout, d) in enumerate(cfg):
        a = x * scales_ref[i] + shifts_ref[i]
        a = jnp.where(a >= 0, a, alphas_ref[i] * a)
        x = x + dilconv(a, wcs_ref[i], d, cin, cout, None, bcs_ref[i], None)

    # ---- final BN + PReLU + AdaptiveMaxPool1d(1) + Squeeze -------------------
    a = x * scales_ref[n_l] + shifts_ref[n_l]
    a = jnp.where(a >= 0, a, alphas_ref[n_l] * a)
    o_ref[...] = jnp.max(a.reshape(Bblk, L, C), axis=1)   # single unmasked store


def _classifier_kernel(f1_ref, f2_ref, f3_ref, w1a_ref, w1b_ref, w1c_ref, b1_ref,
                       w2_ref, b2_ref, w3_ref, b3_ref, alphas_ref, o_ref):
    # cat([f1,f2,f3]) @ w1 done with a row-split w1 -> no (B,384) concat needed.
    h = (jnp.dot(f1_ref[...], w1a_ref[...], preferred_element_type=jnp.float32)
         + jnp.dot(f2_ref[...], w1b_ref[...], preferred_element_type=jnp.float32)
         + jnp.dot(f3_ref[...], w1c_ref[...], preferred_element_type=jnp.float32)
         + b1_ref[...])
    h = jnp.where(h >= 0, h, alphas_ref[0] * h)           # Dropout(eval)=id, PReLU
    h = jnp.dot(h, w2_ref[...], preferred_element_type=jnp.float32) + b2_ref[...]
    h = jnp.where(h >= 0, h, alphas_ref[1] * h)
    o_ref[...] = jnp.dot(h, w3_ref[...], preferred_element_type=jnp.float32) + b3_ref[...]


# ----------------------------------------------------------------------------
# One-time parameter packing (kept OUT of the jitted forward)
# ----------------------------------------------------------------------------
def _pad_row(v):
    return jnp.zeros((C,), jnp.float32).at[: v.shape[0]].set(v)


def _place_row(v, off):
    return jnp.zeros((C,), jnp.float32).at[off: off + v.shape[0]].set(v)


def _pack_dense_w(w):
    """(3, cin, cout) -> (128, 128): rows>=cin zero, tap t at [t*cout,(t+1)*cout)."""
    _, cin, cout = w.shape
    wc = jnp.zeros((C, C), jnp.float32)
    for t in range(3):
        wc = wc.at[:cin, t * cout:(t + 1) * cout].set(w[t])
    return wc


def _pack_branch(embed_p, bp, cfg, embed):
    w0, b0 = bp["conv0"]["w"], bp["conv0"]["b"]                 # (3,128,32), (32,)
    if embed == "linear":
        ew = embed_p["w"].astype(jnp.float32)                   # (F, 128)
        eb = embed_p["b"].astype(jnp.float32)                   # (128,)
        wc0 = jnp.zeros((ew.shape[0], C), jnp.float32)
        tap_bias = []
        for t in range(3):
            wc0 = wc0.at[:, t * COUT0:(t + 1) * COUT0].set(ew @ w0[t])
            tap_bias.append(eb @ w0[t])
        b0_3 = jnp.stack([_place_row(tap_bias[0], 0),
                          _place_row(tap_bias[1] + b0, 0),
                          _place_row(tap_bias[2], 0)])
    else:   # nn.Embedding: fold the vocab-padded table into the conv0 taps
        tbl = jnp.zeros((C, C), jnp.float32).at[: embed_p.shape[0]].set(embed_p)
        wc0 = jnp.zeros((C, C), jnp.float32)
        for t in range(3):
            wc0 = wc0.at[:, t * COUT0:(t + 1) * COUT0].set(tbl @ w0[t])
        b0_3 = jnp.stack([jnp.zeros((C,), jnp.float32),
                          _place_row(b0, 0),
                          jnp.zeros((C,), jnp.float32)])

    scales, shifts, wcs, bcs, alphas = [], [], [], [], []
    for lp, (cin, cout, _) in zip(bp["dense"], cfg):
        scales.append(_pad_row(lp["bn_scale"]))
        shifts.append(_pad_row(lp["bn_shift"]))
        wcs.append(_pack_dense_w(lp["w"]))
        bcs.append(_place_row(lp["b"], cin))
        alphas.append(lp["alpha"])
    fb = bp["final"]
    scales.append(_pad_row(fb["bn_scale"]))
    shifts.append(_pad_row(fb["bn_shift"]))
    alphas.append(fb["alpha"])
    return dict(wc0=wc0.astype(MATMUL_DTYPE), b0=b0_3,
                scales=jnp.stack(scales), shifts=jnp.stack(shifts),
                wcs=jnp.stack(wcs).astype(MATMUL_DTYPE), bcs=jnp.stack(bcs),
                alphas=jnp.asarray(alphas, jnp.float32))


def prepare_params(params):
    """One-time weight fusion/placement; call once, outside jit."""
    se, cp = params["seq_embed"], params["classifier"]
    w1 = cp["w1"]
    cls = dict(w1a=w1[0:C], w1b=w1[C:2 * C], w1c=w1[2 * C:3 * C],
               b1=cp["b1"].reshape(1, -1),
               w2=cp["w2"], b2=cp["b2"].reshape(1, -1),
               w3=cp["w3"], b3=cp["b3"].reshape(1, -1),
               alphas=jnp.asarray([cp["a1"], cp["a2"]], jnp.float32))
    return {
        "seq": _pack_branch(se, params["seq_branch"], SEQ_DENSE, "linear"),
        "pkt": _pack_branch(se, params["pkt_branch"], PKT_DENSE, "linear"),
        "smi": _pack_branch(params["smi_embed"], params["smi_branch"], SMI_DENSE, "onehot"),
        "cls": cls,
    }


# ----------------------------------------------------------------------------
# pallas_call wrappers
# ----------------------------------------------------------------------------
def _pick_bblk(B, L, target_rows=2048):
    """Batch block: full batch unless B is large enough to tile.

    Tiling (Bblk < B) needs Bblk % 8 == 0 (output block sublane rule) and
    B % Bblk == 0; we also want >=2 grid steps (both v7x TensorCores) and
    Bblk*L around target_rows so slab + temps stay well inside VMEM.
    """
    if B < 16 or B % 8 != 0:
        return B
    best = 8
    for b in range(8, B // 2 + 1, 8):
        if B % b == 0 and b * L <= target_rows:
            best = b
    return best


def _vmem_limit_bytes(M, n_layers):
    # ~10 live (M,128) f32 slabs (x, a, p, rolled temps, padded input x2) +
    # double-buffered weights; clamp to [32, 48] MiB (v7x physical = 64 MiB/TC).
    est = 4 * M * C * 10 + (n_layers + 2) * C * C * 4 * 2 + (4 << 20)
    return int(min(max(est, 32 << 20), 48 << 20))


def branch_pallas(x, pk, cfg, embed, B, L):
    Bblk = _pick_bblk(B, L)
    grid = (B // Bblk,)
    kernel = functools.partial(_branch_kernel, L=L, cfg=cfg, embed=embed)

    def full(arr):
        nd = arr.ndim
        return pl.BlockSpec(arr.shape, lambda i, nd=nd: (0,) * nd)

    return pl.pallas_call(
        kernel,
        out_shape=jax.ShapeDtypeStruct((B, C), jnp.float32),
        grid=grid,
        in_specs=[
            pl.BlockSpec((Bblk * L, x.shape[-1]), lambda i: (i, 0)),
            full(pk["wc0"]), full(pk["b0"]),
            full(pk["scales"]), full(pk["shifts"]),
            full(pk["wcs"]), full(pk["bcs"]),
            pl.BlockSpec(memory_space=pltpu.MemorySpace.SMEM),   # PReLU alphas
        ],
        out_specs=pl.BlockSpec((Bblk, C), lambda i: (i, 0)),
        compiler_params=pltpu.CompilerParams(
            dimension_semantics=("parallel",),
            vmem_limit_bytes=_vmem_limit_bytes(Bblk * L, len(cfg))),
    )(x, pk["wc0"], pk["b0"], pk["scales"], pk["shifts"],
      pk["wcs"], pk["bcs"], pk["alphas"])


def classifier_pallas(f_seq, f_pkt, f_smi, cls):
    B = f_seq.shape[0]
    vmem = pl.BlockSpec(memory_space=pltpu.MemorySpace.VMEM)
    smem = pl.BlockSpec(memory_space=pltpu.MemorySpace.SMEM)
    return pl.pallas_call(
        _classifier_kernel,
        out_shape=jax.ShapeDtypeStruct((B, 1), jnp.float32),
        in_specs=[vmem] * 11 + [smem],
    )(f_seq, f_pkt, f_smi, cls["w1a"], cls["w1b"], cls["w1c"], cls["b1"],
      cls["w2"], cls["b2"], cls["w3"], cls["b3"], cls["alphas"])


# ----------------------------------------------------------------------------
# Model forward (WLPPDTA3to1, onehot=False, dilation=True, eval mode)
# ----------------------------------------------------------------------------
def forward(prep, seq, pkt, smi):
    B, Ls, F = seq.shape
    Lp, Lm = pkt.shape[1], smi.shape[1]
    seq_feat = branch_pallas(seq.reshape(B * Ls, F), prep["seq"], SEQ_DENSE, "linear", B, Ls)
    pkt_feat = branch_pallas(pkt.reshape(B * Lp, F), prep["pkt"], PKT_DENSE, "linear", B, Lp)
    # TODO(synk): pass smi lane-major / via scalar prefetch to avoid the 128x
    #             lane padding of the (M,1) int32 block for very long SMILES.
    smi_feat = branch_pallas(smi.reshape(B * Lm, 1).astype(jnp.int32),
                             prep["smi"], SMI_DENSE, "onehot", B, Lm)
    # cat_dropout / classifier dropouts are identity in eval mode.
    return classifier_pallas(seq_feat, pkt_feat, smi_feat, prep["cls"])


# ----------------------------------------------------------------------------
# Deterministic parameter construction
# ----------------------------------------------------------------------------
def init_params(key):
    keys = iter(jax.random.split(key, 128))

    def nk():
        return next(keys)

    def lin(k_in, k_out):
        return {"w": jax.random.normal(nk(), (k_in, k_out), jnp.float32) / jnp.sqrt(1.0 * k_in),
                "b": jax.random.normal(nk(), (k_out,), jnp.float32) * 0.01}

    def conv(cin, cout):
        return {"w": jax.random.normal(nk(), (3, cin, cout), jnp.float32) / jnp.sqrt(3.0 * cin),
                "b": jax.random.normal(nk(), (cout,), jnp.float32) * 0.01}

    def bn_fold(c):
        # eval-mode BatchNorm1d folded to per-channel scale/shift
        gamma = 1.0 + 0.1 * jax.random.normal(nk(), (c,), jnp.float32)
        beta = 0.05 * jax.random.normal(nk(), (c,), jnp.float32)
        rmean = 0.05 * jax.random.normal(nk(), (c,), jnp.float32)
        rvar = 1.0 + 0.1 * jnp.abs(jax.random.normal(nk(), (c,), jnp.float32))
        scale = gamma / jnp.sqrt(rvar + 1e-5)
        shift = beta - rmean * scale
        return scale, shift

    def dense_layer(cin, cout):
        s, sh = bn_fold(cin)
        c = conv(cin, cout)
        return {"bn_scale": s, "bn_shift": sh, "alpha": 0.25, "w": c["w"], "b": c["b"]}

    def final_bn(c):
        s, sh = bn_fold(c)
        return {"bn_scale": s, "bn_shift": sh, "alpha": 0.25}

    def branch(cfg):
        return {"conv0": conv(C, COUT0),
                "dense": [dense_layer(cin, cout) for cin, cout, _ in cfg],
                "final": final_bn(C)}

    l1, l2, l3 = lin(3 * C, C), lin(C, 64), lin(64, 1)
    cls = dict(w1=l1["w"], b1=l1["b"], a1=0.25,
               w2=l2["w"], b2=l2["b"], a2=0.25,
               w3=l3["w"], b3=l3["b"])

    return {
        "seq_embed": lin(CHAR_SEQ_SET_LEN, C),                 # shared by seq & pkt
        "smi_embed": jax.random.normal(nk(), (CHAR_SMI_SET_LEN + 1, C), jnp.float32) * 0.1,
        "seq_branch": branch(SEQ_DENSE),
        "pkt_branch": branch(PKT_DENSE),
        "smi_branch": branch(SMI_DENSE),
        "classifier": cls,
    }


# ----------------------------------------------------------------------------
# Pure-JAX reference (for correctness check)
# ----------------------------------------------------------------------------
def _ref_prelu(x, alpha):
    return jnp.where(x >= 0, x, alpha * x)


def _ref_dilconv(a, w, b, d):
    B, L, _ = a.shape
    apad = jnp.pad(a, ((0, 0), (d, d), (0, 0)))
    y = jnp.broadcast_to(b[None, None, :], (B, L, w.shape[2])).astype(jnp.float32)
    for t in range(3):
        y = y + jnp.einsum("blc,co->blo", apad[:, t * d:t * d + L, :], w[t])
    return y


def _ref_branch(x, bp, cfg):
    x = _ref_dilconv(x, bp["conv0"]["w"], bp["conv0"]["b"], 1)
    for lp, (_, _, d) in zip(bp["dense"], cfg):
        a = _ref_prelu(x * lp["bn_scale"] + lp["bn_shift"], lp["alpha"])
        x = jnp.concatenate([x, _ref_dilconv(a, lp["w"], lp["b"], d)], axis=2)
    fb = bp["final"]
    a = _ref_prelu(x * fb["bn_scale"] + fb["bn_shift"], fb["alpha"])
    return jnp.max(a, axis=1)


def ref_forward(params, seq, pkt, smi):
    se = params["seq_embed"]
    seq_e = seq @ se["w"] + se["b"]
    pkt_e = pkt @ se["w"] + se["b"]
    smi_e = params["smi_embed"][smi]
    seq_feat = _ref_branch(seq_e, params["seq_branch"], SEQ_DENSE)
    pkt_feat = _ref_branch(pkt_e, params["pkt_branch"], PKT_DENSE)
    smi_feat = _ref_branch(smi_e, params["smi_branch"], SMI_DENSE)
    cat = jnp.concatenate([seq_feat, pkt_feat, smi_feat], axis=1)      # (B, 384)
    cp = params["classifier"]
    h = _ref_prelu(cat @ cp["w1"] + cp["b1"], cp["a1"])
    h = _ref_prelu(h @ cp["w2"] + cp["b2"], cp["a2"])
    return h @ cp["w3"] + cp["b3"]


# ----------------------------------------------------------------------------
if __name__ == "__main__":
    key = jax.random.PRNGKey(0)
    kp, ks, kq, km = jax.random.split(key, 4)

    params = init_params(kp)

    B, L_SEQ, L_SMI = 2, 16, 8
    seq = jax.random.normal(ks, (B, L_SEQ, CHAR_SEQ_SET_LEN), jnp.float32)
    pkt = jax.random.normal(kq, (B, L_SEQ, CHAR_SEQ_SET_LEN), jnp.float32)
    smi = jax.random.randint(km, (B, L_SMI), 0, CHAR_SMI_SET_LEN + 1, jnp.int32)

    prep = prepare_params(params)            # one-time packing, outside jit
    fwd = jax.jit(forward)
    out = jax.block_until_ready(fwd(prep, seq, pkt, smi))

    ref = ref_forward(params, seq, pkt, smi)
    err = float(jnp.max(jnp.abs(out - ref)))
    assert out.shape == (B, 1), out.shape
    tol = 1e-3 if MATMUL_DTYPE == jnp.float32 else 5e-2
    assert err < tol, f"max abs error {err}"

    print("KERNEL_OK")
</pallas_src>

<mosaic_0001>
module attributes {stable_mosaic.version = 11 : i64} {
  func.func @_branch_kernel(%arg0: i32, %arg1: memref<16x1xi32, #tpu.memory_space<vmem>>, %arg2: memref<128x128xf32, #tpu.memory_space<vmem>>, %arg3: memref<3x128xf32, #tpu.memory_space<vmem>>, %arg4: memref<4x128xf32, #tpu.memory_space<vmem>>, %arg5: memref<4x128xf32, #tpu.memory_space<vmem>>, %arg6: memref<3x128x128xf32, #tpu.memory_space<vmem>>, %arg7: memref<3x128xf32, #tpu.memory_space<vmem>>, %arg8: memref<4xf32, #tpu.memory_space<smem>>, %arg9: memref<2x128xf32, #tpu.memory_space<vmem>>) attributes {dimension_semantics = [#tpu.dimension_semantics<parallel>], iteration_bounds = array<i64: 1>, scalar_prefetch = 0 : i64, scratch_operands = 0 : i64, tpu.core_type = #tpu.core_type<tc>, window_params = [{transform_indices = @transform_0, window_bounds = array<i64: 16, 1>}, {pipeline_mode = #tpu.pipeline_mode<synchronous>, transform_indices = @transform_1, window_bounds = array<i64: 128, 128>}, {pipeline_mode = #tpu.pipeline_mode<synchronous>, transform_indices = @transform_2, window_bounds = array<i64: 3, 128>}, {pipeline_mode = #tpu.pipeline_mode<synchronous>, transform_indices = @transform_3, window_bounds = array<i64: 4, 128>}, {pipeline_mode = #tpu.pipeline_mode<synchronous>, transform_indices = @transform_4, window_bounds = array<i64: 4, 128>}, {pipeline_mode = #tpu.pipeline_mode<synchronous>, transform_indices = @transform_5, window_bounds = array<i64: 3, 128, 128>}, {pipeline_mode = #tpu.pipeline_mode<synchronous>, transform_indices = @transform_6, window_bounds = array<i64: 3, 128>}, {transform_indices = @transform_7, window_bounds = array<i64: 4>}, {transform_indices = @transform_8, window_bounds = array<i64: 2, 128>}]} {
    %0 = tpu.iota {dimensions = array<i32: 0>} : vector<16x1xi32>
    %c8_i32 = arith.constant 8 : i32
    %c0_i32 = arith.constant 0 : i32
    %1 = arith.cmpi eq, %c8_i32, %c0_i32 : i32
    %c1_i32 = arith.constant 1 : i32
    %2 = arith.select %1, %c1_i32, %c8_i32 : i32
    %3 = vector.broadcast %2 : i32 to vector<16x1xi32>
    %4 = arith.remsi %0, %3 : vector<16x1xi32>
    %c0_i32_0 = arith.constant 0 : i32
    %5 = vector.broadcast %c0_i32_0 : i32 to vector<16x1xi32>
    %6 = arith.cmpi ne, %4, %5 : vector<16x1xi32>
    %c0_i32_1 = arith.constant 0 : i32
    %7 = vector.broadcast %c0_i32_1 : i32 to vector<16x1xi32>
    %8 = arith.cmpi slt, %4, %7 : vector<16x1xi32>
    %c0_i32_2 = arith.constant 0 : i32
    %9 = arith.cmpi slt, %2, %c0_i32_2 : i32
    %10 = vector.broadcast %9 : i1 to vector<16x1xi1>
    %11 = vector.broadcast %10 : vector<16x1xi1> to vector<16x1xi1>
    %12 = arith.xori %8, %11 : vector<16x1xi1>
    %13 = arith.andi %12, %6 : vector<16x1xi1>
    %14 = vector.broadcast %2 : i32 to vector<16x1xi32>
    %15 = arith.addi %4, %14 : vector<16x1xi32>
    %16 = arith.select %13, %15, %4 : vector<16x1xi1>, vector<16x1xi32>
    %c1_i32_3 = arith.constant 1 : i32
    %17 = vector.broadcast %c1_i32_3 : i32 to vector<16x1xi32>
    %18 = arith.cmpi sge, %16, %17 : vector<16x1xi32>
    %c2_i32 = arith.constant 2 : i32
    %19 = vector.broadcast %c2_i32 : i32 to vector<16x1xi32>
    %20 = arith.cmpi sge, %16, %19 : vector<16x1xi32>
    %c4_i32 = arith.constant 4 : i32
    %21 = vector.broadcast %c4_i32 : i32 to vector<16x1xi32>
    %22 = arith.cmpi sge, %16, %21 : vector<16x1xi32>
    %c7_i32 = arith.constant 7 : i32
    %23 = vector.broadcast %c7_i32 : i32 to vector<16x1xi32>
    %24 = arith.cmpi slt, %16, %23 : vector<16x1xi32>
    %c6_i32 = arith.constant 6 : i32
    %25 = vector.broadcast %c6_i32 : i32 to vector<16x1xi32>
    %26 = arith.cmpi slt, %16, %25 : vector<16x1xi32>
    %c4_i32_4 = arith.constant 4 : i32
    %27 = vector.broadcast %c4_i32_4 : i32 to vector<16x1xi32>
    %28 = arith.cmpi slt, %16, %27 : vector<16x1xi32>
    %29 = tpu.iota {dimensions = array<i32: 1>} : vector<1x128xi32>
    %c0 = arith.constant 0 : index
    %c0_5 = arith.constant 0 : index
    %30 = vector.load %arg1[%c0, %c0_5] : memref<16x1xi32, #tpu.memory_space<vmem>>, vector<16x1xi32>
    %31 = vector.broadcast %30 : vector<16x1xi32> to vector<16x128xi32>
    %32 = vector.broadcast %29 : vector<1x128xi32> to vector<16x128xi32>
    %33 = arith.cmpi eq, %31, %32 : vector<16x128xi32>
    %34 = arith.extui %33 : vector<16x128xi1> to vector<16x128xi32>
    %35 = arith.sitofp %34 : vector<16x128xi32> to vector<16x128xf32>
    %c0_6 = arith.constant 0 : index
    %c0_7 = arith.constant 0 : index
    %36 = vector.load %arg2[%c0_6, %c0_7] : memref<128x128xf32, #tpu.memory_space<vmem>>, vector<128x128xf32>
    %c0_8 = arith.constant 0 : index
    %c0_9 = arith.constant 0 : index
    %37 = vector.load %arg3[%c0_8, %c0_9] : memref<3x128xf32, #tpu.memory_space<vmem>>, vector<1x128xf32>
    %38 = vector.shape_cast %37 : vector<1x128xf32> to vector<128xf32>
    %c1 = arith.constant 1 : index
    %c0_10 = arith.constant 0 : index
    %39 = vector.load %arg3[%c1, %c0_10] : memref<3x128xf32, #tpu.memory_space<vmem>>, vector<1x128xf32>
    %40 = vector.shape_cast %39 : vector<1x128xf32> to vector<128xf32>
    %c2 = arith.constant 2 : index
    %c0_11 = arith.constant 0 : index
    %41 = vector.load %arg3[%c2, %c0_11] : memref<3x128xf32, #tpu.memory_space<vmem>>, vector<1x128xf32>
    %42 = vector.shape_cast %41 : vector<1x128xf32> to vector<128xf32>
    %cst = arith.constant dense<0.000000e+00> : vector<16x128xf32>
    %43 = tpu.matmul %35, %36, %cst {dimension_numbers = #tpu.dot_dimension_numbers<[1], [0], [0], [1], [0, 0, 1, 1], [], []>} : vector<16x128xf32>, vector<128x128xf32>, vector<16x128xf32> -> vector<16x128xf32>
    %c1_i32_12 = arith.constant 1 : i32
    %44 = tpu.dynamic_rotate %43 by %c1_i32_12 dim 0 : vector<16x128xf32>, i32 -> vector<16x128xf32>
    %45 = vector.shape_cast %38 : vector<128xf32> to vector<1x128xf32>
    %46 = vector.broadcast %45 : vector<1x128xf32> to vector<16x128xf32>
    %47 = arith.addf %44, %46 : vector<16x128xf32>
    %cst_13 = arith.constant 0.000000e+00 : f32
    %48 = vector.shape_cast %18 : vector<16x1xi1> to vector<16x1xi1>
    %49 = vector.broadcast %48 : vector<16x1xi1> to vector<16x128xi1>
    %50 = vector.broadcast %cst_13 : f32 to vector<16x128xf32>
    %51 = arith.select %49, %47, %50 : vector<16x128xi1>, vector<16x128xf32>
    %c96_i32 = arith.constant 96 : i32
    %52 = tpu.dynamic_rotate %43 by %c96_i32 dim 1 : vector<16x128xf32>, i32 -> vector<16x128xf32>
    %c64_i32 = arith.constant 64 : i32
    %53 = tpu.dynamic_rotate %43 by %c64_i32 dim 1 : vector<16x128xf32>, i32 -> vector<16x128xf32>
    %c15_i32 = arith.constant 15 : i32
    %54 = tpu.dynamic_rotate %53 by %c15_i32 dim 0 : vector<16x128xf32>, i32 -> vector<16x128xf32>
    %55 = vector.shape_cast %42 : vector<128xf32> to vector<1x128xf32>
    %56 = vector.broadcast %55 : vector<1x128xf32> to vector<16x128xf32>
    %57 = arith.addf %54, %56 : vector<16x128xf32>
    %cst_14 = arith.constant 0.000000e+00 : f32
    %58 = vector.shape_cast %24 : vector<16x1xi1> to vector<16x1xi1>
    %59 = vector.broadcast %58 : vector<16x1xi1> to vector<16x128xi1>
    %60 = vector.broadcast %cst_14 : f32 to vector<16x128xf32>
    %61 = arith.select %59, %57, %60 : vector<16x128xi1>, vector<16x128xf32>
    %c0_i32_15 = arith.constant 0 : i32
    %62 = vector.broadcast %c0_i32_15 : i32 to vector<1x128xi32>
    %63 = arith.cmpi sge, %29, %62 : vector<1x128xi32>
    %c32_i32 = arith.constant 32 : i32
    %64 = vector.broadcast %c32_i32 : i32 to vector<1x128xi32>
    %65 = arith.cmpi slt, %29, %64 : vector<1x128xi32>
    %66 = arith.andi %63, %65 : vector<1x128xi1>
    %67 = arith.addf %51, %52 : vector<16x128xf32>
    %68 = arith.addf %67, %61 : vector<16x128xf32>
    %cst_16 = arith.constant 0.000000e+00 : f32
    %69 = vector.shape_cast %66 : vector<1x128xi1> to vector<1x128xi1>
    %70 = vector.broadcast %69 : vector<1x128xi1> to vector<16x128xi1>
    %71 = vector.broadcast %cst_16 : f32 to vector<16x128xf32>
    %72 = arith.select %70, %68, %71 : vector<16x128xi1>, vector<16x128xf32>
    %73 = vector.shape_cast %40 : vector<128xf32> to vector<1x128xf32>
    %74 = vector.broadcast %73 : vector<1x128xf32> to vector<16x128xf32>
    %75 = arith.addf %72, %74 : vector<16x128xf32>
    %c0_17 = arith.constant 0 : index
    %c0_18 = arith.constant 0 : index
    %76 = vector.load %arg4[%c0_17, %c0_18] : memref<4x128xf32, #tpu.memory_space<vmem>>, vector<1x128xf32>
    %77 = vector.shape_cast %76 : vector<1x128xf32> to vector<128xf32>
    %78 = vector.shape_cast %77 : vector<128xf32> to vector<1x128xf32>
    %79 = vector.broadcast %78 : vector<1x128xf32> to vector<16x128xf32>
    %80 = arith.mulf %75, %79 : vector<16x128xf32>
    %c0_19 = arith.constant 0 : index
    %c0_20 = arith.constant 0 : index
    %81 = vector.load %arg5[%c0_19, %c0_20] : memref<4x128xf32, #tpu.memory_space<vmem>>, vector<1x128xf32>
    %82 = vector.shape_cast %81 : vector<1x128xf32> to vector<128xf32>
    %83 = vector.shape_cast %82 : vector<128xf32> to vector<1x128xf32>
    %84 = vector.broadcast %83 : vector<1x128xf32> to vector<16x128xf32>
    %85 = arith.addf %80, %84 : vector<16x128xf32>
    %cst_21 = arith.constant 0.000000e+00 : f32
    %86 = vector.broadcast %cst_21 : f32 to vector<16x128xf32>
    %87 = arith.cmpf oge, %85, %86 : vector<16x128xf32>
    %c0_22 = arith.constant 0 : index
    %88 = memref.load %arg8[%c0_22] : memref<4xf32, #tpu.memory_space<smem>>
    %89 = vector.broadcast %88 : f32 to vector<16x128xf32>
    %90 = arith.mulf %89, %85 : vector<16x128xf32>
    %91 = arith.select %87, %85, %90 : vector<16x128xi1>, vector<16x128xf32>
    %c0_23 = arith.constant 0 : index
    %c0_24 = arith.constant 0 : index
    %c0_25 = arith.constant 0 : index
    %92 = vector.load %arg6[%c0_23, %c0_24, %c0_25] : memref<3x128x128xf32, #tpu.memory_space<vmem>>, vector<1x128x128xf32>
    %93 = vector.shape_cast %92 : vector<1x128x128xf32> to vector<128x128xf32>
    %c0_26 = arith.constant 0 : index
    %c0_27 = arith.constant 0 : index
    %94 = vector.load %arg7[%c0_26, %c0_27] : memref<3x128xf32, #tpu.memory_space<vmem>>, vector<1x128xf32>
    %95 = vector.shape_cast %94 : vector<1x128xf32> to vector<128xf32>
    %cst_28 = arith.constant dense<0.000000e+00> : vector<16x128xf32>
    %96 = tpu.matmul %91, %93, %cst_28 {dimension_numbers = #tpu.dot_dimension_numbers<[1], [0], [0], [1], [0, 0, 1, 1], [], []>} : vector<16x128xf32>, vector<128x128xf32>, vector<16x128xf32> -> vector<16x128xf32>
    %c32_i32_29 = arith.constant 32 : i32
    %97 = tpu.dynamic_rotate %96 by %c32_i32_29 dim 1 : vector<16x128xf32>, i32 -> vector<16x128xf32>
    %c1_i32_30 = arith.constant 1 : i32
    %98 = tpu.dynamic_rotate %97 by %c1_i32_30 dim 0 : vector<16x128xf32>, i32 -> vector<16x128xf32>
    %cst_31 = arith.constant 0.000000e+00 : f32
    %99 = vector.shape_cast %18 : vector<16x1xi1> to vector<16x1xi1>
    %100 = vector.broadcast %99 : vector<16x1xi1> to vector<16x128xi1>
    %101 = vector.broadcast %cst_31 : f32 to vector<16x128xf32>
    %102 = arith.select %100, %98, %101 : vector<16x128xi1>, vector<16x128xf32>
    %c96_i32_32 = arith.constant 96 : i32
    %103 = tpu.dynamic_rotate %96 by %c96_i32_32 dim 1 : vector<16x128xf32>, i32 -> vector<16x128xf32>
    %c15_i32_33 = arith.constant 15 : i32
    %104 = tpu.dynamic_rotate %103 by %c15_i32_33 dim 0 : vector<16x128xf32>, i32 -> vector<16x128xf32>
    %cst_34 = arith.constant 0.000000e+00 : f32
    %105 = vector.shape_cast %24 : vector<16x1xi1> to vector<16x1xi1>
    %106 = vector.broadcast %105 : vector<16x1xi1> to vector<16x128xi1>
    %107 = vector.broadcast %cst_34 : f32 to vector<16x128xf32>
    %108 = arith.select %106, %104, %107 : vector<16x128xi1>, vector<16x128xf32>
    %c32_i32_35 = arith.constant 32 : i32
    %109 = vector.broadcast %c32_i32_35 : i32 to vector<1x128xi32>
    %110 = arith.cmpi sge, %29, %109 : vector<1x128xi32>
    %c64_i32_36 = arith.constant 64 : i32
    %111 = vector.broadcast %c64_i32_36 : i32 to vector<1x128xi32>
    %112 = arith.cmpi slt, %29, %111 : vector<1x128xi32>
    %113 = arith.andi %110, %112 : vector<1x128xi1>
    %114 = arith.addf %102, %96 : vector<16x128xf32>
    %115 = arith.addf %114, %108 : vector<16x128xf32>
    %cst_37 = arith.constant 0.000000e+00 : f32
    %116 = vector.shape_cast %113 : vector<1x128xi1> to vector<1x128xi1>
    %117 = vector.broadcast %116 : vector<1x128xi1> to vector<16x128xi1>
    %118 = vector.broadcast %cst_37 : f32 to vector<16x128xf32>
    %119 = arith.select %117, %115, %118 : vector<16x128xi1>, vector<16x128xf32>
    %120 = vector.shape_cast %95 : vector<128xf32> to vector<1x128xf32>
    %121 = vector.broadcast %120 : vector<1x128xf32> to vector<16x128xf32>
    %122 = arith.addf %119, %121 : vector<16x128xf32>
    %123 = arith.addf %75, %122 : vector<16x128xf32>
    %c1_38 = arith.constant 1 : index
    %c0_39 = arith.constant 0 : index
    %124 = vector.load %arg4[%c1_38, %c0_39] : memref<4x128xf32, #tpu.memory_space<vmem>>, vector<1x128xf32>
    %125 = vector.shape_cast %124 : vector<1x128xf32> to vector<128xf32>
    %126 = vector.shape_cast %125 : vector<128xf32> to vector<1x128xf32>
    %127 = vector.broadcast %126 : vector<1x128xf32> to vector<16x128xf32>
    %128 = arith.mulf %123, %127 : vector<16x128xf32>
    %c1_40 = arith.constant 1 : index
    %c0_41 = arith.constant 0 : index
    %129 = vector.load %arg5[%c1_40, %c0_41] : memref<4x128xf32, #tpu.memory_space<vmem>>, vector<1x128xf32>
    %130 = vector.shape_cast %129 : vector<1x128xf32> to vector<128xf32>
    %131 = vector.shape_cast %130 : vector<128xf32> to vector<1x128xf32>
    %132 = vector.broadcast %131 : vector<1x128xf32> to vector<16x128xf32>
    %133 = arith.addf %128, %132 : vector<16x128xf32>
    %cst_42 = arith.constant 0.000000e+00 : f32
    %134 = vector.broadcast %cst_42 : f32 to vector<16x128xf32>
    %135 = arith.cmpf oge, %133, %134 : vector<16x128xf32>
    %c1_43 = arith.constant 1 : index
    %136 = memref.load %arg8[%c1_43] : memref<4xf32, #tpu.memory_space<smem>>
    %137 = vector.broadcast %136 : f32 to vector<16x128xf32>
    %138 = arith.mulf %137, %133 : vector<16x128xf32>
    %139 = arith.select %135, %133, %138 : vector<16x128xi1>, vector<16x128xf32>
    %c1_44 = arith.constant 1 : index
    %c0_45 = arith.constant 0 : index
    %c0_46 = arith.constant 0 : index
    %140 = vector.load %arg6[%c1_44, %c0_45, %c0_46] : memref<3x128x128xf32, #tpu.memory_space<vmem>>, vector<1x128x128xf32>
    %141 = vector.shape_cast %140 : vector<1x128x128xf32> to vector<128x128xf32>
    %c1_47 = arith.constant 1 : index
    %c0_48 = arith.constant 0 : index
    %142 = vector.load %arg7[%c1_47, %c0_48] : memref<3x128xf32, #tpu.memory_space<vmem>>, vector<1x128xf32>
    %143 = vector.shape_cast %142 : vector<1x128xf32> to vector<128xf32>
    %cst_49 = arith.constant dense<0.000000e+00> : vector<16x128xf32>
    %144 = tpu.matmul %139, %141, %cst_49 {dimension_numbers = #tpu.dot_dimension_numbers<[1], [0], [0], [1], [0, 0, 1, 1], [], []>} : vector<16x128xf32>, vector<128x128xf32>, vector<16x128xf32> -> vector<16x128xf32>
    %c64_i32_50 = arith.constant 64 : i32
    %145 = tpu.dynamic_rotate %144 by %c64_i32_50 dim 1 : vector<16x128xf32>, i32 -> vector<16x128xf32>
    %c2_i32_51 = arith.constant 2 : i32
    %146 = tpu.dynamic_rotate %145 by %c2_i32_51 dim 0 : vector<16x128xf32>, i32 -> vector<16x128xf32>
    %cst_52 = arith.constant 0.000000e+00 : f32
    %147 = vector.shape_cast %20 : vector<16x1xi1> to vector<16x1xi1>
    %148 = vector.broadcast %147 : vector<16x1xi1> to vector<16x128xi1>
    %149 = vector.broadcast %cst_52 : f32 to vector<16x128xf32>
    %150 = arith.select %148, %146, %149 : vector<16x128xi1>, vector<16x128xf32>
    %c32_i32_53 = arith.constant 32 : i32
    %151 = tpu.dynamic_rotate %144 by %c32_i32_53 dim 1 : vector<16x128xf32>, i32 -> vector<16x128xf32>
    %c14_i32 = arith.constant 14 : i32
    %152 = tpu.dynamic_rotate %144 by %c14_i32 dim 0 : vector<16x128xf32>, i32 -> vector<16x128xf32>
    %cst_54 = arith.constant 0.000000e+00 : f32
    %153 = vector.shape_cast %26 : vector<16x1xi1> to vector<16x1xi1>
    %154 = vector.broadcast %153 : vector<16x1xi1> to vector<16x128xi1>
    %155 = vector.broadcast %cst_54 : f32 to vector<16x128xf32>
    %156 = arith.select %154, %152, %155 : vector<16x128xi1>, vector<16x128xf32>
    %c64_i32_55 = arith.constant 64 : i32
    %157 = vector.broadcast %c64_i32_55 : i32 to vector<1x128xi32>
    %158 = arith.cmpi sge, %29, %157 : vector<1x128xi32>
    %c96_i32_56 = arith.constant 96 : i32
    %159 = vector.broadcast %c96_i32_56 : i32 to vector<1x128xi32>
    %160 = arith.cmpi slt, %29, %159 : vector<1x128xi32>
    %161 = arith.andi %158, %160 : vector<1x128xi1>
    %162 = arith.addf %150, %151 : vector<16x128xf32>
    %163 = arith.addf %162, %156 : vector<16x128xf32>
    %cst_57 = arith.constant 0.000000e+00 : f32
    %164 = vector.shape_cast %161 : vector<1x128xi1> to vector<1x128xi1>
    %165 = vector.broadcast %164 : vector<1x128xi1> to vector<16x128xi1>
    %166 = vector.broadcast %cst_57 : f32 to vector<16x128xf32>
    %167 = arith.select %165, %163, %166 : vector<16x128xi1>, vector<16x128xf32>
    %168 = vector.shape_cast %143 : vector<128xf32> to vector<1x128xf32>
    %169 = vector.broadcast %168 : vector<1x128xf32> to vector<16x128xf32>
    %170 = arith.addf %167, %169 : vector<16x128xf32>
    %171 = arith.addf %123, %170 : vector<16x128xf32>
    %c2_58 = arith.constant 2 : index
    %c0_59 = arith.constant 0 : index
    %172 = vector.load %arg4[%c2_58, %c0_59] : memref<4x128xf32, #tpu.memory_space<vmem>>, vector<1x128xf32>
    %173 = vector.shape_cast %172 : vector<1x128xf32> to vector<128xf32>
    %174 = vector.shape_cast %173 : vector<128xf32> to vector<1x128xf32>
    %175 = vector.broadcast %174 : vector<1x128xf32> to vector<16x128xf32>
    %176 = arith.mulf %171, %175 : vector<16x128xf32>
    %c2_60 = arith.constant 2 : index
    %c0_61 = arith.constant 0 : index
    %177 = vector.load %arg5[%c2_60, %c0_61] : memref<4x128xf32, #tpu.memory_space<vmem>>, vector<1x128xf32>
    %178 = vector.shape_cast %177 : vector<1x128xf32> to vector<128xf32>
    %179 = vector.shape_cast %178 : vector<128xf32> to vector<1x128xf32>
    %180 = vector.broadcast %179 : vector<1x128xf32> to vector<16x128xf32>
    %181 = arith.addf %176, %180 : vector<16x128xf32>
    %cst_62 = arith.constant 0.000000e+00 : f32
    %182 = vector.broadcast %cst_62 : f32 to vector<16x128xf32>
    %183 = arith.cmpf oge, %181, %182 : vector<16x128xf32>
    %c2_63 = arith.constant 2 : index
    %184 = memref.load %arg8[%c2_63] : memref<4xf32, #tpu.memory_space<smem>>
    %185 = vector.broadcast %184 : f32 to vector<16x128xf32>
    %186 = arith.mulf %185, %181 : vector<16x128xf32>
    %187 = arith.select %183, %181, %186 : vector<16x128xi1>, vector<16x128xf32>
    %c2_64 = arith.constant 2 : index
    %c0_65 = arith.constant 0 : index
    %c0_66 = arith.constant 0 : index
    %188 = vector.load %arg6[%c2_64, %c0_65, %c0_66] : memref<3x128x128xf32, #tpu.memory_space<vmem>>, vector<1x128x128xf32>
    %189 = vector.shape_cast %188 : vector<1x128x128xf32> to vector<128x128xf32>
    %c2_67 = arith.constant 2 : index
    %c0_68 = arith.constant 0 : index
    %190 = vector.load %arg7[%c2_67, %c0_68] : memref<3x128xf32, #tpu.memory_space<vmem>>, vector<1x128xf32>
    %191 = vector.shape_cast %190 : vector<1x128xf32> to vector<128xf32>
    %cst_69 = arith.constant dense<0.000000e+00> : vector<16x128xf32>
    %192 = tpu.matmul %187, %189, %cst_69 {dimension_numbers = #tpu.dot_dimension_numbers<[1], [0], [0], [1], [0, 0, 1, 1], [], []>} : vector<16x128xf32>, vector<128x128xf32>, vector<16x128xf32> -> vector<16x128xf32>
    %c96_i32_70 = arith.constant 96 : i32
    %193 = tpu.dynamic_rotate %192 by %c96_i32_70 dim 1 : vector<16x128xf32>, i32 -> vector<16x128xf32>
    %c4_i32_71 = arith.constant 4 : i32
    %194 = tpu.dynamic_rotate %193 by %c4_i32_71 dim 0 : vector<16x128xf32>, i32 -> vector<16x128xf32>
    %cst_72 = arith.constant 0.000000e+00 : f32
    %195 = vector.shape_cast %22 : vector<16x1xi1> to vector<16x1xi1>
    %196 = vector.broadcast %195 : vector<16x1xi1> to vector<16x128xi1>
    %197 = vector.broadcast %cst_72 : f32 to vector<16x128xf32>
    %198 = arith.select %196, %194, %197 : vector<16x128xi1>, vector<16x128xf32>
    %c64_i32_73 = arith.constant 64 : i32
    %199 = tpu.dynamic_rotate %192 by %c64_i32_73 dim 1 : vector<16x128xf32>, i32 -> vector<16x128xf32>
    %c32_i32_74 = arith.constant 32 : i32
    %200 = tpu.dynamic_rotate %192 by %c32_i32_74 dim 1 : vector<16x128xf32>, i32 -> vector<16x128xf32>
    %c12_i32 = arith.constant 12 : i32
    %201 = tpu.dynamic_rotate %200 by %c12_i32 dim 0 : vector<16x128xf32>, i32 -> vector<16x128xf32>
    %cst_75 = arith.constant 0.000000e+00 : f32
    %202 = vector.shape_cast %28 : vector<16x1xi1> to vector<16x1xi1>
    %203 = vector.broadcast %202 : vector<16x1xi1> to vector<16x128xi1>
    %204 = vector.broadcast %cst_75 : f32 to vector<16x128xf32>
    %205 = arith.select %203, %201, %204 : vector<16x128xi1>, vector<16x128xf32>
    %c96_i32_76 = arith.constant 96 : i32
    %206 = vector.broadcast %c96_i32_76 : i32 to vector<1x128xi32>
    %207 = arith.cmpi sge, %29, %206 : vector<1x128xi32>
    %c128_i32 = arith.constant 128 : i32
    %208 = vector.broadcast %c128_i32 : i32 to vector<1x128xi32>
    %209 = arith.cmpi slt, %29, %208 : vector<1x128xi32>
    %210 = arith.andi %207, %209 : vector<1x128xi1>
    %211 = arith.addf %198, %199 : vector<16x128xf32>
    %212 = arith.addf %211, %205 : vector<16x128xf32>
    %cst_77 = arith.constant 0.000000e+00 : f32
    %213 = vector.shape_cast %210 : vector<1x128xi1> to vector<1x128xi1>
    %214 = vector.broadcast %213 : vector<1x128xi1> to vector<16x128xi1>
    %215 = vector.broadcast %cst_77 : f32 to vector<16x128xf32>
    %216 = arith.select %214, %212, %215 : vector<16x128xi1>, vector<16x128xf32>
    %217 = vector.shape_cast %191 : vector<128xf32> to vector<1x128xf32>
    %218 = vector.broadcast %217 : vector<1x128xf32> to vector<16x128xf32>
    %219 = arith.addf %216, %218 : vector<16x128xf32>
    %220 = arith.addf %171, %219 : vector<16x128xf32>
    %c3 = arith.constant 3 : index
    %c0_78 = arith.constant 0 : index
    %221 = vector.load %arg4[%c3, %c0_78] : memref<4x128xf32, #tpu.memory_space<vmem>>, vector<1x128xf32>
    %222 = vector.shape_cast %221 : vector<1x128xf32> to vector<128xf32>
    %223 = vector.shape_cast %222 : vector<128xf32> to vector<1x128xf32>
    %224 = vector.broadcast %223 : vector<1x128xf32> to vector<16x128xf32>
    %225 = arith.mulf %220, %224 : vector<16x128xf32>
    %c3_79 = arith.constant 3 : index
    %c0_80 = arith.constant 0 : index
    %226 = vector.load %arg5[%c3_79, %c0_80] : memref<4x128xf32, #tpu.memory_space<vmem>>, vector<1x128xf32>
    %227 = vector.shape_cast %226 : vector<1x128xf32> to vector<128xf32>
    %228 = vector.shape_cast %227 : vector<128xf32> to vector<1x128xf32>
    %229 = vector.broadcast %228 : vector<1x128xf32> to vector<16x128xf32>
    %230 = arith.addf %225, %229 : vector<16x128xf32>
    %cst_81 = arith.constant 0.000000e+00 : f32
    %231 = vector.broadcast %cst_81 : f32 to vector<16x128xf32>
    %232 = arith.cmpf oge, %230, %231 : vector<16x128xf32>
    %c3_82 = arith.constant 3 : index
    %233 = memref.load %arg8[%c3_82] : memref<4xf32, #tpu.memory_space<smem>>
    %234 = vector.broadcast %233 : f32 to vector<16x128xf32>
    %235 = arith.mulf %234, %230 : vector<16x128xf32>
    %236 = arith.select %232, %230, %235 : vector<16x128xi1>, vector<16x128xf32>
    %237 = vector.shape_cast %236 : vector<16x128xf32> to vector<2x8x128xf32>
    %cst_83 = arith.constant dense<0xFF800000> : vector<2x128xf32>
    %238 = vector.multi_reduction <maximumf>, %237, %cst_83 [1] : vector<2x8x128xf32> to vector<2x128xf32>
    %c0_84 = arith.constant 0 : index
    %c0_85 = arith.constant 0 : index
    %239 = vector.load %arg9[%c0_84, %c0_85] : memref<2x128xf32, #tpu.memory_space<vmem>>, vector<2x128xf32>
    tpu.vector_store %arg9[%c0_84, %c0_85], %238 {strides = array<i32>} : memref<2x128xf32, #tpu.memory_space<vmem>>, vector<2x128xf32>,
    return
  }
  func.func @transform_0(%arg0: i32) -> (i32, i32) {
    %c0_i32 = arith.constant 0 : i32
    %c0_i32_0 = arith.constant 0 : i32
    return %arg0, %c0_i32 : i32, i32
  }
  func.func @transform_1(%arg0: i32) -> (i32, i32) {
    %c0_i32 = arith.constant 0 : i32
    %c0_i32_0 = arith.constant 0 : i32
    %c0_i32_1 = arith.constant 0 : i32
    return %c0_i32, %c0_i32_0 : i32, i32
  }
  func.func @transform_2(%arg0: i32) -> (i32, i32) {
    %c0_i32 = arith.constant 0 : i32
    %c0_i32_0 = arith.constant 0 : i32
    %c0_i32_1 = arith.constant 0 : i32
    return %c0_i32, %c0_i32_0 : i32, i32
  }
  func.func @transform_3(%arg0: i32) -> (i32, i32) {
    %c0_i32 = arith.constant 0 : i32
    %c0_i32_0 = arith.constant 0 : i32
    %c0_i32_1 = arith.constant 0 : i32
    return %c0_i32, %c0_i32_0 : i32, i32
  }
  func.func @transform_4(%arg0: i32) -> (i32, i32) {
    %c0_i32 = arith.constant 0 : i32
    %c0_i32_0 = arith.constant 0 : i32
    %c0_i32_1 = arith.constant 0 : i32
    return %c0_i32, %c0_i32_0 : i32, i32
  }
  func.func @transform_5(%arg0: i32) -> (i32, i32, i32) {
    %c0_i32 = arith.constant 0 : i32
    %c0_i32_0 = arith.constant 0 : i32
    %c0_i32_1 = arith.constant 0 : i32
    %c0_i32_2 = arith.constant 0 : i32
    return %c0_i32, %c0_i32_0, %c0_i32_1 : i32, i32, i32
  }
  func.func @transform_6(%arg0: i32) -> (i32, i32) {
    %c0_i32 = arith.constant 0 : i32
    %c0_i32_0 = arith.constant 0 : i32
    %c0_i32_1 = arith.constant 0 : i32
    return %c0_i32, %c0_i32_0 : i32, i32
  }
  func.func @transform_7(%arg0: i32) -> i32 {
    %c0_i32 = arith.constant 0 : i32
    %c0_i32_0 = arith.constant 0 : i32
    return %c0_i32 : i32
  }
  func.func @transform_8(%arg0: i32) -> (i32, i32) {
    %c0_i32 = arith.constant 0 : i32
    %c0_i32_0 = arith.constant 0 : i32
    return %arg0, %c0_i32 : i32, i32
  }
}

module attributes {stable_mosaic.version = 11 : i64} {
  func.func @_branch_kernel(%arg0: i32, %arg1: memref<32x32xf32, #tpu.memory_space<vmem>>, %arg2: memref<32x128xf32, #tpu.memory_space<vmem>>, %arg3: memref<3x128xf32, #tpu.memory_space<vmem>>, %arg4: memref<5x128xf32, #tpu.memory_space<vmem>>, %arg5: memref<5x128xf32, #tpu.memory_space<vmem>>, %arg6: memref<4x128x128xf32, #tpu.memory_space<vmem>>, %arg7: memref<4x128xf32, #tpu.memory_space<vmem>>, %arg8: memref<5xf32, #tpu.memory_space<smem>>, %arg9: memref<2x128xf32, #tpu.memory_space<vmem>>) attributes {dimension_semantics = [#tpu.dimension_semantics<parallel>], iteration_bounds = array<i64: 1>, scalar_prefetch = 0 : i64, scratch_operands = 0 : i64, tpu.core_type = #tpu.core_type<tc>, window_params = [{transform_indices = @transform_0, window_bounds = array<i64: 32, 32>}, {pipeline_mode = #tpu.pipeline_mode<synchronous>, transform_indices = @transform_1, window_bounds = array<i64: 32, 128>}, {pipeline_mode = #tpu.pipeline_mode<synchronous>, transform_indices = @transform_2, window_bounds = array<i64: 3, 128>}, {pipeline_mode = #tpu.pipeline_mode<synchronous>, transform_indices = @transform_3, window_bounds = array<i64: 5, 128>}, {pipeline_mode = #tpu.pipeline_mode<synchronous>, transform_indices = @transform_4, window_bounds = array<i64: 5, 128>}, {pipeline_mode = #tpu.pipeline_mode<synchronous>, transform_indices = @transform_5, window_bounds = array<i64: 4, 128, 128>}, {pipeline_mode = #tpu.pipeline_mode<synchronous>, transform_indices = @transform_6, window_bounds = array<i64: 4, 128>}, {transform_indices = @transform_7, window_bounds = array<i64: 5>}, {transform_indices = @transform_8, window_bounds = array<i64: 2, 128>}]} {
    %0 = tpu.iota {dimensions = array<i32: 0>} : vector<32x1xi32>
    %c16_i32 = arith.constant 16 : i32
    %c0_i32 = arith.constant 0 : i32
    %1 = arith.cmpi eq, %c16_i32, %c0_i32 : i32
    %c1_i32 = arith.constant 1 : i32
    %2 = arith.select %1, %c1_i32, %c16_i32 : i32
    %3 = vector.broadcast %2 : i32 to vector<32x1xi32>
    %4 = arith.remsi %0, %3 : vector<32x1xi32>
    %c0_i32_0 = arith.constant 0 : i32
    %5 = vector.broadcast %c0_i32_0 : i32 to vector<32x1xi32>
    %6 = arith.cmpi ne, %4, %5 : vector<32x1xi32>
    %c0_i32_1 = arith.constant 0 : i32
    %7 = vector.broadcast %c0_i32_1 : i32 to vector<32x1xi32>
    %8 = arith.cmpi slt, %4, %7 : vector<32x1xi32>
    %c0_i32_2 = arith.constant 0 : i32
    %9 = arith.cmpi slt, %2, %c0_i32_2 : i32
    %10 = vector.broadcast %9 : i1 to vector<32x1xi1>
    %11 = vector.broadcast %10 : vector<32x1xi1> to vector<32x1xi1>
    %12 = arith.xori %8, %11 : vector<32x1xi1>
    %13 = arith.andi %12, %6 : vector<32x1xi1>
    %14 = vector.broadcast %2 : i32 to vector<32x1xi32>
    %15 = arith.addi %4, %14 : vector<32x1xi32>
    %16 = arith.select %13, %15, %4 : vector<32x1xi1>, vector<32x1xi32>
    %c1_i32_3 = arith.constant 1 : i32
    %17 = vector.broadcast %c1_i32_3 : i32 to vector<32x1xi32>
    %18 = arith.cmpi sge, %16, %17 : vector<32x1xi32>
    %c2_i32 = arith.constant 2 : i32
    %19 = vector.broadcast %c2_i32 : i32 to vector<32x1xi32>
    %20 = arith.cmpi sge, %16, %19 : vector<32x1xi32>
    %c4_i32 = arith.constant 4 : i32
    %21 = vector.broadcast %c4_i32 : i32 to vector<32x1xi32>
    %22 = arith.cmpi sge, %16, %21 : vector<32x1xi32>
    %c8_i32 = arith.constant 8 : i32
    %23 = vector.broadcast %c8_i32 : i32 to vector<32x1xi32>
    %24 = arith.cmpi sge, %16, %23 : vector<32x1xi32>
    %c15_i32 = arith.constant 15 : i32
    %25 = vector.broadcast %c15_i32 : i32 to vector<32x1xi32>
    %26 = arith.cmpi slt, %16, %25 : vector<32x1xi32>
    %c14_i32 = arith.constant 14 : i32
    %27 = vector.broadcast %c14_i32 : i32 to vector<32x1xi32>
    %28 = arith.cmpi slt, %16, %27 : vector<32x1xi32>
    %c12_i32 = arith.constant 12 : i32
    %29 = vector.broadcast %c12_i32 : i32 to vector<32x1xi32>
    %30 = arith.cmpi slt, %16, %29 : vector<32x1xi32>
    %c8_i32_4 = arith.constant 8 : i32
    %31 = vector.broadcast %c8_i32_4 : i32 to vector<32x1xi32>
    %32 = arith.cmpi slt, %16, %31 : vector<32x1xi32>
    %33 = tpu.iota {dimensions = array<i32: 1>} : vector<1x128xi32>
    %c0 = arith.constant 0 : index
    %c0_5 = arith.constant 0 : index
    %34 = vector.load %arg1[%c0, %c0_5] : memref<32x32xf32, #tpu.memory_space<vmem>>, vector<32x32xf32>
    %c0_6 = arith.constant 0 : index
    %c0_7 = arith.constant 0 : index
    %35 = vector.load %arg2[%c0_6, %c0_7] : memref<32x128xf32, #tpu.memory_space<vmem>>, vector<32x128xf32>
    %c0_8 = arith.constant 0 : index
    %c0_9 = arith.constant 0 : index
    %36 = vector.load %arg3[%c0_8, %c0_9] : memref<3x128xf32, #tpu.memory_space<vmem>>, vector<1x128xf32>
    %37 = vector.shape_cast %36 : vector<1x128xf32> to vector<128xf32>
    %c1 = arith.constant 1 : index
    %c0_10 = arith.constant 0 : index
    %38 = vector.load %arg3[%c1, %c0_10] : memref<3x128xf32, #tpu.memory_space<vmem>>, vector<1x128xf32>
    %39 = vector.shape_cast %38 : vector<1x128xf32> to vector<128xf32>
    %c2 = arith.constant 2 : index
    %c0_11 = arith.constant 0 : index
    %40 = vector.load %arg3[%c2, %c0_11] : memref<3x128xf32, #tpu.memory_space<vmem>>, vector<1x128xf32>
    %41 = vector.shape_cast %40 : vector<1x128xf32> to vector<128xf32>
    %cst = arith.constant dense<0.000000e+00> : vector<32x128xf32>
    %42 = tpu.matmul %34, %35, %cst {dimension_numbers = #tpu.dot_dimension_numbers<[1], [0], [0], [1], [0, 0, 1, 1], [], []>} : vector<32x32xf32>, vector<32x128xf32>, vector<32x128xf32> -> vector<32x128xf32>
    %c1_i32_12 = arith.constant 1 : i32
    %43 = tpu.dynamic_rotate %42 by %c1_i32_12 dim 0 : vector<32x128xf32>, i32 -> vector<32x128xf32>
    %44 = vector.shape_cast %37 : vector<128xf32> to vector<1x128xf32>
    %45 = vector.broadcast %44 : vector<1x128xf32> to vector<32x128xf32>
    %46 = arith.addf %43, %45 : vector<32x128xf32>
    %cst_13 = arith.constant 0.000000e+00 : f32
    %47 = vector.shape_cast %18 : vector<32x1xi1> to vector<32x1xi1>
    %48 = vector.broadcast %47 : vector<32x1xi1> to vector<32x128xi1>
    %49 = vector.broadcast %cst_13 : f32 to vector<32x128xf32>
    %50 = arith.select %48, %46, %49 : vector<32x128xi1>, vector<32x128xf32>
    %c96_i32 = arith.constant 96 : i32
    %51 = tpu.dynamic_rotate %42 by %c96_i32 dim 1 : vector<32x128xf32>, i32 -> vector<32x128xf32>
    %c64_i32 = arith.constant 64 : i32
    %52 = tpu.dynamic_rotate %42 by %c64_i32 dim 1 : vector<32x128xf32>, i32 -> vector<32x128xf32>
    %c31_i32 = arith.constant 31 : i32
    %53 = tpu.dynamic_rotate %52 by %c31_i32 dim 0 : vector<32x128xf32>, i32 -> vector<32x128xf32>
    %54 = vector.shape_cast %41 : vector<128xf32> to vector<1x128xf32>
    %55 = vector.broadcast %54 : vector<1x128xf32> to vector<32x128xf32>
    %56 = arith.addf %53, %55 : vector<32x128xf32>
    %cst_14 = arith.constant 0.000000e+00 : f32
    %57 = vector.shape_cast %26 : vector<32x1xi1> to vector<32x1xi1>
    %58 = vector.broadcast %57 : vector<32x1xi1> to vector<32x128xi1>
    %59 = vector.broadcast %cst_14 : f32 to vector<32x128xf32>
    %60 = arith.select %58, %56, %59 : vector<32x128xi1>, vector<32x128xf32>
    %c0_i32_15 = arith.constant 0 : i32
    %61 = vector.broadcast %c0_i32_15 : i32 to vector<1x128xi32>
    %62 = arith.cmpi sge, %33, %61 : vector<1x128xi32>
    %c32_i32 = arith.constant 32 : i32
    %63 = vector.broadcast %c32_i32 : i32 to vector<1x128xi32>
    %64 = arith.cmpi slt, %33, %63 : vector<1x128xi32>
    %65 = arith.andi %62, %64 : vector<1x128xi1>
    %66 = arith.addf %50, %51 : vector<32x128xf32>
    %67 = arith.addf %66, %60 : vector<32x128xf32>
    %cst_16 = arith.constant 0.000000e+00 : f32
    %68 = vector.shape_cast %65 : vector<1x128xi1> to vector<1x128xi1>
    %69 = vector.broadcast %68 : vector<1x128xi1> to vector<32x128xi1>
    %70 = vector.broadcast %cst_16 : f32 to vector<32x128xf32>
    %71 = arith.select %69, %67, %70 : vector<32x128xi1>, vector<32x128xf32>
    %72 = vector.shape_cast %39 : vector<128xf32> to vector<1x128xf32>
    %73 = vector.broadcast %72 : vector<1x128xf32> to vector<32x128xf32>
    %74 = arith.addf %71, %73 : vector<32x128xf32>
    %c0_17 = arith.constant 0 : index
    %c0_18 = arith.constant 0 : index
    %75 = vector.load %arg4[%c0_17, %c0_18] : memref<5x128xf32, #tpu.memory_space<vmem>>, vector<1x128xf32>
    %76 = vector.shape_cast %75 : vector<1x128xf32> to vector<128xf32>
    %77 = vector.shape_cast %76 : vector<128xf32> to vector<1x128xf32>
    %78 = vector.broadcast %77 : vector<1x128xf32> to vector<32x128xf32>
    %79 = arith.mulf %74, %78 : vector<32x128xf32>
    %c0_19 = arith.constant 0 : index
    %c0_20 = arith.constant 0 : index
    %80 = vector.load %arg5[%c0_19, %c0_20] : memref<5x128xf32, #tpu.memory_space<vmem>>, vector<1x128xf32>
    %81 = vector.shape_cast %80 : vector<1x128xf32> to vector<128xf32>
    %82 = vector.shape_cast %81 : vector<128xf32> to vector<1x128xf32>
    %83 = vector.broadcast %82 : vector<1x128xf32> to vector<32x128xf32>
    %84 = arith.addf %79, %83 : vector<32x128xf32>
    %cst_21 = arith.constant 0.000000e+00 : f32
    %85 = vector.broadcast %cst_21 : f32 to vector<32x128xf32>
    %86 = arith.cmpf oge, %84, %85 : vector<32x128xf32>
    %c0_22 = arith.constant 0 : index
    %87 = memref.load %arg8[%c0_22] : memref<5xf32, #tpu.memory_space<smem>>
    %88 = vector.broadcast %87 : f32 to vector<32x128xf32>
    %89 = arith.mulf %88, %84 : vector<32x128xf32>
    %90 = arith.select %86, %84, %89 : vector<32x128xi1>, vector<32x128xf32>
    %c0_23 = arith.constant 0 : index
    %c0_24 = arith.constant 0 : index
    %c0_25 = arith.constant 0 : index
    %91 = vector.load %arg6[%c0_23, %c0_24, %c0_25] : memref<4x128x128xf32, #tpu.memory_space<vmem>>, vector<1x128x128xf32>
    %92 = vector.shape_cast %91 : vector<1x128x128xf32> to vector<128x128xf32>
    %c0_26 = arith.constant 0 : index
    %c0_27 = arith.constant 0 : index
    %93 = vector.load %arg7[%c0_26, %c0_27] : memref<4x128xf32, #tpu.memory_space<vmem>>, vector<1x128xf32>
    %94 = vector.shape_cast %93 : vector<1x128xf32> to vector<128xf32>
    %cst_28 = arith.constant dense<0.000000e+00> : vector<32x128xf32>
    %95 = tpu.matmul %90, %92, %cst_28 {dimension_numbers = #tpu.dot_dimension_numbers<[1], [0], [0], [1], [0, 0, 1, 1], [], []>} : vector<32x128xf32>, vector<128x128xf32>, vector<32x128xf32> -> vector<32x128xf32>
    %c32_i32_29 = arith.constant 32 : i32
    %96 = tpu.dynamic_rotate %95 by %c32_i32_29 dim 1 : vector<32x128xf32>, i32 -> vector<32x128xf32>
    %c1_i32_30 = arith.constant 1 : i32
    %97 = tpu.dynamic_rotate %96 by %c1_i32_30 dim 0 : vector<32x128xf32>, i32 -> vector<32x128xf32>
    %cst_31 = arith.constant 0.000000e+00 : f32
    %98 = vector.shape_cast %18 : vector<32x1xi1> to vector<32x1xi1>
    %99 = vector.broadcast %98 : vector<32x1xi1> to vector<32x128xi1>
    %100 = vector.broadcast %cst_31 : f32 to vector<32x128xf32>
    %101 = arith.select %99, %97, %100 : vector<32x128xi1>, vector<32x128xf32>
    %c8_i32_32 = arith.constant 8 : i32
    %102 = tpu.dynamic_rotate %95 by %c8_i32_32 dim 1 : vector<32x128xf32>, i32 -> vector<32x128xf32>
    %c112_i32 = arith.constant 112 : i32
    %103 = tpu.dynamic_rotate %95 by %c112_i32 dim 1 : vector<32x128xf32>, i32 -> vector<32x128xf32>
    %c31_i32_33 = arith.constant 31 : i32
    %104 = tpu.dynamic_rotate %103 by %c31_i32_33 dim 0 : vector<32x128xf32>, i32 -> vector<32x128xf32>
    %cst_34 = arith.constant 0.000000e+00 : f32
    %105 = vector.shape_cast %26 : vector<32x1xi1> to vector<32x1xi1>
    %106 = vector.broadcast %105 : vector<32x1xi1> to vector<32x128xi1>
    %107 = vector.broadcast %cst_34 : f32 to vector<32x128xf32>
    %108 = arith.select %106, %104, %107 : vector<32x128xi1>, vector<32x128xf32>
    %c32_i32_35 = arith.constant 32 : i32
    %109 = vector.broadcast %c32_i32_35 : i32 to vector<1x128xi32>
    %110 = arith.cmpi sge, %33, %109 : vector<1x128xi32>
    %c56_i32 = arith.constant 56 : i32
    %111 = vector.broadcast %c56_i32 : i32 to vector<1x128xi32>
    %112 = arith.cmpi slt, %33, %111 : vector<1x128xi32>
    %113 = arith.andi %110, %112 : vector<1x128xi1>
    %114 = arith.addf %101, %102 : vector<32x128xf32>
    %115 = arith.addf %114, %108 : vector<32x128xf32>
    %cst_36 = arith.constant 0.000000e+00 : f32
    %116 = vector.shape_cast %113 : vector<1x128xi1> to vector<1x128xi1>
    %117 = vector.broadcast %116 : vector<1x128xi1> to vector<32x128xi1>
    %118 = vector.broadcast %cst_36 : f32 to vector<32x128xf32>
    %119 = arith.select %117, %115, %118 : vector<32x128xi1>, vector<32x128xf32>
    %120 = vector.shape_cast %94 : vector<128xf32> to vector<1x128xf32>
    %121 = vector.broadcast %120 : vector<1x128xf32> to vector<32x128xf32>
    %122 = arith.addf %119, %121 : vector<32x128xf32>
    %123 = arith.addf %74, %122 : vector<32x128xf32>
    %c1_37 = arith.constant 1 : index
    %c0_38 = arith.constant 0 : index
    %124 = vector.load %arg4[%c1_37, %c0_38] : memref<5x128xf32, #tpu.memory_space<vmem>>, vector<1x128xf32>
    %125 = vector.shape_cast %124 : vector<1x128xf32> to vector<128xf32>
    %126 = vector.shape_cast %125 : vector<128xf32> to vector<1x128xf32>
    %127 = vector.broadcast %126 : vector<1x128xf32> to vector<32x128xf32>
    %128 = arith.mulf %123, %127 : vector<32x128xf32>
    %c1_39 = arith.constant 1 : index
    %c0_40 = arith.constant 0 : index
    %129 = vector.load %arg5[%c1_39, %c0_40] : memref<5x128xf32, #tpu.memory_space<vmem>>, vector<1x128xf32>
    %130 = vector.shape_cast %129 : vector<1x128xf32> to vector<128xf32>
    %131 = vector.shape_cast %130 : vector<128xf32> to vector<1x128xf32>
    %132 = vector.broadcast %131 : vector<1x128xf32> to vector<32x128xf32>
    %133 = arith.addf %128, %132 : vector<32x128xf32>
    %cst_41 = arith.constant 0.000000e+00 : f32
    %134 = vector.broadcast %cst_41 : f32 to vector<32x128xf32>
    %135 = arith.cmpf oge, %133, %134 : vector<32x128xf32>
    %c1_42 = arith.constant 1 : index
    %136 = memref.load %arg8[%c1_42] : memref<5xf32, #tpu.memory_space<smem>>
    %137 = vector.broadcast %136 : f32 to vector<32x128xf32>
    %138 = arith.mulf %137, %133 : vector<32x128xf32>
    %139 = arith.select %135, %133, %138 : vector<32x128xi1>, vector<32x128xf32>
    %c1_43 = arith.constant 1 : index
    %c0_44 = arith.constant 0 : index
    %c0_45 = arith.constant 0 : index
    %140 = vector.load %arg6[%c1_43, %c0_44, %c0_45] : memref<4x128x128xf32, #tpu.memory_space<vmem>>, vector<1x128x128xf32>
    %141 = vector.shape_cast %140 : vector<1x128x128xf32> to vector<128x128xf32>
    %c1_46 = arith.constant 1 : index
    %c0_47 = arith.constant 0 : index
    %142 = vector.load %arg7[%c1_46, %c0_47] : memref<4x128xf32, #tpu.memory_space<vmem>>, vector<1x128xf32>
    %143 = vector.shape_cast %142 : vector<1x128xf32> to vector<128xf32>
    %cst_48 = arith.constant dense<0.000000e+00> : vector<32x128xf32>
    %144 = tpu.matmul %139, %141, %cst_48 {dimension_numbers = #tpu.dot_dimension_numbers<[1], [0], [0], [1], [0, 0, 1, 1], [], []>} : vector<32x128xf32>, vector<128x128xf32>, vector<32x128xf32> -> vector<32x128xf32>
    %c56_i32_49 = arith.constant 56 : i32
    %145 = tpu.dynamic_rotate %144 by %c56_i32_49 dim 1 : vector<32x128xf32>, i32 -> vector<32x128xf32>
    %c2_i32_50 = arith.constant 2 : i32
    %146 = tpu.dynamic_rotate %145 by %c2_i32_50 dim 0 : vector<32x128xf32>, i32 -> vector<32x128xf32>
    %cst_51 = arith.constant 0.000000e+00 : f32
    %147 = vector.shape_cast %20 : vector<32x1xi1> to vector<32x1xi1>
    %148 = vector.broadcast %147 : vector<32x1xi1> to vector<32x128xi1>
    %149 = vector.broadcast %cst_51 : f32 to vector<32x128xf32>
    %150 = arith.select %148, %146, %149 : vector<32x128xi1>, vector<32x128xf32>
    %c32_i32_52 = arith.constant 32 : i32
    %151 = tpu.dynamic_rotate %144 by %c32_i32_52 dim 1 : vector<32x128xf32>, i32 -> vector<32x128xf32>
    %c8_i32_53 = arith.constant 8 : i32
    %152 = tpu.dynamic_rotate %144 by %c8_i32_53 dim 1 : vector<32x128xf32>, i32 -> vector<32x128xf32>
    %c30_i32 = arith.constant 30 : i32
    %153 = tpu.dynamic_rotate %152 by %c30_i32 dim 0 : vector<32x128xf32>, i32 -> vector<32x128xf32>
    %cst_54 = arith.constant 0.000000e+00 : f32
    %154 = vector.shape_cast %28 : vector<32x1xi1> to vector<32x1xi1>
    %155 = vector.broadcast %154 : vector<32x1xi1> to vector<32x128xi1>
    %156 = vector.broadcast %cst_54 : f32 to vector<32x128xf32>
    %157 = arith.select %155, %153, %156 : vector<32x128xi1>, vector<32x128xf32>
    %c56_i32_55 = arith.constant 56 : i32
    %158 = vector.broadcast %c56_i32_55 : i32 to vector<1x128xi32>
    %159 = arith.cmpi sge, %33, %158 : vector<1x128xi32>
    %c80_i32 = arith.constant 80 : i32
    %160 = vector.broadcast %c80_i32 : i32 to vector<1x128xi32>
    %161 = arith.cmpi slt, %33, %160 : vector<1x128xi32>
    %162 = arith.andi %159, %161 : vector<1x128xi1>
    %163 = arith.addf %150, %151 : vector<32x128xf32>
    %164 = arith.addf %163, %157 : vector<32x128xf32>
    %cst_56 = arith.constant 0.000000e+00 : f32
    %165 = vector.shape_cast %162 : vector<1x128xi1> to vector<1x128xi1>
    %166 = vector.broadcast %165 : vector<1x128xi1> to vector<32x128xi1>
    %167 = vector.broadcast %cst_56 : f32 to vector<32x128xf32>
    %168 = arith.select %166, %164, %167 : vector<32x128xi1>, vector<32x128xf32>
    %169 = vector.shape_cast %143 : vector<128xf32> to vector<1x128xf32>
    %170 = vector.broadcast %169 : vector<1x128xf32> to vector<32x128xf32>
    %171 = arith.addf %168, %170 : vector<32x128xf32>
    %172 = arith.addf %123, %171 : vector<32x128xf32>
    %c2_57 = arith.constant 2 : index
    %c0_58 = arith.constant 0 : index
    %173 = vector.load %arg4[%c2_57, %c0_58] : memref<5x128xf32, #tpu.memory_space<vmem>>, vector<1x128xf32>
    %174 = vector.shape_cast %173 : vector<1x128xf32> to vector<128xf32>
    %175 = vector.shape_cast %174 : vector<128xf32> to vector<1x128xf32>
    %176 = vector.broadcast %175 : vector<1x128xf32> to vector<32x128xf32>
    %177 = arith.mulf %172, %176 : vector<32x128xf32>
    %c2_59 = arith.constant 2 : index
    %c0_60 = arith.constant 0 : index
    %178 = vector.load %arg5[%c2_59, %c0_60] : memref<5x128xf32, #tpu.memory_space<vmem>>, vector<1x128xf32>
    %179 = vector.shape_cast %178 : vector<1x128xf32> to vector<128xf32>
    %180 = vector.shape_cast %179 : vector<128xf32> to vector<1x128xf32>
    %181 = vector.broadcast %180 : vector<1x128xf32> to vector<32x128xf32>
    %182 = arith.addf %177, %181 : vector<32x128xf32>
    %cst_61 = arith.constant 0.000000e+00 : f32
    %183 = vector.broadcast %cst_61 : f32 to vector<32x128xf32>
    %184 = arith.cmpf oge, %182, %183 : vector<32x128xf32>
    %c2_62 = arith.constant 2 : index
    %185 = memref.load %arg8[%c2_62] : memref<5xf32, #tpu.memory_space<smem>>
    %186 = vector.broadcast %185 : f32 to vector<32x128xf32>
    %187 = arith.mulf %186, %182 : vector<32x128xf32>
    %188 = arith.select %184, %182, %187 : vector<32x128xi1>, vector<32x128xf32>
    %c2_63 = arith.constant 2 : index
    %c0_64 = arith.constant 0 : index
    %c0_65 = arith.constant 0 : index
    %189 = vector.load %arg6[%c2_63, %c0_64, %c0_65] : memref<4x128x128xf32, #tpu.memory_space<vmem>>, vector<1x128x128xf32>
    %190 = vector.shape_cast %189 : vector<1x128x128xf32> to vector<128x128xf32>
    %c2_66 = arith.constant 2 : index
    %c0_67 = arith.constant 0 : index
    %191 = vector.load %arg7[%c2_66, %c0_67] : memref<4x128xf32, #tpu.memory_space<vmem>>, vector<1x128xf32>
    %192 = vector.shape_cast %191 : vector<1x128xf32> to vector<128xf32>
    %cst_68 = arith.constant dense<0.000000e+00> : vector<32x128xf32>
    %193 = tpu.matmul %188, %190, %cst_68 {dimension_numbers = #tpu.dot_dimension_numbers<[1], [0], [0], [1], [0, 0, 1, 1], [], []>} : vector<32x128xf32>, vector<128x128xf32>, vector<32x128xf32> -> vector<32x128xf32>
    %c80_i32_69 = arith.constant 80 : i32
    %194 = tpu.dynamic_rotate %193 by %c80_i32_69 dim 1 : vector<32x128xf32>, i32 -> vector<32x128xf32>
    %c4_i32_70 = arith.constant 4 : i32
    %195 = tpu.dynamic_rotate %194 by %c4_i32_70 dim 0 : vector<32x128xf32>, i32 -> vector<32x128xf32>
    %cst_71 = arith.constant 0.000000e+00 : f32
    %196 = vector.shape_cast %22 : vector<32x1xi1> to vector<32x1xi1>
    %197 = vector.broadcast %196 : vector<32x1xi1> to vector<32x128xi1>
    %198 = vector.broadcast %cst_71 : f32 to vector<32x128xf32>
    %199 = arith.select %197, %195, %198 : vector<32x128xi1>, vector<32x128xf32>
    %c56_i32_72 = arith.constant 56 : i32
    %200 = tpu.dynamic_rotate %193 by %c56_i32_72 dim 1 : vector<32x128xf32>, i32 -> vector<32x128xf32>
    %c32_i32_73 = arith.constant 32 : i32
    %201 = tpu.dynamic_rotate %193 by %c32_i32_73 dim 1 : vector<32x128xf32>, i32 -> vector<32x128xf32>
    %c28_i32 = arith.constant 28 : i32
    %202 = tpu.dynamic_rotate %201 by %c28_i32 dim 0 : vector<32x128xf32>, i32 -> vector<32x128xf32>
    %cst_74 = arith.constant 0.000000e+00 : f32
    %203 = vector.shape_cast %30 : vector<32x1xi1> to vector<32x1xi1>
    %204 = vector.broadcast %203 : vector<32x1xi1> to vector<32x128xi1>
    %205 = vector.broadcast %cst_74 : f32 to vector<32x128xf32>
    %206 = arith.select %204, %202, %205 : vector<32x128xi1>, vector<32x128xf32>
    %c80_i32_75 = arith.constant 80 : i32
    %207 = vector.broadcast %c80_i32_75 : i32 to vector<1x128xi32>
    %208 = arith.cmpi sge, %33, %207 : vector<1x128xi32>
    %c104_i32 = arith.constant 104 : i32
    %209 = vector.broadcast %c104_i32 : i32 to vector<1x128xi32>
    %210 = arith.cmpi slt, %33, %209 : vector<1x128xi32>
    %211 = arith.andi %208, %210 : vector<1x128xi1>
    %212 = arith.addf %199, %200 : vector<32x128xf32>
    %213 = arith.addf %212, %206 : vector<32x128xf32>
    %cst_76 = arith.constant 0.000000e+00 : f32
    %214 = vector.shape_cast %211 : vector<1x128xi1> to vector<1x128xi1>
    %215 = vector.broadcast %214 : vector<1x128xi1> to vector<32x128xi1>
    %216 = vector.broadcast %cst_76 : f32 to vector<32x128xf32>
    %217 = arith.select %215, %213, %216 : vector<32x128xi1>, vector<32x128xf32>
    %218 = vector.shape_cast %192 : vector<128xf32> to vector<1x128xf32>
    %219 = vector.broadcast %218 : vector<1x128xf32> to vector<32x128xf32>
    %220 = arith.addf %217, %219 : vector<32x128xf32>
    %221 = arith.addf %172, %220 : vector<32x128xf32>
    %c3 = arith.constant 3 : index
    %c0_77 = arith.constant 0 : index
    %222 = vector.load %arg4[%c3, %c0_77] : memref<5x128xf32, #tpu.memory_space<vmem>>, vector<1x128xf32>
    %223 = vector.shape_cast %222 : vector<1x128xf32> to vector<128xf32>
    %224 = vector.shape_cast %223 : vector<128xf32> to vector<1x128xf32>
    %225 = vector.broadcast %224 : vector<1x128xf32> to vector<32x128xf32>
    %226 = arith.mulf %221, %225 : vector<32x128xf32>
    %c3_78 = arith.constant 3 : index
    %c0_79 = arith.constant 0 : index
    %227 = vector.load %arg5[%c3_78, %c0_79] : memref<5x128xf32, #tpu.memory_space<vmem>>, vector<1x128xf32>
    %228 = vector.shape_cast %227 : vector<1x128xf32> to vector<128xf32>
    %229 = vector.shape_cast %228 : vector<128xf32> to vector<1x128xf32>
    %230 = vector.broadcast %229 : vector<1x128xf32> to vector<32x128xf32>
    %231 = arith.addf %226, %230 : vector<32x128xf32>
    %cst_80 = arith.constant 0.000000e+00 : f32
    %232 = vector.broadcast %cst_80 : f32 to vector<32x128xf32>
    %233 = arith.cmpf oge, %231, %232 : vector<32x128xf32>
    %c3_81 = arith.constant 3 : index
    %234 = memref.load %arg8[%c3_81] : memref<5xf32, #tpu.memory_space<smem>>
    %235 = vector.broadcast %234 : f32 to vector<32x128xf32>
    %236 = arith.mulf %235, %231 : vector<32x128xf32>
    %237 = arith.select %233, %231, %236 : vector<32x128xi1>, vector<32x128xf32>
    %c3_82 = arith.constant 3 : index
    %c0_83 = arith.constant 0 : index
    %c0_84 = arith.constant 0 : index
    %238 = vector.load %arg6[%c3_82, %c0_83, %c0_84] : memref<4x128x128xf32, #tpu.memory_space<vmem>>, vector<1x128x128xf32>
    %239 = vector.shape_cast %238 : vector<1x128x128xf32> to vector<128x128xf32>
    %c3_85 = arith.constant 3 : index
    %c0_86 = arith.constant 0 : index
    %240 = vector.load %arg7[%c3_85, %c0_86] : memref<4x128xf32, #tpu.memory_space<vmem>>, vector<1x128xf32>
    %241 = vector.shape_cast %240 : vector<1x128xf32> to vector<128xf32>
    %cst_87 = arith.constant dense<0.000000e+00> : vector<32x128xf32>
    %242 = tpu.matmul %237, %239, %cst_87 {dimension_numbers = #tpu.dot_dimension_numbers<[1], [0], [0], [1], [0, 0, 1, 1], [], []>} : vector<32x128xf32>, vector<128x128xf32>, vector<32x128xf32> -> vector<32x128xf32>
    %c104_i32_88 = arith.constant 104 : i32
    %243 = tpu.dynamic_rotate %242 by %c104_i32_88 dim 1 : vector<32x128xf32>, i32 -> vector<32x128xf32>
    %c8_i32_89 = arith.constant 8 : i32
    %244 = tpu.dynamic_rotate %243 by %c8_i32_89 dim 0 : vector<32x128xf32>, i32 -> vector<32x128xf32>
    %cst_90 = arith.constant 0.000000e+00 : f32
    %245 = vector.shape_cast %24 : vector<32x1xi1> to vector<32x1xi1>
    %246 = vector.broadcast %245 : vector<32x1xi1> to vector<32x128xi1>
    %247 = vector.broadcast %cst_90 : f32 to vector<32x128xf32>
    %248 = arith.select %246, %244, %247 : vector<32x128xi1>, vector<32x128xf32>
    %c80_i32_91 = arith.constant 80 : i32
    %249 = tpu.dynamic_rotate %242 by %c80_i32_91 dim 1 : vector<32x128xf32>, i32 -> vector<32x128xf32>
    %c56_i32_92 = arith.constant 56 : i32
    %250 = tpu.dynamic_rotate %242 by %c56_i32_92 dim 1 : vector<32x128xf32>, i32 -> vector<32x128xf32>
    %c24_i32 = arith.constant 24 : i32
    %251 = tpu.dynamic_rotate %250 by %c24_i32 dim 0 : vector<32x128xf32>, i32 -> vector<32x128xf32>
    %cst_93 = arith.constant 0.000000e+00 : f32
    %252 = vector.shape_cast %32 : vector<32x1xi1> to vector<32x1xi1>
    %253 = vector.broadcast %252 : vector<32x1xi1> to vector<32x128xi1>
    %254 = vector.broadcast %cst_93 : f32 to vector<32x128xf32>
    %255 = arith.select %253, %251, %254 : vector<32x128xi1>, vector<32x128xf32>
    %c104_i32_94 = arith.constant 104 : i32
    %256 = vector.broadcast %c104_i32_94 : i32 to vector<1x128xi32>
    %257 = arith.cmpi sge, %33, %256 : vector<1x128xi32>
    %c128_i32 = arith.constant 128 : i32
    %258 = vector.broadcast %c128_i32 : i32 to vector<1x128xi32>
    %259 = arith.cmpi slt, %33, %258 : vector<1x128xi32>
    %260 = arith.andi %257, %259 : vector<1x128xi1>
    %261 = arith.addf %248, %249 : vector<32x128xf32>
    %262 = arith.addf %261, %255 : vector<32x128xf32>
    %cst_95 = arith.constant 0.000000e+00 : f32
    %263 = vector.shape_cast %260 : vector<1x128xi1> to vector<1x128xi1>
    %264 = vector.broadcast %263 : vector<1x128xi1> to vector<32x128xi1>
    %265 = vector.broadcast %cst_95 : f32 to vector<32x128xf32>
    %266 = arith.select %264, %262, %265 : vector<32x128xi1>, vector<32x128xf32>
    %267 = vector.shape_cast %241 : vector<128xf32> to vector<1x128xf32>
    %268 = vector.broadcast %267 : vector<1x128xf32> to vector<32x128xf32>
    %269 = arith.addf %266, %268 : vector<32x128xf32>
    %270 = arith.addf %221, %269 : vector<32x128xf32>
    %c4 = arith.constant 4 : index
    %c0_96 = arith.constant 0 : index
    %271 = vector.load %arg4[%c4, %c0_96] : memref<5x128xf32, #tpu.memory_space<vmem>>, vector<1x128xf32>
    %272 = vector.shape_cast %271 : vector<1x128xf32> to vector<128xf32>
    %273 = vector.shape_cast %272 : vector<128xf32> to vector<1x128xf32>
    %274 = vector.broadcast %273 : vector<1x128xf32> to vector<32x128xf32>
    %275 = arith.mulf %270, %274 : vector<32x128xf32>
    %c4_97 = arith.constant 4 : index
    %c0_98 = arith.constant 0 : index
    %276 = vector.load %arg5[%c4_97, %c0_98] : memref<5x128xf32, #tpu.memory_space<vmem>>, vector<1x128xf32>
    %277 = vector.shape_cast %276 : vector<1x128xf32> to vector<128xf32>
    %278 = vector.shape_cast %277 : vector<128xf32> to vector<1x128xf32>
    %279 = vector.broadcast %278 : vector<1x128xf32> to vector<32x128xf32>
    %280 = arith.addf %275, %279 : vector<32x128xf32>
    %cst_99 = arith.constant 0.000000e+00 : f32
    %281 = vector.broadcast %cst_99 : f32 to vector<32x128xf32>
    %282 = arith.cmpf oge, %280, %281 : vector<32x128xf32>
    %c4_100 = arith.constant 4 : index
    %283 = memref.load %arg8[%c4_100] : memref<5xf32, #tpu.memory_space<smem>>
    %284 = vector.broadcast %283 : f32 to vector<32x128xf32>
    %285 = arith.mulf %284, %280 : vector<32x128xf32>
    %286 = arith.select %282, %280, %285 : vector<32x128xi1>, vector<32x128xf32>
    %287 = vector.shape_cast %286 : vector<32x128xf32> to vector<2x16x128xf32>
    %cst_101 = arith.constant dense<0xFF800000> : vector<2x128xf32>
    %288 = vector.multi_reduction <maximumf>, %287, %cst_101 [1] : vector<2x16x128xf32> to vector<2x128xf32>
    %c0_102 = arith.constant 0 : index
    %c0_103 = arith.constant 0 : index
    %289 = vector.load %arg9[%c0_102, %c0_103] : memref<2x128xf32, #tpu.memory_space<vmem>>, vector<2x128xf32>
    tpu.vector_store %arg9[%c0_102, %c0_103], %288 {strides = array<i32>} : memref<2x128xf32, #tpu.memory_space<vmem>>, vector<2x128xf32>,
    return
  }
  func.func @transform_0(%arg0: i32) -> (i32, i32) {
    %c0_i32 = arith.constant 0 : i32
    %c0_i32_0 = arith.constant 0 : i32
    return %arg0, %c0_i32 : i32, i32
  }
  func.func @transform_1(%arg0: i32) -> (i32, i32) {
    %c0_i32 = arith.constant 0 : i32
    %c0_i32_0 = arith.constant 0 : i32
    %c0_i32_1 = arith.constant 0 : i32
    return %c0_i32, %c0_i32_0 : i32, i32
  }
  func.func @transform_2(%arg0: i32) -> (i32, i32) {
    %c0_i32 = arith.constant 0 : i32
    %c0_i32_0 = arith.constant 0 : i32
    %c0_i32_1 = arith.constant 0 : i32
    return %c0_i32, %c0_i32_0 : i32, i32
  }
  func.func @transform_3(%arg0: i32) -> (i32, i32) {
    %c0_i32 = arith.constant 0 : i32
    %c0_i32_0 = arith.constant 0 : i32
    %c0_i32_1 = arith.constant 0 : i32
    return %c0_i32, %c0_i32_0 : i32, i32
  }
  func.func @transform_4(%arg0: i32) -> (i32, i32) {
    %c0_i32 = arith.constant 0 : i32
    %c0_i32_0 = arith.constant 0 : i32
    %c0_i32_1 = arith.constant 0 : i32
    return %c0_i32, %c0_i32_0 : i32, i32
  }
  func.func @transform_5(%arg0: i32) -> (i32, i32, i32) {
    %c0_i32 = arith.constant 0 : i32
    %c0_i32_0 = arith.constant 0 : i32
    %c0_i32_1 = arith.constant 0 : i32
    %c0_i32_2 = arith.constant 0 : i32
    return %c0_i32, %c0_i32_0, %c0_i32_1 : i32, i32, i32
  }
  func.func @transform_6(%arg0: i32) -> (i32, i32) {
    %c0_i32 = arith.constant 0 : i32
    %c0_i32_0 = arith.constant 0 : i32
    %c0_i32_1 = arith.constant 0 : i32
    return %c0_i32, %c0_i32_0 : i32, i32
  }
  func.func @transform_7(%arg0: i32) -> i32 {
    %c0_i32 = arith.constant 0 : i32
    %c0_i32_0 = arith.constant 0 : i32
    return %c0_i32 : i32
  }
  func.func @transform_8(%arg0: i32) -> (i32, i32) {
    %c0_i32 = arith.constant 0 : i32
    %c0_i32_0 = arith.constant 0 : i32
    return %arg0, %c0_i32 : i32, i32
  }
}

module attributes {stable_mosaic.version = 11 : i64} {
  func.func @_branch_kernel(%arg0: i32, %arg1: memref<32x32xf32, #tpu.memory_space<vmem>>, %arg2: memref<32x128xf32, #tpu.memory_space<vmem>>, %arg3: memref<3x128xf32, #tpu.memory_space<vmem>>, %arg4: memref<4x128xf32, #tpu.memory_space<vmem>>, %arg5: memref<4x128xf32, #tpu.memory_space<vmem>>, %arg6: memref<3x128x128xf32, #tpu.memory_space<vmem>>, %arg7: memref<3x128xf32, #tpu.memory_space<vmem>>, %arg8: memref<4xf32, #tpu.memory_space<smem>>, %arg9: memref<2x128xf32, #tpu.memory_space<vmem>>) attributes {dimension_semantics = [#tpu.dimension_semantics<parallel>], iteration_bounds = array<i64: 1>, scalar_prefetch = 0 : i64, scratch_operands = 0 : i64, tpu.core_type = #tpu.core_type<tc>, window_params = [{transform_indices = @transform_0, window_bounds = array<i64: 32, 32>}, {pipeline_mode = #tpu.pipeline_mode<synchronous>, transform_indices = @transform_1, window_bounds = array<i64: 32, 128>}, {pipeline_mode = #tpu.pipeline_mode<synchronous>, transform_indices = @transform_2, window_bounds = array<i64: 3, 128>}, {pipeline_mode = #tpu.pipeline_mode<synchronous>, transform_indices = @transform_3, window_bounds = array<i64: 4, 128>}, {pipeline_mode = #tpu.pipeline_mode<synchronous>, transform_indices = @transform_4, window_bounds = array<i64: 4, 128>}, {pipeline_mode = #tpu.pipeline_mode<synchronous>, transform_indices = @transform_5, window_bounds = array<i64: 3, 128, 128>}, {pipeline_mode = #tpu.pipeline_mode<synchronous>, transform_indices = @transform_6, window_bounds = array<i64: 3, 128>}, {transform_indices = @transform_7, window_bounds = array<i64: 4>}, {transform_indices = @transform_8, window_bounds = array<i64: 2, 128>}]} {
    %0 = tpu.iota {dimensions = array<i32: 0>} : vector<32x1xi32>
    %c16_i32 = arith.constant 16 : i32
    %c0_i32 = arith.constant 0 : i32
    %1 = arith.cmpi eq, %c16_i32, %c0_i32 : i32
    %c1_i32 = arith.constant 1 : i32
    %2 = arith.select %1, %c1_i32, %c16_i32 : i32
    %3 = vector.broadcast %2 : i32 to vector<32x1xi32>
    %4 = arith.remsi %0, %3 : vector<32x1xi32>
    %c0_i32_0 = arith.constant 0 : i32
    %5 = vector.broadcast %c0_i32_0 : i32 to vector<32x1xi32>
    %6 = arith.cmpi ne, %4, %5 : vector<32x1xi32>
    %c0_i32_1 = arith.constant 0 : i32
    %7 = vector.broadcast %c0_i32_1 : i32 to vector<32x1xi32>
    %8 = arith.cmpi slt, %4, %7 : vector<32x1xi32>
    %c0_i32_2 = arith.constant 0 : i32
    %9 = arith.cmpi slt, %2, %c0_i32_2 : i32
    %10 = vector.broadcast %9 : i1 to vector<32x1xi1>
    %11 = vector.broadcast %10 : vector<32x1xi1> to vector<32x1xi1>
    %12 = arith.xori %8, %11 : vector<32x1xi1>
    %13 = arith.andi %12, %6 : vector<32x1xi1>
    %14 = vector.broadcast %2 : i32 to vector<32x1xi32>
    %15 = arith.addi %4, %14 : vector<32x1xi32>
    %16 = arith.select %13, %15, %4 : vector<32x1xi1>, vector<32x1xi32>
    %c1_i32_3 = arith.constant 1 : i32
    %17 = vector.broadcast %c1_i32_3 : i32 to vector<32x1xi32>
    %18 = arith.cmpi sge, %16, %17 : vector<32x1xi32>
    %c2_i32 = arith.constant 2 : i32
    %19 = vector.broadcast %c2_i32 : i32 to vector<32x1xi32>
    %20 = arith.cmpi sge, %16, %19 : vector<32x1xi32>
    %c4_i32 = arith.constant 4 : i32
    %21 = vector.broadcast %c4_i32 : i32 to vector<32x1xi32>
    %22 = arith.cmpi sge, %16, %21 : vector<32x1xi32>
    %c15_i32 = arith.constant 15 : i32
    %23 = vector.broadcast %c15_i32 : i32 to vector<32x1xi32>
    %24 = arith.cmpi slt, %16, %23 : vector<32x1xi32>
    %c14_i32 = arith.constant 14 : i32
    %25 = vector.broadcast %c14_i32 : i32 to vector<32x1xi32>
    %26 = arith.cmpi slt, %16, %25 : vector<32x1xi32>
    %c12_i32 = arith.constant 12 : i32
    %27 = vector.broadcast %c12_i32 : i32 to vector<32x1xi32>
    %28 = arith.cmpi slt, %16, %27 : vector<32x1xi32>
    %29 = tpu.iota {dimensions = array<i32: 1>} : vector<1x128xi32>
    %c0 = arith.constant 0 : index
    %c0_4 = arith.constant 0 : index
    %30 = vector.load %arg1[%c0, %c0_4] : memref<32x32xf32, #tpu.memory_space<vmem>>, vector<32x32xf32>
    %c0_5 = arith.constant 0 : index
    %c0_6 = arith.constant 0 : index
    %31 = vector.load %arg2[%c0_5, %c0_6] : memref<32x128xf32, #tpu.memory_space<vmem>>, vector<32x128xf32>
    %c0_7 = arith.constant 0 : index
    %c0_8 = arith.constant 0 : index
    %32 = vector.load %arg3[%c0_7, %c0_8] : memref<3x128xf32, #tpu.memory_space<vmem>>, vector<1x128xf32>
    %33 = vector.shape_cast %32 : vector<1x128xf32> to vector<128xf32>
    %c1 = arith.constant 1 : index
    %c0_9 = arith.constant 0 : index
    %34 = vector.load %arg3[%c1, %c0_9] : memref<3x128xf32, #tpu.memory_space<vmem>>, vector<1x128xf32>
    %35 = vector.shape_cast %34 : vector<1x128xf32> to vector<128xf32>
    %c2 = arith.constant 2 : index
    %c0_10 = arith.constant 0 : index
    %36 = vector.load %arg3[%c2, %c0_10] : memref<3x128xf32, #tpu.memory_space<vmem>>, vector<1x128xf32>
    %37 = vector.shape_cast %36 : vector<1x128xf32> to vector<128xf32>
    %cst = arith.constant dense<0.000000e+00> : vector<32x128xf32>
    %38 = tpu.matmul %30, %31, %cst {dimension_numbers = #tpu.dot_dimension_numbers<[1], [0], [0], [1], [0, 0, 1, 1], [], []>} : vector<32x32xf32>, vector<32x128xf32>, vector<32x128xf32> -> vector<32x128xf32>
    %c1_i32_11 = arith.constant 1 : i32
    %39 = tpu.dynamic_rotate %38 by %c1_i32_11 dim 0 : vector<32x128xf32>, i32 -> vector<32x128xf32>
    %40 = vector.shape_cast %33 : vector<128xf32> to vector<1x128xf32>
    %41 = vector.broadcast %40 : vector<1x128xf32> to vector<32x128xf32>
    %42 = arith.addf %39, %41 : vector<32x128xf32>
    %cst_12 = arith.constant 0.000000e+00 : f32
    %43 = vector.shape_cast %18 : vector<32x1xi1> to vector<32x1xi1>
    %44 = vector.broadcast %43 : vector<32x1xi1> to vector<32x128xi1>
    %45 = vector.broadcast %cst_12 : f32 to vector<32x128xf32>
    %46 = arith.select %44, %42, %45 : vector<32x128xi1>, vector<32x128xf32>
    %c96_i32 = arith.constant 96 : i32
    %47 = tpu.dynamic_rotate %38 by %c96_i32 dim 1 : vector<32x128xf32>, i32 -> vector<32x128xf32>
    %c64_i32 = arith.constant 64 : i32
    %48 = tpu.dynamic_rotate %38 by %c64_i32 dim 1 : vector<32x128xf32>, i32 -> vector<32x128xf32>
    %c31_i32 = arith.constant 31 : i32
    %49 = tpu.dynamic_rotate %48 by %c31_i32 dim 0 : vector<32x128xf32>, i32 -> vector<32x128xf32>
    %50 = vector.shape_cast %37 : vector<128xf32> to vector<1x128xf32>
    %51 = vector.broadcast %50 : vector<1x128xf32> to vector<32x128xf32>
    %52 = arith.addf %49, %51 : vector<32x128xf32>
    %cst_13 = arith.constant 0.000000e+00 : f32
    %53 = vector.shape_cast %24 : vector<32x1xi1> to vector<32x1xi1>
    %54 = vector.broadcast %53 : vector<32x1xi1> to vector<32x128xi1>
    %55 = vector.broadcast %cst_13 : f32 to vector<32x128xf32>
    %56 = arith.select %54, %52, %55 : vector<32x128xi1>, vector<32x128xf32>
    %c0_i32_14 = arith.constant 0 : i32
    %57 = vector.broadcast %c0_i32_14 : i32 to vector<1x128xi32>
    %58 = arith.cmpi sge, %29, %57 : vector<1x128xi32>
    %c32_i32 = arith.constant 32 : i32
    %59 = vector.broadcast %c32_i32 : i32 to vector<1x128xi32>
    %60 = arith.cmpi slt, %29, %59 : vector<1x128xi32>
    %61 = arith.andi %58, %60 : vector<1x128xi1>
    %62 = arith.addf %46, %47 : vector<32x128xf32>
    %63 = arith.addf %62, %56 : vector<32x128xf32>
    %cst_15 = arith.constant 0.000000e+00 : f32
    %64 = vector.shape_cast %61 : vector<1x128xi1> to vector<1x128xi1>
    %65 = vector.broadcast %64 : vector<1x128xi1> to vector<32x128xi1>
    %66 = vector.broadcast %cst_15 : f32 to vector<32x128xf32>
    %67 = arith.select %65, %63, %66 : vector<32x128xi1>, vector<32x128xf32>
    %68 = vector.shape_cast %35 : vector<128xf32> to vector<1x128xf32>
    %69 = vector.broadcast %68 : vector<1x128xf32> to vector<32x128xf32>
    %70 = arith.addf %67, %69 : vector<32x128xf32>
    %c0_16 = arith.constant 0 : index
    %c0_17 = arith.constant 0 : index
    %71 = vector.load %arg4[%c0_16, %c0_17] : memref<4x128xf32, #tpu.memory_space<vmem>>, vector<1x128xf32>
    %72 = vector.shape_cast %71 : vector<1x128xf32> to vector<128xf32>
    %73 = vector.shape_cast %72 : vector<128xf32> to vector<1x128xf32>
    %74 = vector.broadcast %73 : vector<1x128xf32> to vector<32x128xf32>
    %75 = arith.mulf %70, %74 : vector<32x128xf32>
    %c0_18 = arith.constant 0 : index
    %c0_19 = arith.constant 0 : index
    %76 = vector.load %arg5[%c0_18, %c0_19] : memref<4x128xf32, #tpu.memory_space<vmem>>, vector<1x128xf32>
    %77 = vector.shape_cast %76 : vector<1x128xf32> to vector<128xf32>
    %78 = vector.shape_cast %77 : vector<128xf32> to vector<1x128xf32>
    %79 = vector.broadcast %78 : vector<1x128xf32> to vector<32x128xf32>
    %80 = arith.addf %75, %79 : vector<32x128xf32>
    %cst_20 = arith.constant 0.000000e+00 : f32
    %81 = vector.broadcast %cst_20 : f32 to vector<32x128xf32>
    %82 = arith.cmpf oge, %80, %81 : vector<32x128xf32>
    %c0_21 = arith.constant 0 : index
    %83 = memref.load %arg8[%c0_21] : memref<4xf32, #tpu.memory_space<smem>>
    %84 = vector.broadcast %83 : f32 to vector<32x128xf32>
    %85 = arith.mulf %84, %80 : vector<32x128xf32>
    %86 = arith.select %82, %80, %85 : vector<32x128xi1>, vector<32x128xf32>
    %c0_22 = arith.constant 0 : index
    %c0_23 = arith.constant 0 : index
    %c0_24 = arith.constant 0 : index
    %87 = vector.load %arg6[%c0_22, %c0_23, %c0_24] : memref<3x128x128xf32, #tpu.memory_space<vmem>>, vector<1x128x128xf32>
    %88 = vector.shape_cast %87 : vector<1x128x128xf32> to vector<128x128xf32>
    %c0_25 = arith.constant 0 : index
    %c0_26 = arith.constant 0 : index
    %89 = vector.load %arg7[%c0_25, %c0_26] : memref<3x128xf32, #tpu.memory_space<vmem>>, vector<1x128xf32>
    %90 = vector.shape_cast %89 : vector<1x128xf32> to vector<128xf32>
    %cst_27 = arith.constant dense<0.000000e+00> : vector<32x128xf32>
    %91 = tpu.matmul %86, %88, %cst_27 {dimension_numbers = #tpu.dot_dimension_numbers<[1], [0], [0], [1], [0, 0, 1, 1], [], []>} : vector<32x128xf32>, vector<128x128xf32>, vector<32x128xf32> -> vector<32x128xf32>
    %c32_i32_28 = arith.constant 32 : i32
    %92 = tpu.dynamic_rotate %91 by %c32_i32_28 dim 1 : vector<32x128xf32>, i32 -> vector<32x128xf32>
    %c1_i32_29 = arith.constant 1 : i32
    %93 = tpu.dynamic_rotate %92 by %c1_i32_29 dim 0 : vector<32x128xf32>, i32 -> vector<32x128xf32>
    %cst_30 = arith.constant 0.000000e+00 : f32
    %94 = vector.shape_cast %18 : vector<32x1xi1> to vector<32x1xi1>
    %95 = vector.broadcast %94 : vector<32x1xi1> to vector<32x128xi1>
    %96 = vector.broadcast %cst_30 : f32 to vector<32x128xf32>
    %97 = arith.select %95, %93, %96 : vector<32x128xi1>, vector<32x128xf32>
    %c96_i32_31 = arith.constant 96 : i32
    %98 = tpu.dynamic_rotate %91 by %c96_i32_31 dim 1 : vector<32x128xf32>, i32 -> vector<32x128xf32>
    %c31_i32_32 = arith.constant 31 : i32
    %99 = tpu.dynamic_rotate %98 by %c31_i32_32 dim 0 : vector<32x128xf32>, i32 -> vector<32x128xf32>
    %cst_33 = arith.constant 0.000000e+00 : f32
    %100 = vector.shape_cast %24 : vector<32x1xi1> to vector<32x1xi1>
    %101 = vector.broadcast %100 : vector<32x1xi1> to vector<32x128xi1>
    %102 = vector.broadcast %cst_33 : f32 to vector<32x128xf32>
    %103 = arith.select %101, %99, %102 : vector<32x128xi1>, vector<32x128xf32>
    %c32_i32_34 = arith.constant 32 : i32
    %104 = vector.broadcast %c32_i32_34 : i32 to vector<1x128xi32>
    %105 = arith.cmpi sge, %29, %104 : vector<1x128xi32>
    %c64_i32_35 = arith.constant 64 : i32
    %106 = vector.broadcast %c64_i32_35 : i32 to vector<1x128xi32>
    %107 = arith.cmpi slt, %29, %106 : vector<1x128xi32>
    %108 = arith.andi %105, %107 : vector<1x128xi1>
    %109 = arith.addf %97, %91 : vector<32x128xf32>
    %110 = arith.addf %109, %103 : vector<32x128xf32>
    %cst_36 = arith.constant 0.000000e+00 : f32
    %111 = vector.shape_cast %108 : vector<1x128xi1> to vector<1x128xi1>
    %112 = vector.broadcast %111 : vector<1x128xi1> to vector<32x128xi1>
    %113 = vector.broadcast %cst_36 : f32 to vector<32x128xf32>
    %114 = arith.select %112, %110, %113 : vector<32x128xi1>, vector<32x128xf32>
    %115 = vector.shape_cast %90 : vector<128xf32> to vector<1x128xf32>
    %116 = vector.broadcast %115 : vector<1x128xf32> to vector<32x128xf32>
    %117 = arith.addf %114, %116 : vector<32x128xf32>
    %118 = arith.addf %70, %117 : vector<32x128xf32>
    %c1_37 = arith.constant 1 : index
    %c0_38 = arith.constant 0 : index
    %119 = vector.load %arg4[%c1_37, %c0_38] : memref<4x128xf32, #tpu.memory_space<vmem>>, vector<1x128xf32>
    %120 = vector.shape_cast %119 : vector<1x128xf32> to vector<128xf32>
    %121 = vector.shape_cast %120 : vector<128xf32> to vector<1x128xf32>
    %122 = vector.broadcast %121 : vector<1x128xf32> to vector<32x128xf32>
    %123 = arith.mulf %118, %122 : vector<32x128xf32>
    %c1_39 = arith.constant 1 : index
    %c0_40 = arith.constant 0 : index
    %124 = vector.load %arg5[%c1_39, %c0_40] : memref<4x128xf32, #tpu.memory_space<vmem>>, vector<1x128xf32>
    %125 = vector.shape_cast %124 : vector<1x128xf32> to vector<128xf32>
    %126 = vector.shape_cast %125 : vector<128xf32> to vector<1x128xf32>
    %127 = vector.broadcast %126 : vector<1x128xf32> to vector<32x128xf32>
    %128 = arith.addf %123, %127 : vector<32x128xf32>
    %cst_41 = arith.constant 0.000000e+00 : f32
    %129 = vector.broadcast %cst_41 : f32 to vector<32x128xf32>
    %130 = arith.cmpf oge, %128, %129 : vector<32x128xf32>
    %c1_42 = arith.constant 1 : index
    %131 = memref.load %arg8[%c1_42] : memref<4xf32, #tpu.memory_space<smem>>
    %132 = vector.broadcast %131 : f32 to vector<32x128xf32>
    %133 = arith.mulf %132, %128 : vector<32x128xf32>
    %134 = arith.select %130, %128, %133 : vector<32x128xi1>, vector<32x128xf32>
    %c1_43 = arith.constant 1 : index
    %c0_44 = arith.constant 0 : index
    %c0_45 = arith.constant 0 : index
    %135 = vector.load %arg6[%c1_43, %c0_44, %c0_45] : memref<3x128x128xf32, #tpu.memory_space<vmem>>, vector<1x128x128xf32>
    %136 = vector.shape_cast %135 : vector<1x128x128xf32> to vector<128x128xf32>
    %c1_46 = arith.constant 1 : index
    %c0_47 = arith.constant 0 : index
    %137 = vector.load %arg7[%c1_46, %c0_47] : memref<3x128xf32, #tpu.memory_space<vmem>>, vector<1x128xf32>
    %138 = vector.shape_cast %137 : vector<1x128xf32> to vector<128xf32>
    %cst_48 = arith.constant dense<0.000000e+00> : vector<32x128xf32>
    %139 = tpu.matmul %134, %136, %cst_48 {dimension_numbers = #tpu.dot_dimension_numbers<[1], [0], [0], [1], [0, 0, 1, 1], [], []>} : vector<32x128xf32>, vector<128x128xf32>, vector<32x128xf32> -> vector<32x128xf32>
    %c64_i32_49 = arith.constant 64 : i32
    %140 = tpu.dynamic_rotate %139 by %c64_i32_49 dim 1 : vector<32x128xf32>, i32 -> vector<32x128xf32>
    %c2_i32_50 = arith.constant 2 : i32
    %141 = tpu.dynamic_rotate %140 by %c2_i32_50 dim 0 : vector<32x128xf32>, i32 -> vector<32x128xf32>
    %cst_51 = arith.constant 0.000000e+00 : f32
    %142 = vector.shape_cast %20 : vector<32x1xi1> to vector<32x1xi1>
    %143 = vector.broadcast %142 : vector<32x1xi1> to vector<32x128xi1>
    %144 = vector.broadcast %cst_51 : f32 to vector<32x128xf32>
    %145 = arith.select %143, %141, %144 : vector<32x128xi1>, vector<32x128xf32>
    %c32_i32_52 = arith.constant 32 : i32
    %146 = tpu.dynamic_rotate %139 by %c32_i32_52 dim 1 : vector<32x128xf32>, i32 -> vector<32x128xf32>
    %c30_i32 = arith.constant 30 : i32
    %147 = tpu.dynamic_rotate %139 by %c30_i32 dim 0 : vector<32x128xf32>, i32 -> vector<32x128xf32>
    %cst_53 = arith.constant 0.000000e+00 : f32
    %148 = vector.shape_cast %26 : vector<32x1xi1> to vector<32x1xi1>
    %149 = vector.broadcast %148 : vector<32x1xi1> to vector<32x128xi1>
    %150 = vector.broadcast %cst_53 : f32 to vector<32x128xf32>
    %151 = arith.select %149, %147, %150 : vector<32x128xi1>, vector<32x128xf32>
    %c64_i32_54 = arith.constant 64 : i32
    %152 = vector.broadcast %c64_i32_54 : i32 to vector<1x128xi32>
    %153 = arith.cmpi sge, %29, %152 : vector<1x128xi32>
    %c96_i32_55 = arith.constant 96 : i32
    %154 = vector.broadcast %c96_i32_55 : i32 to vector<1x128xi32>
    %155 = arith.cmpi slt, %29, %154 : vector<1x128xi32>
    %156 = arith.andi %153, %155 : vector<1x128xi1>
    %157 = arith.addf %145, %146 : vector<32x128xf32>
    %158 = arith.addf %157, %151 : vector<32x128xf32>
    %cst_56 = arith.constant 0.000000e+00 : f32
    %159 = vector.shape_cast %156 : vector<1x128xi1> to vector<1x128xi1>
    %160 = vector.broadcast %159 : vector<1x128xi1> to vector<32x128xi1>
    %161 = vector.broadcast %cst_56 : f32 to vector<32x128xf32>
    %162 = arith.select %160, %158, %161 : vector<32x128xi1>, vector<32x128xf32>
    %163 = vector.shape_cast %138 : vector<128xf32> to vector<1x128xf32>
    %164 = vector.broadcast %163 : vector<1x128xf32> to vector<32x128xf32>
    %165 = arith.addf %162, %164 : vector<32x128xf32>
    %166 = arith.addf %118, %165 : vector<32x128xf32>
    %c2_57 = arith.constant 2 : index
    %c0_58 = arith.constant 0 : index
    %167 = vector.load %arg4[%c2_57, %c0_58] : memref<4x128xf32, #tpu.memory_space<vmem>>, vector<1x128xf32>
    %168 = vector.shape_cast %167 : vector<1x128xf32> to vector<128xf32>
    %169 = vector.shape_cast %168 : vector<128xf32> to vector<1x128xf32>
    %170 = vector.broadcast %169 : vector<1x128xf32> to vector<32x128xf32>
    %171 = arith.mulf %166, %170 : vector<32x128xf32>
    %c2_59 = arith.constant 2 : index
    %c0_60 = arith.constant 0 : index
    %172 = vector.load %arg5[%c2_59, %c0_60] : memref<4x128xf32, #tpu.memory_space<vmem>>, vector<1x128xf32>
    %173 = vector.shape_cast %172 : vector<1x128xf32> to vector<128xf32>
    %174 = vector.shape_cast %173 : vector<128xf32> to vector<1x128xf32>
    %175 = vector.broadcast %174 : vector<1x128xf32> to vector<32x128xf32>
    %176 = arith.addf %171, %175 : vector<32x128xf32>
    %cst_61 = arith.constant 0.000000e+00 : f32
    %177 = vector.broadcast %cst_61 : f32 to vector<32x128xf32>
    %178 = arith.cmpf oge, %176, %177 : vector<32x128xf32>
    %c2_62 = arith.constant 2 : index
    %179 = memref.load %arg8[%c2_62] : memref<4xf32, #tpu.memory_space<smem>>
    %180 = vector.broadcast %179 : f32 to vector<32x128xf32>
    %181 = arith.mulf %180, %176 : vector<32x128xf32>
    %182 = arith.select %178, %176, %181 : vector<32x128xi1>, vector<32x128xf32>
    %c2_63 = arith.constant 2 : index
    %c0_64 = arith.constant 0 : index
    %c0_65 = arith.constant 0 : index
    %183 = vector.load %arg6[%c2_63, %c0_64, %c0_65] : memref<3x128x128xf32, #tpu.memory_space<vmem>>, vector<1x128x128xf32>
    %184 = vector.shape_cast %183 : vector<1x128x128xf32> to vector<128x128xf32>
    %c2_66 = arith.constant 2 : index
    %c0_67 = arith.constant 0 : index
    %185 = vector.load %arg7[%c2_66, %c0_67] : memref<3x128xf32, #tpu.memory_space<vmem>>, vector<1x128xf32>
    %186 = vector.shape_cast %185 : vector<1x128xf32> to vector<128xf32>
    %cst_68 = arith.constant dense<0.000000e+00> : vector<32x128xf32>
    %187 = tpu.matmul %182, %184, %cst_68 {dimension_numbers = #tpu.dot_dimension_numbers<[1], [0], [0], [1], [0, 0, 1, 1], [], []>} : vector<32x128xf32>, vector<128x128xf32>, vector<32x128xf32> -> vector<32x128xf32>
    %c96_i32_69 = arith.constant 96 : i32
    %188 = tpu.dynamic_rotate %187 by %c96_i32_69 dim 1 : vector<32x128xf32>, i32 -> vector<32x128xf32>
    %c4_i32_70 = arith.constant 4 : i32
    %189 = tpu.dynamic_rotate %188 by %c4_i32_70 dim 0 : vector<32x128xf32>, i32 -> vector<32x128xf32>
    %cst_71 = arith.constant 0.000000e+00 : f32
    %190 = vector.shape_cast %22 : vector<32x1xi1> to vector<32x1xi1>
    %191 = vector.broadcast %190 : vector<32x1xi1> to vector<32x128xi1>
    %192 = vector.broadcast %cst_71 : f32 to vector<32x128xf32>
    %193 = arith.select %191, %189, %192 : vector<32x128xi1>, vector<32x128xf32>
    %c64_i32_72 = arith.constant 64 : i32
    %194 = tpu.dynamic_rotate %187 by %c64_i32_72 dim 1 : vector<32x128xf32>, i32 -> vector<32x128xf32>
    %c32_i32_73 = arith.constant 32 : i32
    %195 = tpu.dynamic_rotate %187 by %c32_i32_73 dim 1 : vector<32x128xf32>, i32 -> vector<32x128xf32>
    %c28_i32 = arith.constant 28 : i32
    %196 = tpu.dynamic_rotate %195 by %c28_i32 dim 0 : vector<32x128xf32>, i32 -> vector<32x128xf32>
    %cst_74 = arith.constant 0.000000e+00 : f32
    %197 = vector.shape_cast %28 : vector<32x1xi1> to vector<32x1xi1>
    %198 = vector.broadcast %197 : vector<32x1xi1> to vector<32x128xi1>
    %199 = vector.broadcast %cst_74 : f32 to vector<32x128xf32>
    %200 = arith.select %198, %196, %199 : vector<32x128xi1>, vector<32x128xf32>
    %c96_i32_75 = arith.constant 96 : i32
    %201 = vector.broadcast %c96_i32_75 : i32 to vector<1x128xi32>
    %202 = arith.cmpi sge, %29, %201 : vector<1x128xi32>
    %c128_i32 = arith.constant 128 : i32
    %203 = vector.broadcast %c128_i32 : i32 to vector<1x128xi32>
    %204 = arith.cmpi slt, %29, %203 : vector<1x128xi32>
    %205 = arith.andi %202, %204 : vector<1x128xi1>
    %206 = arith.addf %193, %194 : vector<32x128xf32>
    %207 = arith.addf %206, %200 : vector<32x128xf32>
    %cst_76 = arith.constant 0.000000e+00 : f32
    %208 = vector.shape_cast %205 : vector<1x128xi1> to vector<1x128xi1>
    %209 = vector.broadcast %208 : vector<1x128xi1> to vector<32x128xi1>
    %210 = vector.broadcast %cst_76 : f32 to vector<32x128xf32>
    %211 = arith.select %209, %207, %210 : vector<32x128xi1>, vector<32x128xf32>
    %212 = vector.shape_cast %186 : vector<128xf32> to vector<1x128xf32>
    %213 = vector.broadcast %212 : vector<1x128xf32> to vector<32x128xf32>
    %214 = arith.addf %211, %213 : vector<32x128xf32>
    %215 = arith.addf %166, %214 : vector<32x128xf32>
    %c3 = arith.constant 3 : index
    %c0_77 = arith.constant 0 : index
    %216 = vector.load %arg4[%c3, %c0_77] : memref<4x128xf32, #tpu.memory_space<vmem>>, vector<1x128xf32>
    %217 = vector.shape_cast %216 : vector<1x128xf32> to vector<128xf32>
    %218 = vector.shape_cast %217 : vector<128xf32> to vector<1x128xf32>
    %219 = vector.broadcast %218 : vector<1x128xf32> to vector<32x128xf32>
    %220 = arith.mulf %215, %219 : vector<32x128xf32>
    %c3_78 = arith.constant 3 : index
    %c0_79 = arith.constant 0 : index
    %221 = vector.load %arg5[%c3_78, %c0_79] : memref<4x128xf32, #tpu.memory_space<vmem>>, vector<1x128xf32>
    %222 = vector.shape_cast %221 : vector<1x128xf32> to vector<128xf32>
    %223 = vector.shape_cast %222 : vector<128xf32> to vector<1x128xf32>
    %224 = vector.broadcast %223 : vector<1x128xf32> to vector<32x128xf32>
    %225 = arith.addf %220, %224 : vector<32x128xf32>
    %cst_80 = arith.constant 0.000000e+00 : f32
    %226 = vector.broadcast %cst_80 : f32 to vector<32x128xf32>
    %227 = arith.cmpf oge, %225, %226 : vector<32x128xf32>
    %c3_81 = arith.constant 3 : index
    %228 = memref.load %arg8[%c3_81] : memref<4xf32, #tpu.memory_space<smem>>
    %229 = vector.broadcast %228 : f32 to vector<32x128xf32>
    %230 = arith.mulf %229, %225 : vector<32x128xf32>
    %231 = arith.select %227, %225, %230 : vector<32x128xi1>, vector<32x128xf32>
    %232 = vector.shape_cast %231 : vector<32x128xf32> to vector<2x16x128xf32>
    %cst_82 = arith.constant dense<0xFF800000> : vector<2x128xf32>
    %233 = vector.multi_reduction <maximumf>, %232, %cst_82 [1] : vector<2x16x128xf32> to vector<2x128xf32>
    %c0_83 = arith.constant 0 : index
    %c0_84 = arith.constant 0 : index
    %234 = vector.load %arg9[%c0_83, %c0_84] : memref<2x128xf32, #tpu.memory_space<vmem>>, vector<2x128xf32>
    tpu.vector_store %arg9[%c0_83, %c0_84], %233 {strides = array<i32>} : memref<2x128xf32, #tpu.memory_space<vmem>>, vector<2x128xf32>,
    return
  }
  func.func @transform_0(%arg0: i32) -> (i32, i32) {
    %c0_i32 = arith.constant 0 : i32
    %c0_i32_0 = arith.constant 0 : i32
    return %arg0, %c0_i32 : i32, i32
  }
  func.func @transform_1(%arg0: i32) -> (i32, i32) {
    %c0_i32 = arith.constant 0 : i32
    %c0_i32_0 = arith.constant 0 : i32
    %c0_i32_1 = arith.constant 0 : i32
    return %c0_i32, %c0_i32_0 : i32, i32
  }
  func.func @transform_2(%arg0: i32) -> (i32, i32) {
    %c0_i32 = arith.constant 0 : i32
    %c0_i32_0 = arith.constant 0 : i32
    %c0_i32_1 = arith.constant 0 : i32
    return %c0_i32, %c0_i32_0 : i32, i32
  }
  func.func @transform_3(%arg0: i32) -> (i32, i32) {
    %c0_i32 = arith.constant 0 : i32
    %c0_i32_0 = arith.constant 0 : i32
    %c0_i32_1 = arith.constant 0 : i32
    return %c0_i32, %c0_i32_0 : i32, i32
  }
  func.func @transform_4(%arg0: i32) -> (i32, i32) {
    %c0_i32 = arith.constant 0 : i32
    %c0_i32_0 = arith.constant 0 : i32
    %c0_i32_1 = arith.constant 0 : i32
    return %c0_i32, %c0_i32_0 : i32, i32
  }
  func.func @transform_5(%arg0: i32) -> (i32, i32, i32) {
    %c0_i32 = arith.constant 0 : i32
    %c0_i32_0 = arith.constant 0 : i32
    %c0_i32_1 = arith.constant 0 : i32
    %c0_i32_2 = arith.constant 0 : i32
    return %c0_i32, %c0_i32_0, %c0_i32_1 : i32, i32, i32
  }
  func.func @transform_6(%arg0: i32) -> (i32, i32) {
    %c0_i32 = arith.constant 0 : i32
    %c0_i32_0 = arith.constant 0 : i32
    %c0_i32_1 = arith.constant 0 : i32
    return %c0_i32, %c0_i32_0 : i32, i32
  }
  func.func @transform_7(%arg0: i32) -> i32 {
    %c0_i32 = arith.constant 0 : i32
    %c0_i32_0 = arith.constant 0 : i32
    return %c0_i32 : i32
  }
  func.func @transform_8(%arg0: i32) -> (i32, i32) {
    %c0_i32 = arith.constant 0 : i32
    %c0_i32_0 = arith.constant 0 : i32
    return %arg0, %c0_i32 : i32, i32
  }
}

module attributes {stable_mosaic.version = 11 : i64} {
  func.func @_classifier_kernel(%arg0: memref<2x128xf32, #tpu.memory_space<vmem>>, %arg1: memref<2x128xf32, #tpu.memory_space<vmem>>, %arg2: memref<2x128xf32, #tpu.memory_space<vmem>>, %arg3: memref<128x128xf32, #tpu.memory_space<vmem>>, %arg4: memref<128x128xf32, #tpu.memory_space<vmem>>, %arg5: memref<128x128xf32, #tpu.memory_space<vmem>>, %arg6: memref<1x128xf32, #tpu.memory_space<vmem>>, %arg7: memref<128x64xf32, #tpu.memory_space<vmem>>, %arg8: memref<1x64xf32, #tpu.memory_space<vmem>>, %arg9: memref<64x1xf32, #tpu.memory_space<vmem>>, %arg10: memref<1x1xf32, #tpu.memory_space<vmem>>, %arg11: memref<2xf32, #tpu.memory_space<smem>>, %arg12: memref<2x1xf32, #tpu.memory_space<vmem>>) attributes {dimension_semantics = [], scalar_prefetch = 0 : i64, scratch_operands = 0 : i64, tpu.core_type = #tpu.core_type<tc>} {
    %c0 = arith.constant 0 : index
    %c0_0 = arith.constant 0 : index
    %0 = vector.load %arg0[%c0, %c0_0] : memref<2x128xf32, #tpu.memory_space<vmem>>, vector<2x128xf32>
    %c0_1 = arith.constant 0 : index
    %c0_2 = arith.constant 0 : index
    %1 = vector.load %arg3[%c0_1, %c0_2] : memref<128x128xf32, #tpu.memory_space<vmem>>, vector<128x128xf32>
    %cst = arith.constant dense<0.000000e+00> : vector<2x128xf32>
    %2 = tpu.matmul %0, %1, %cst {dimension_numbers = #tpu.dot_dimension_numbers<[1], [0], [0], [1], [0, 0, 1, 1], [], []>} : vector<2x128xf32>, vector<128x128xf32>, vector<2x128xf32> -> vector<2x128xf32>
    %c0_3 = arith.constant 0 : index
    %c0_4 = arith.constant 0 : index
    %3 = vector.load %arg1[%c0_3, %c0_4] : memref<2x128xf32, #tpu.memory_space<vmem>>, vector<2x128xf32>
    %c0_5 = arith.constant 0 : index
    %c0_6 = arith.constant 0 : index
    %4 = vector.load %arg4[%c0_5, %c0_6] : memref<128x128xf32, #tpu.memory_space<vmem>>, vector<128x128xf32>
    %cst_7 = arith.constant dense<0.000000e+00> : vector<2x128xf32>
    %5 = tpu.matmul %3, %4, %cst_7 {dimension_numbers = #tpu.dot_dimension_numbers<[1], [0], [0], [1], [0, 0, 1, 1], [], []>} : vector<2x128xf32>, vector<128x128xf32>, vector<2x128xf32> -> vector<2x128xf32>
    %6 = arith.addf %2, %5 : vector<2x128xf32>
    %c0_8 = arith.constant 0 : index
    %c0_9 = arith.constant 0 : index
    %7 = vector.load %arg2[%c0_8, %c0_9] : memref<2x128xf32, #tpu.memory_space<vmem>>, vector<2x128xf32>
    %c0_10 = arith.constant 0 : index
    %c0_11 = arith.constant 0 : index
    %8 = vector.load %arg5[%c0_10, %c0_11] : memref<128x128xf32, #tpu.memory_space<vmem>>, vector<128x128xf32>
    %cst_12 = arith.constant dense<0.000000e+00> : vector<2x128xf32>
    %9 = tpu.matmul %7, %8, %cst_12 {dimension_numbers = #tpu.dot_dimension_numbers<[1], [0], [0], [1], [0, 0, 1, 1], [], []>} : vector<2x128xf32>, vector<128x128xf32>, vector<2x128xf32> -> vector<2x128xf32>
    %10 = arith.addf %6, %9 : vector<2x128xf32>
    %c0_13 = arith.constant 0 : index
    %c0_14 = arith.constant 0 : index
    %11 = vector.load %arg6[%c0_13, %c0_14] : memref<1x128xf32, #tpu.memory_space<vmem>>, vector<1x128xf32>
    %12 = vector.broadcast %11 : vector<1x128xf32> to vector<2x128xf32>
    %13 = arith.addf %10, %12 : vector<2x128xf32>
    %cst_15 = arith.constant 0.000000e+00 : f32
    %14 = vector.broadcast %cst_15 : f32 to vector<2x128xf32>
    %15 = arith.cmpf oge, %13, %14 : vector<2x128xf32>
    %c0_16 = arith.constant 0 : index
    %16 = memref.load %arg11[%c0_16] : memref<2xf32, #tpu.memory_space<smem>>
    %17 = vector.broadcast %16 : f32 to vector<2x128xf32>
    %18 = arith.mulf %17, %13 : vector<2x128xf32>
    %19 = arith.select %15, %13, %18 : vector<2x128xi1>, vector<2x128xf32>
    %c0_17 = arith.constant 0 : index
    %c0_18 = arith.constant 0 : index
    %20 = vector.load %arg7[%c0_17, %c0_18] : memref<128x64xf32, #tpu.memory_space<vmem>>, vector<128x64xf32>
    %cst_19 = arith.constant dense<0.000000e+00> : vector<2x64xf32>
    %21 = tpu.matmul %19, %20, %cst_19 {dimension_numbers = #tpu.dot_dimension_numbers<[1], [0], [0], [1], [0, 0, 1, 1], [], []>} : vector<2x128xf32>, vector<128x64xf32>, vector<2x64xf32> -> vector<2x64xf32>
    %c0_20 = arith.constant 0 : index
    %c0_21 = arith.constant 0 : index
    %22 = vector.load %arg8[%c0_20, %c0_21] : memref<1x64xf32, #tpu.memory_space<vmem>>, vector<1x64xf32>
    %23 = vector.broadcast %22 : vector<1x64xf32> to vector<2x64xf32>
    %24 = arith.addf %21, %23 : vector<2x64xf32>
    %cst_22 = arith.constant 0.000000e+00 : f32
    %25 = vector.broadcast %cst_22 : f32 to vector<2x64xf32>
    %26 = arith.cmpf oge, %24, %25 : vector<2x64xf32>
    %c1 = arith.constant 1 : index
    %27 = memref.load %arg11[%c1] : memref<2xf32, #tpu.memory_space<smem>>
    %28 = vector.broadcast %27 : f32 to vector<2x64xf32>
    %29 = arith.mulf %28, %24 : vector<2x64xf32>
    %30 = arith.select %26, %24, %29 : vector<2x64xi1>, vector<2x64xf32>
    %c0_23 = arith.constant 0 : index
    %c0_24 = arith.constant 0 : index
    %31 = vector.load %arg9[%c0_23, %c0_24] : memref<64x1xf32, #tpu.memory_space<vmem>>, vector<64x1xf32>
    %cst_25 = arith.constant dense<0.000000e+00> : vector<2x1xf32>
    %32 = tpu.matmul %30, %31, %cst_25 {dimension_numbers = #tpu.dot_dimension_numbers<[1], [0], [0], [1], [0, 0, 1, 1], [], []>} : vector<2x64xf32>, vector<64x1xf32>, vector<2x1xf32> -> vector<2x1xf32>
    %c0_26 = arith.constant 0 : index
    %c0_27 = arith.constant 0 : index
    %33 = vector.load %arg10[%c0_26, %c0_27] : memref<1x1xf32, #tpu.memory_space<vmem>>, vector<1x1xf32>
    %34 = vector.broadcast %33 : vector<1x1xf32> to vector<2x1xf32>
    %35 = arith.addf %32, %34 : vector<2x1xf32>
    %c0_28 = arith.constant 0 : index
    %c0_29 = arith.constant 0 : index
    %36 = vector.load %arg12[%c0_28, %c0_29] : memref<2x1xf32, #tpu.memory_space<vmem>>, vector<2x1xf32>
    tpu.vector_store %arg12[%c0_28, %c0_29], %35 {strides = array<i32>} : memref<2x1xf32, #tpu.memory_space<vmem>>, vector<2x1xf32>,
    return
  }
}

</mosaic_0001>

<llo_original>
// kernel: forward.5
$region0: #{forward.5}
  #allocation0 [shape = 'u32[]', space=smem, size = 0x4, offset = 0x4, fixed_abs, tag = 'smem constant byte address 0x4 - core index']
  #allocation1 [shape = 'u32[144,128]{1,0:T(1,128)}', space=vmem, size = 0x12000, scoped, tag = 'internal scratch']
  %s0 = inlined_call_operand.vmem [shape: f32[32,32], index: 0, kind: input, shape index: {}]
  %s1 = inlined_call_operand.hbm [shape: f32[32,128], index: 1, kind: input, shape index: {}]
  %s2 = inlined_call_operand.hbm [shape: f32[3,128], index: 2, kind: input, shape index: {}]
  %s3 = inlined_call_operand.hbm [shape: f32[4,128], index: 3, kind: input, shape index: {}]
  %s4 = inlined_call_operand.hbm [shape: f32[4,128], index: 4, kind: input, shape index: {}]
  %s5 = inlined_call_operand.hbm [shape: f32[3,128,128], index: 5, kind: input, shape index: {}]
  %s6 = inlined_call_operand.hbm [shape: f32[3,128], index: 6, kind: input, shape index: {}]
  %s7 = inlined_call_operand.hbm [shape: f32[4], index: 7, kind: input, shape index: {}]
  %s8 = inlined_call_operand.vmem [shape: f32[2,128], index: 8, kind: output, shape index: {}]
  %s9 = sld [smem:[#allocation0]]
  $region70: #{forward.5} parent=0
    _
  %s11 = ssub.s32 1, %s9
  %s12 = scalar_select 0, %s11, %s9
  $region1: #{forward.5} parent=0
    #allocation2 [shape = 'u8[16384]{0}', space=vmem, size = 0x4000, scoped, tag = 'input window, operand 1, single buffered']
    #allocation3 [shape = 's32[1]{0}', space=sflag, size = 0x4, scoped, tag = 'scoped memory for forward.5']
    #allocation4 [shape = 's32[1]{0}', space=sflag, size = 0x4, scoped, tag = 'scoped memory for forward.5']
    #allocation5 [shape = 'u8[2048]{0}', space=vmem, size = 0x800, scoped, tag = 'input window, operand 2, single buffered']
    #allocation6 [shape = 's32[1]{0}', space=sflag, size = 0x4, scoped, tag = 'scoped memory for forward.5']
    #allocation7 [shape = 'u8[2048]{0}', space=vmem, size = 0x800, scoped, tag = 'input window, operand 3, single buffered']
    #allocation8 [shape = 'u8[2048]{0}', space=vmem, size = 0x800, scoped, tag = 'input window, operand 4, single buffered']
    #allocation9 [shape = 's32[1]{0}', space=sflag, size = 0x4, scoped, tag = 'scoped memory for forward.5']
    #allocation10 [shape = 'u8[196608]{0}', space=vmem, size = 0x30000, scoped, tag = 'input window, operand 5, single buffered']
    #allocation11 [shape = 'u8[2048]{0}', space=vmem, size = 0x800, scoped, tag = 'input window, operand 6, single buffered']
    #allocation12 [shape = 's32[1]{0}', space=sflag, size = 0x4, scoped, tag = 'scoped memory for forward.5']
    #allocation13 [shape = 'u8[512]{0}', space=smem, size = 0x200, scoped, tag = 'input window, operand 7, single buffered']
    %13 = vsyncpa [#allocation3], 0
    %14 = vsyncpa [#allocation6], 0
    %15 = vsyncpa [#allocation9], 0
    %16 = vsyncpa [#allocation12], 0
    %17 = vsyncpa [#allocation4], 0
    // Predicated region
    $region2: #{forward.5} parent=1 // pred_check
      _
    $region3: #{forward.5} parent=1 // pred_check_branch
      %19 = sbr.rel (0) target = $region5
    $region4: #{forward.5} parent=1 // pred_region
      _
    $region5: #{forward.5} parent=1 // pred_fallthru
      _
    // Predicated region
    $region6: #{forward.5} parent=1 // pred_check
      _
    $region7: #{forward.5} parent=1 // pred_check_branch
      %21 = sbr.rel (0) target = $region9
    $region8: #{forward.5} parent=1 // pred_region
      %s23 = ssub.s32 512, 512
      %24 = vsyncadd [#allocation3], %s23
      %s25 = sshll.u32 [#allocation2], 4
      %s26 = int_to_ptr.vmem [resolvable:$true] %s25
      %31 = dma.hbm_to_vmem [thread:$0]  %s1, 512, %s26, [#allocation3], 128, 128, 8
    $region9: #{forward.5} parent=1 // pred_fallthru
      _
    // Predicated region
    $region10: #{forward.5} parent=1 // pred_check
      _
    $region11: #{forward.5} parent=1 // pred_check_branch
      %33 = sbr.rel (0) target = $region13
    $region12: #{forward.5} parent=1 // pred_region
      %s35 = ssub.s32 64, 64
      %36 = vsyncadd [#allocation6], %s35
      %s38 = sshll.u32 [#allocation5], 4
      %s39 = int_to_ptr.vmem [resolvable:$true] %s38
      %41 = dma.hbm_to_vmem [thread:$0]  %s2, 64, %s39, [#allocation6]
    $region13: #{forward.5} parent=1 // pred_fallthru
      _
    // Predicated region
    $region14: #{forward.5} parent=1 // pred_check
      _
    $region15: #{forward.5} parent=1 // pred_check_branch
      %43 = sbr.rel (0) target = $region17
    $region16: #{forward.5} parent=1 // pred_region
      %s45 = ssub.s32 64, 64
      %46 = vsyncadd [#allocation6], %s45
      %s48 = sshll.u32 [#allocation7], 4
      %s49 = int_to_ptr.vmem [resolvable:$true] %s48
      %51 = dma.hbm_to_vmem [thread:$0]  %s3, 64, %s49, [#allocation6]
    $region17: #{forward.5} parent=1 // pred_fallthru
      _
    // Predicated region
    $region18: #{forward.5} parent=1 // pred_check
      _
    $region19: #{forward.5} parent=1 // pred_check_branch
      %53 = sbr.rel (0) target = $region21
    $region20: #{forward.5} parent=1 // pred_region
      %s55 = ssub.s32 64, 64
      %56 = vsyncadd [#allocation9], %s55
      %s58 = sshll.u32 [#allocation8], 4
      %s59 = int_to_ptr.vmem [resolvable:$true] %s58
      %61 = dma.hbm_to_vmem [thread:$0]  %s4, 64, %s59, [#allocation9]
    $region21: #{forward.5} parent=1 // pred_fallthru
      _
    // Predicated region
    $region22: #{forward.5} parent=1 // pred_check
      _
    $region23: #{forward.5} parent=1 // pred_check_branch
      %63 = sbr.rel (0) target = $region25
    $region24: #{forward.5} parent=1 // pred_region
      %s65 = ssub.s32 6144, 6144
      %66 = vsyncadd [#allocation9], %s65
      %s67 = sshll.u32 [#allocation10], 4
      %s68 = int_to_ptr.vmem [resolvable:$true] %s67
      %73 = dma.hbm_to_vmem [thread:$0]  %s5, 6144, %s68, [#allocation9], 128, 128, 8
    $region25: #{forward.5} parent=1 // pred_fallthru
      _
    // Predicated region
    $region26: #{forward.5} parent=1 // pred_check
      _
    $region27: #{forward.5} parent=1 // pred_check_branch
      %75 = sbr.rel (0) target = $region29
    $region28: #{forward.5} parent=1 // pred_region
      %s77 = ssub.s32 64, 64
      %78 = vsyncadd [#allocation12], %s77
      %s80 = sshll.u32 [#allocation11], 4
      %s81 = int_to_ptr.vmem [resolvable:$true] %s80
      %83 = dma.hbm_to_vmem [thread:$0]  %s6, 64, %s81, [#allocation12]
    $region29: #{forward.5} parent=1 // pred_fallthru
      _
    // Predicated region
    $region30: #{forward.5} parent=1 // pred_check
      _
    $region31: #{forward.5} parent=1 // pred_check_branch
      %85 = sbr.rel (0) target = $region33
    $region32: #{forward.5} parent=1 // pred_region
      %s87 = ssub.s32 16, 16
      %88 = vsyncadd [#allocation4], %s87
      %91 = dma.hbm_to_smem %s7, 16, [#allocation13], [#allocation4]
    $region33: #{forward.5} parent=1 // pred_fallthru
      _
    // Predicated region
    $region34: #{forward.5} parent=1 // pred_check
      _
    $region35: #{forward.5} parent=1 // pred_check_branch
      %93 = sbr.rel (0) target = $region37
    $region36: #{forward.5} parent=1 // pred_region
      %94 = dma.done [#allocation3], 512
    $region37: #{forward.5} parent=1 // pred_fallthru
      _
    // Predicated region
    $region38: #{forward.5} parent=1 // pred_check
      _
    $region39: #{forward.5} parent=1 // pred_check_branch
      %96 = sbr.rel (0) target = $region41
    $region40: #{forward.5} parent=1 // pred_region
      %97 = dma.done [#allocation6], 64
    $region41: #{forward.5} parent=1 // pred_fallthru
      _
    // Predicated region
    $region42: #{forward.5} parent=1 // pred_check
      _
    $region43: #{forward.5} parent=1 // pred_check_branch
      %99 = sbr.rel (0) target = $region45
    $region44: #{forward.5} parent=1 // pred_region
      %100 = dma.done [#allocation6], 64
    $region45: #{forward.5} parent=1 // pred_fallthru
      _
    // Predicated region
    $region46: #{forward.5} parent=1 // pred_check
      _
    $region47: #{forward.5} parent=1 // pred_check_branch
      %102 = sbr.rel (0) target = $region49
    $region48: #{forward.5} parent=1 // pred_region
      %103 = dma.done [#allocation9], 64
    $region49: #{forward.5} parent=1 // pred_fallthru
      _
    // Predicated region
    $region50: #{forward.5} parent=1 // pred_check
      _
    $region51: #{forward.5} parent=1 // pred_check_branch
      %105 = sbr.rel (0) target = $region53
    $region52: #{forward.5} parent=1 // pred_region
      %106 = dma.done [#allocation9], 6144
    $region53: #{forward.5} parent=1 // pred_fallthru
      _
    // Predicated region
    $region54: #{forward.5} parent=1 // pred_check
      _
    $region55: #{forward.5} parent=1 // pred_check_branch
      %108 = sbr.rel (0) target = $region57
    $region56: #{forward.5} parent=1 // pred_region
      %109 = dma.done [#allocation12], 64
    $region57: #{forward.5} parent=1 // pred_fallthru
      _
    // Predicated region
    $region58: #{forward.5} parent=1 // pred_check
      _
    $region59: #{forward.5} parent=1 // pred_check_branch
      %111 = sbr.rel (0) target = $region61
    $region60: #{forward.5} parent=1 // pred_region
      %112 = dma.done [#allocation4], 16
    $region61: #{forward.5} parent=1 // pred_fallthru
      _
    %113 = sfence
    %v114 = vlaneseq
    %v115 = vshrl.u32 %v114, 7
    %v116 = vadd.s32 %v115, 8
    %v117 = vadd.s32 %v115, 16
    %v118 = vadd.s32 %v115, 24
    %vm119 = vcmp.lt.s32.totalorder %v115, 0
    %v120 = vsub.s32 0, %v115
    %v121 = vsel %vm119, %v120, %v115
    %v122 = vshrl.u32 %v121, 4
    %v123 = vand.u32 %v121, 15
    %v124 = vsub.s32 0, %v123
    %v125 = vsel %vm119, %v124, %v123
    %vm126 = vcmp.lt.s32.totalorder %v116, 0
    %v127 = vsub.s32 0, %v116
    %v128 = vsel %vm126, %v127, %v116
    %v129 = vshrl.u32 %v128, 4
    %v130 = vand.u32 %v128, 15
    %v131 = vsub.s32 0, %v130
    %v132 = vsel %vm126, %v131, %v130
    %vm133 = vcmp.lt.s32.totalorder %v117, 0
    %v134 = vsub.s32 0, %v117
    %v135 = vsel %vm133, %v134, %v117
    %v136 = vshrl.u32 %v135, 4
    %v137 = vand.u32 %v135, 15
    %v138 = vsub.s32 0, %v137
    %v139 = vsel %vm133, %v138, %v137
    %vm140 = vcmp.lt.s32.totalorder %v118, 0
    %v141 = vsub.s32 0, %v118
    %v142 = vsel %vm140, %v141, %v118
    %v143 = vshrl.u32 %v142, 4
    %v144 = vand.u32 %v142, 15
    %v145 = vsub.s32 0, %v144
    %v146 = vsel %vm140, %v145, %v144
    %vm147 = vcmp.ne.s32.totalorder %v125, 0
    %vm148 = vcmp.ne.s32.totalorder %v132, 0
    %vm149 = vcmp.ne.s32.totalorder %v139, 0
    %vm150 = vcmp.ne.s32.totalorder %v146, 0
    %vm151 = vcmp.lt.s32.totalorder %v125, 0
    %vm152 = vcmp.lt.s32.totalorder %v132, 0
    %vm153 = vcmp.lt.s32.totalorder %v139, 0
    %vm154 = vcmp.lt.s32.totalorder %v146, 0
    %vm155 = vmand %vm151, %vm147
    %vm156 = vmand %vm152, %vm148
    %vm157 = vmand %vm153, %vm149
    %vm158 = vmand %vm154, %vm150
    %v159 = vadd.s32 %v125, 16
    %v160 = vadd.s32 %v132, 16
    %v161 = vadd.s32 %v139, 16
    %v162 = vadd.s32 %v146, 16
    %v163 = vsel %vm155, %v159, %v125
    %v164 = vsel %vm156, %v160, %v132
    %v165 = vsel %vm157, %v161, %v139
    %v166 = vsel %vm158, %v162, %v146
    %vm167 = vcmp.ge.s32.totalorder %v163, 1
    %vm168 = vcmp.ge.s32.totalorder %v164, 1
    %vm169 = vcmp.ge.s32.totalorder %v165, 1
    %vm170 = vcmp.ge.s32.totalorder %v166, 1
    %vm171 = vcmp.ge.s32.totalorder %v163, 2
    %vm172 = vcmp.ge.s32.totalorder %v164, 2
    %vm173 = vcmp.ge.s32.totalorder %v165, 2
    %vm174 = vcmp.ge.s32.totalorder %v166, 2
    %vm175 = vcmp.ge.s32.totalorder %v163, 4
    %vm176 = vcmp.ge.s32.totalorder %v164, 4
    %vm177 = vcmp.ge.s32.totalorder %v165, 4
    %vm178 = vcmp.ge.s32.totalorder %v166, 4
    %vm179 = vcmp.lt.s32.totalorder %v163, 15
    %vm180 = vcmp.lt.s32.totalorder %v164, 15
    %vm181 = vcmp.lt.s32.totalorder %v165, 15
    %vm182 = vcmp.lt.s32.totalorder %v166, 15
    %vm183 = vcmp.lt.s32.totalorder %v163, 14
    %vm184 = vcmp.lt.s32.totalorder %v164, 14
    %vm185 = vcmp.lt.s32.totalorder %v165, 14
    %vm186 = vcmp.lt.s32.totalorder %v166, 14
    %vm187 = vcmp.lt.s32.totalorder %v163, 12
    %vm188 = vcmp.lt.s32.totalorder %v164, 12
    %vm189 = vcmp.lt.s32.totalorder %v165, 12
    %vm190 = vcmp.lt.s32.totalorder %v166, 12
    %v191 = vlaneseq
    %v192 = vand.u32 %v191, 127
    %v193 = vld [vmem:[%s0] sm:$0xff]
    %v194 = vld [vmem:[%s0 + $0x8] sm:$0xff]
    %v195 = vld [vmem:[%s0 + $0x10] sm:$0xff]
    %v196 = vld [vmem:[%s0 + $0x18] sm:$0xff]
    %v197 = vld [vmem:[#allocation2] sm:$0xff]
    %v198 = vld [vmem:[#allocation2 + $0x8] sm:$0xff]
    %v199 = vld [vmem:[#allocation2 + $0x10] sm:$0xff]
    %v200 = vld [vmem:[#allocation2 + $0x18] sm:$0xff]
    %v201 = vld [vmem:[#allocation5] sm:$0x1]
    %v202 = vld [vmem:[#allocation5 + $0x1] sm:$0x1]
    %v203 = vld [vmem:[#allocation5 + $0x2] sm:$0x1]
    %vm204 = vcmask 261120
    %v206 = vsel %vm204, %v193, 0
    %v209 = vsel %vm204, %v194, 0
    %v212 = vsel %vm204, %v195, 0
    %v215 = vsel %vm204, %v196, 0
    %217 = vmatprep.subr.mxu0 0.0
    %218 = vmatpush1.msra.mxu0 %v197
    %219 = vmatprep.subr.mxu0 0.0
    %220 = vmatpush1.msra.mxu0 %v198
    %221 = vmatprep.subr.mxu0 0.0
    %222 = vmatpush1.msra.mxu0 %v199
    %223 = vmatprep.subr.mxu0 0.0
    %224 = vmatpush1.msra.mxu0 %v200
    %225 = vmatprep.subr.mxu0 0.0
    %226 = vmatpush1.msra.mxu0 0.0
    %227 = vmatprep.subr.mxu0 0.0
    %228 = vmatpush1.msra.mxu0 0.0
    %229 = vmatprep.subr.mxu0 0.0
    %230 = vmatpush1.msra.mxu0 0.0
    %231 = vmatprep.subr.mxu0 0.0
    %232 = vmatpush1.msra.mxu0 0.0
    %233 = vmatprep.subr.mxu0 0.0
    %234 = vmatpush1.msra.mxu0 0.0
    %235 = vmatprep.subr.mxu0 0.0
    %236 = vmatpush1.msra.mxu0 0.0
    %237 = vmatprep.subr.mxu0 0.0
    %238 = vmatpush1.msra.mxu0 0.0
    %239 = vmatprep.subr.mxu0 0.0
    %240 = vmatpush1.msra.mxu0 0.0
    %241 = vmatprep.subr.mxu0 0.0
    %242 = vmatpush1.msra.mxu0 0.0
    %243 = vmatprep.subr.mxu0 0.0
    %244 = vmatpush1.msra.mxu0 0.0
    %245 = vmatprep.subr.mxu0 0.0
    %246 = vmatpush1.msra.mxu0 0.0
    %247 = vmatprep.subr.mxu0 0.0
    %248 = vmatpush1.msra.mxu0 0.0
    %249 = vmatprep.subr.mxu0 0.0
    %250 = vmatpush1.msra.mxu0 0.0
    %251 = vmatprep.subr.mxu0 0.0
    %252 = vmatpush1.msra.mxu0 0.0
    %253 = vmatprep.subr.mxu0 0.0
    %254 = vmatpush1.msra.mxu0 0.0
    %255 = vmatprep.subr.mxu0 0.0
    %256 = vmatpush1.msra.mxu0 0.0
    %257 = vmatprep.subr.mxu0 0.0
    %258 = vmatpush1.msra.mxu0 0.0
    %259 = vmatprep.subr.mxu0 0.0
    %260 = vmatpush1.msra.mxu0 0.0
    %261 = vmatprep.subr.mxu0 0.0
    %262 = vmatpush1.msra.mxu0 0.0
    %263 = vmatprep.subr.mxu0 0.0
    %264 = vmatpush1.msra.mxu0 0.0
    %265 = vmatprep.subr.mxu0 0.0
    %266 = vmatpush1.msra.mxu0 0.0
    %267 = vmatprep.subr.mxu0 0.0
    %268 = vmatpush1.msra.mxu0 0.0
    %269 = vmatprep.subr.mxu0 0.0
    %270 = vmatpush1.msra.mxu0 0.0
    %271 = vmatprep.subr.mxu0 0.0
    %272 = vmatpush1.msra.mxu0 0.0
    %273 = vmatprep.subr.mxu0 0.0
    %274 = vmatpush1.msra.mxu0 0.0
    %275 = vmatprep.subr.mxu0 0.0
    %276 = vmatpush1.msra.mxu0 0.0
    %277 = vmatprep.subr.mxu0 0.0
    %278 = vmatpush1.msra.mxu0 0.0
    %279 = vmatprep.subr.mxu0 0.0
    %280 = vmatpush1.msra.mxu0 0.0
    %281 = vmatprep.mubr.f32.mxu0 0.0
    %282 = vmatmul.mubr.f32.gmra.mrb[0].mxu0 %v206
    %v283 = vpop.f32.mrb[0].mxu0
    %v284 = vadd.f32 0.0, %v283
    %v285 = vpop.f32.mrb[0].mxu0
    %286 = vmatprep.mubr.f32.mxu0 0.0
    %287 = vmatmul.mubr.f32.gmra.mrb[0].mxu0 %v209
    %v288 = vpop.f32.mrb[0].mxu0
    %v289 = vadd.f32 0.0, %v288
    %v290 = vpop.f32.mrb[0].mxu0
    %291 = vmatprep.mubr.f32.mxu0 0.0
    %292 = vmatmul.mubr.f32.gmra.mrb[0].mxu0 %v212
    %v293 = vpop.f32.mrb[0].mxu0
    %v294 = vadd.f32 0.0, %v293
    %v295 = vpop.f32.mrb[0].mxu0
    %296 = vmatprep.mubr.f32.mxu0 0.0
    %297 = vmatmul.mubr.f32.gmra.mrb[0].mxu0 %v215
    %v298 = vpop.f32.mrb[0].mxu0
    %v299 = vadd.f32 0.0, %v298
    %v300 = vpop.f32.mrb[0].mxu0
    %301 = vdwg.mxu0
    %v302 = vrot.slane %v284, 7
    %v303 = vrot.slane %v289, 7
    %v304 = vrot.slane %v294, 7
    %v305 = vrot.slane %v299, 7
    %vm306 = vcmp.lt.s32.totalorder %v115, 1
    %v307 = vsel %vm306, %v304, %v305
    %v308 = vsel %vm306, %v303, %v304
    %v309 = vsel %vm306, %v302, %v303
    %v310 = vsel %vm306, %v305, %v302
    %v311 = vlaneseq
    %v312 = vshrl.u32 %v311, 7
    %v313 = vsub.s32 0, %v312
    %v314 = vrot.slane %v201, %v313
    %v315 = vadd.f32 %v310, %v314
    %v316 = vadd.f32 %v309, %v314
    %v317 = vadd.f32 %v308, %v314
    %v318 = vadd.f32 %v307, %v314
    %v319 = vsel %vm167, 1, 0
    %v320 = vsel %vm168, 1, 0
    %v321 = vsel %vm169, 1, 0
    %v322 = vsel %vm170, 1, 0
    %vm323 = vcmp.eq.s32.totalorder %v319, 1
    %vm324 = vcmp.eq.s32.totalorder %v320, 1
    %vm325 = vcmp.eq.s32.totalorder %v321, 1
    %vm326 = vcmp.eq.s32.totalorder %v322, 1
    %v327 = vsel %vm323, %v315, 0.0
    %v328 = vsel %vm324, %v316, 0.0
    %v329 = vsel %vm325, %v317, 0.0
    %v330 = vsel %vm326, %v318, 0.0
    %331 = vrot.lane.b32.xlu0 %v284, 96
    %v332 = vpop.permute.xlu0 %331
    %333 = vrot.lane.b32.xlu0 %v289, 96
    %v334 = vpop.permute.xlu0 %333
    %335 = vrot.lane.b32.xlu0 %v294, 96
    %v336 = vpop.permute.xlu0 %335
    %337 = vrot.lane.b32.xlu0 %v299, 96
    %v338 = vpop.permute.xlu0 %337
    %339 = vrot.lane.b32.xlu0 %v284, 64
    %v340 = vpop.permute.xlu0 %339
    %341 = vrot.lane.b32.xlu0 %v289, 64
    %v342 = vpop.permute.xlu0 %341
    %343 = vrot.lane.b32.xlu0 %v294, 64
    %v344 = vpop.permute.xlu0 %343
    %345 = vrot.lane.b32.xlu0 %v299, 64
    %v346 = vpop.permute.xlu0 %345
    %v347 = vrot.slane %v340, 1
    %v348 = vrot.slane %v342, 1
    %v349 = vrot.slane %v344, 1
    %v350 = vrot.slane %v346, 1
    %vm351 = vcmp.lt.s32.totalorder %v115, 7
    %v352 = vsel %vm351, %v349, %v350
    %v353 = vsel %vm351, %v348, %v349
    %v354 = vsel %vm351, %v347, %v348
    %v355 = vsel %vm351, %v350, %v347
    %v356 = vlaneseq
    %v357 = vshrl.u32 %v356, 7
    %v358 = vsub.s32 0, %v357
    %v359 = vrot.slane %v203, %v358
    %v360 = vadd.f32 %v354, %v359
    %v361 = vadd.f32 %v353, %v359
    %v362 = vadd.f32 %v352, %v359
    %v363 = vadd.f32 %v355, %v359
    %v364 = vsel %vm179, 1, 0
    %v365 = vsel %vm180, 1, 0
    %v366 = vsel %vm181, 1, 0
    %v367 = vsel %vm182, 1, 0
    %vm368 = vcmp.eq.s32.totalorder %v364, 1
    %vm369 = vcmp.eq.s32.totalorder %v365, 1
    %vm370 = vcmp.eq.s32.totalorder %v366, 1
    %vm371 = vcmp.eq.s32.totalorder %v367, 1
    %v372 = vsel %vm368, %v360, 0.0
    %v373 = vsel %vm369, %v361, 0.0
    %v374 = vsel %vm370, %v362, 0.0
    %v375 = vsel %vm371, %v363, 0.0
    %vm376 = vcmp.ge.s32.totalorder %v192, 0
    %vm377 = vcmp.lt.s32.totalorder %v192, 32
    %vm378 = vmand %vm376, %vm377
    %v379 = vadd.f32 %v327, %v332
    %v380 = vadd.f32 %v328, %v334
    %v381 = vadd.f32 %v329, %v336
    %v382 = vadd.f32 %v330, %v338
    %v383 = vadd.f32 %v379, %v372
    %v384 = vadd.f32 %v380, %v373
    %v385 = vadd.f32 %v381, %v374
    %v386 = vadd.f32 %v382, %v375
    %v387 = vsel %vm378, 1, 0
    %vm388 = vcmp.eq.s32.totalorder %v387, 1
    %v389 = vsel %vm388, %v383, 0.0
    %v390 = vsel %vm388, %v384, 0.0
    %v391 = vsel %vm388, %v385, 0.0
    %v392 = vsel %vm388, %v386, 0.0
    %v393 = vlaneseq
    %v394 = vshrl.u32 %v393, 7
    %v395 = vsub.s32 0, %v394
    %v396 = vrot.slane %v202, %v395
    %v397 = vadd.f32 %v389, %v396
    %v398 = vadd.f32 %v390, %v396
    %v399 = vadd.f32 %v391, %v396
    %v400 = vadd.f32 %v392, %v396
    %v401 = vld [vmem:[#allocation7] sm:$0x1]
    %v402 = vlaneseq
    %v403 = vshrl.u32 %v402, 7
    %v404 = vsub.s32 0, %v403
    %v405 = vrot.slane %v401, %v404
    %v406 = vmul.f32 %v397, %v405
    %v407 = vmul.f32 %v398, %v405
    %v408 = vmul.f32 %v399, %v405
    %v409 = vmul.f32 %v400, %v405
    %v410 = vld [vmem:[#allocation8] sm:$0x1]
    %v411 = vlaneseq
    %v412 = vshrl.u32 %v411, 7
    %v413 = vsub.s32 0, %v412
    %v414 = vrot.slane %v410, %v413
    %v415 = vadd.f32 %v406, %v414
    %v416 = vadd.f32 %v407, %v414
    %v417 = vadd.f32 %v408, %v414
    %v418 = vadd.f32 %v409, %v414
    %vm419 = vcmp.ge.f32.partialorder %v415, 0.0
    %vm420 = vcmp.ge.f32.partialorder %v416, 0.0
    %vm421 = vcmp.ge.f32.partialorder %v417, 0.0
    %vm422 = vcmp.ge.f32.partialorder %v418, 0.0
    %s423 = sld [smem:[#allocation13]]
    %v424 = vstv %s423
    %v425 = vmul.f32 %v424, %v415
    %v426 = vmul.f32 %v424, %v416
    %v427 = vmul.f32 %v424, %v417
    %v428 = vmul.f32 %v424, %v418
    %v429 = vsel %vm419, %v415, %v425
    %v430 = vsel %vm420, %v416, %v426
    %v431 = vsel %vm421, %v417, %v427
    %v432 = vsel %vm422, %v418, %v428
    %v433 = vld [vmem:[#allocation10] sm:$0xff]
    %v434 = vld [vmem:[#allocation10 + $0x8] sm:$0xff]
    %v435 = vld [vmem:[#allocation10 + $0x10] sm:$0xff]
    %v436 = vld [vmem:[#allocation10 + $0x18] sm:$0xff]
    %v437 = vld [vmem:[#allocation10 + $0x20] sm:$0xff]
    %v438 = vld [vmem:[#allocation10 + $0x28] sm:$0xff]
    %v439 = vld [vmem:[#allocation10 + $0x30] sm:$0xff]
    %v440 = vld [vmem:[#allocation10 + $0x38] sm:$0xff]
    %v441 = vld [vmem:[#allocation10 + $0x40] sm:$0xff]
    %v442 = vld [vmem:[#allocation10 + $0x48] sm:$0xff]
    %v443 = vld [vmem:[#allocation10 + $0x50] sm:$0xff]
    %v444 = vld [vmem:[#allocation10 + $0x58] sm:$0xff]
    %v445 = vld [vmem:[#allocation10 + $0x60] sm:$0xff]
    %v446 = vld [vmem:[#allocation10 + $0x68] sm:$0xff]
    %v447 = vld [vmem:[#allocation10 + $0x70] sm:$0xff]
    %v448 = vld [vmem:[#allocation10 + $0x78] sm:$0xff]
    %v449 = vld [vmem:[#allocation11] sm:$0x1]
    %450 = vmatprep.subr.mxu0 0.0
    %451 = vmatpush1.msra.mxu0 %v433
    %452 = vmatprep.subr.mxu0 0.0
    %453 = vmatpush1.msra.mxu0 %v434
    %454 = vmatprep.subr.mxu0 0.0
    %455 = vmatpush1.msra.mxu0 %v435
    %456 = vmatprep.subr.mxu0 0.0
    %457 = vmatpush1.msra.mxu0 %v436
    %458 = vmatprep.subr.mxu0 0.0
    %459 = vmatpush1.msra.mxu0 %v437
    %460 = vmatprep.subr.mxu0 0.0
    %461 = vmatpush1.msra.mxu0 %v438
    %462 = vmatprep.subr.mxu0 0.0
    %463 = vmatpush1.msra.mxu0 %v439
    %464 = vmatprep.subr.mxu0 0.0
    %465 = vmatpush1.msra.mxu0 %v440
    %466 = vmatprep.subr.mxu0 0.0
    %467 = vmatpush1.msra.mxu0 %v441
    %468 = vmatprep.subr.mxu0 0.0
    %469 = vmatpush1.msra.mxu0 %v442
    %470 = vmatprep.subr.mxu0 0.0
    %471 = vmatpush1.msra.mxu0 %v443
    %472 = vmatprep.subr.mxu0 0.0
    %473 = vmatpush1.msra.mxu0 %v444
    %474 = vmatprep.subr.mxu0 0.0
    %475 = vmatpush1.msra.mxu0 %v445
    %476 = vmatprep.subr.mxu0 0.0
    %477 = vmatpush1.msra.mxu0 %v446
    %478 = vmatprep.subr.mxu0 0.0
    %479 = vmatpush1.msra.mxu0 %v447
    %480 = vmatprep.subr.mxu0 0.0
    %481 = vmatpush1.msra.mxu0 %v448
    %482 = vmatprep.subr.mxu0 0.0
    %483 = vmatpush1.msra.mxu0 0.0
    %484 = vmatprep.subr.mxu0 0.0
    %485 = vmatpush1.msra.mxu0 0.0
    %486 = vmatprep.subr.mxu0 0.0
    %487 = vmatpush1.msra.mxu0 0.0
    %488 = vmatprep.subr.mxu0 0.0
    %489 = vmatpush1.msra.mxu0 0.0
    %490 = vmatprep.subr.mxu0 0.0
    %491 = vmatpush1.msra.mxu0 0.0
    %492 = vmatprep.subr.mxu0 0.0
    %493 = vmatpush1.msra.mxu0 0.0
    %494 = vmatprep.subr.mxu0 0.0
    %495 = vmatpush1.msra.mxu0 0.0
    %496 = vmatprep.subr.mxu0 0.0
    %497 = vmatpush1.msra.mxu0 0.0
    %498 = vmatprep.subr.mxu0 0.0
    %499 = vmatpush1.msra.mxu0 0.0
    %500 = vmatprep.subr.mxu0 0.0
    %501 = vmatpush1.msra.mxu0 0.0
    %502 = vmatprep.subr.mxu0 0.0
    %503 = vmatpush1.msra.mxu0 0.0
    %504 = vmatprep.subr.mxu0 0.0
    %505 = vmatpush1.msra.mxu0 0.0
    %506 = vmatprep.subr.mxu0 0.0
    %507 = vmatpush1.msra.mxu0 0.0
    %508 = vmatprep.subr.mxu0 0.0
    %509 = vmatpush1.msra.mxu0 0.0
    %510 = vmatprep.subr.mxu0 0.0
    %511 = vmatpush1.msra.mxu0 0.0
    %512 = vmatprep.subr.mxu0 0.0
    %513 = vmatpush1.msra.mxu0 0.0
    %514 = vmatprep.mubr.f32.mxu0 0.0
    %515 = vmatmul.mubr.f32.gmra.mrb[0].mxu0 %v429
    %v516 = vpop.f32.mrb[0].mxu0
    %v517 = vadd.f32 0.0, %v516
    %v518 = vpop.f32.mrb[0].mxu0
    %519 = vmatprep.mubr.f32.mxu0 0.0
    %520 = vmatmul.mubr.f32.gmra.mrb[0].mxu0 %v430
    %v521 = vpop.f32.mrb[0].mxu0
    %v522 = vadd.f32 0.0, %v521
    %v523 = vpop.f32.mrb[0].mxu0
    %524 = vmatprep.mubr.f32.mxu0 0.0
    %525 = vmatmul.mubr.f32.gmra.mrb[0].mxu0 %v431
    %v526 = vpop.f32.mrb[0].mxu0
    %v527 = vadd.f32 0.0, %v526
    %v528 = vpop.f32.mrb[0].mxu0
    %529 = vmatprep.mubr.f32.mxu0 0.0
    %530 = vmatmul.mubr.f32.gmra.mrb[0].mxu0 %v432
    %v531 = vpop.f32.mrb[0].mxu0
    %v532 = vadd.f32 0.0, %v531
    %v533 = vpop.f32.mrb[0].mxu0
    %534 = vdwg.mxu0
    %535 = vrot.lane.b32.xlu0 %v517, 32
    %v536 = vpop.permute.xlu0 %535
    %537 = vrot.lane.b32.xlu0 %v522, 32
    %v538 = vpop.permute.xlu0 %537
    %539 = vrot.lane.b32.xlu0 %v527, 32
    %v540 = vpop.permute.xlu0 %539
    %541 = vrot.lane.b32.xlu0 %v532, 32
    %v542 = vpop.permute.xlu0 %541
    %v543 = vrot.slane %v536, 7
    %v544 = vrot.slane %v538, 7
    %v545 = vrot.slane %v540, 7
    %v546 = vrot.slane %v542, 7
    %v547 = vsel %vm306, %v545, %v546
    %v548 = vsel %vm306, %v544, %v545
    %v549 = vsel %vm306, %v543, %v544
    %v550 = vsel %vm306, %v546, %v543
    %v551 = vsel %vm323, %v550, 0.0
    %v552 = vsel %vm324, %v549, 0.0
    %v553 = vsel %vm325, %v548, 0.0
    %v554 = vsel %vm326, %v547, 0.0
    %555 = vrot.lane.b32.xlu0 %v517, 96
    %v556 = vpop.permute.xlu0 %555
    %557 = vrot.lane.b32.xlu0 %v522, 96
    %v558 = vpop.permute.xlu0 %557
    %559 = vrot.lane.b32.xlu0 %v527, 96
    %v560 = vpop.permute.xlu0 %559
    %561 = vrot.lane.b32.xlu0 %v532, 96
    %v562 = vpop.permute.xlu0 %561
    %v563 = vrot.slane %v556, 1
    %v564 = vrot.slane %v558, 1
    %v565 = vrot.slane %v560, 1
    %v566 = vrot.slane %v562, 1
    %v567 = vsel %vm351, %v565, %v566
    %v568 = vsel %vm351, %v564, %v565
    %v569 = vsel %vm351, %v563, %v564
    %v570 = vsel %vm351, %v566, %v563
    %v571 = vsel %vm368, %v569, 0.0
    %v572 = vsel %vm369, %v568, 0.0
    %v573 = vsel %vm370, %v567, 0.0
    %v574 = vsel %vm371, %v570, 0.0
    %vm575 = vcmp.ge.s32.totalorder %v192, 32
    %vm576 = vcmp.lt.s32.totalorder %v192, 64
    %vm577 = vmand %vm575, %vm576
    %v578 = vadd.f32 %v551, %v517
    %v579 = vadd.f32 %v552, %v522
    %v580 = vadd.f32 %v553, %v527
    %v581 = vadd.f32 %v554, %v532
    %v582 = vadd.f32 %v578, %v571
    %v583 = vadd.f32 %v579, %v572
    %v584 = vadd.f32 %v580, %v573
    %v585 = vadd.f32 %v581, %v574
    %v586 = vsel %vm577, 1, 0
    %vm587 = vcmp.eq.s32.totalorder %v586, 1
    %v588 = vsel %vm587, %v582, 0.0
    %v589 = vsel %vm587, %v583, 0.0
    %v590 = vsel %vm587, %v584, 0.0
    %v591 = vsel %vm587, %v585, 0.0
    %v592 = vlaneseq
    %v593 = vshrl.u32 %v592, 7
    %v594 = vsub.s32 0, %v593
    %v595 = vrot.slane %v449, %v594
    %v596 = vadd.f32 %v588, %v595
    %v597 = vadd.f32 %v589, %v595
    %v598 = vadd.f32 %v590, %v595
    %v599 = vadd.f32 %v591, %v595
    %v600 = vadd.f32 %v397, %v596
    %v601 = vadd.f32 %v398, %v597
    %v602 = vadd.f32 %v399, %v598
    %v603 = vadd.f32 %v400, %v599
    %v604 = vld [vmem:[#allocation7 + $0x1] sm:$0x1]
    %v605 = vlaneseq
    %v606 = vshrl.u32 %v605, 7
    %v607 = vsub.s32 0, %v606
    %v608 = vrot.slane %v604, %v607
    %v609 = vmul.f32 %v600, %v608
    %v610 = vmul.f32 %v601, %v608
    %v611 = vmul.f32 %v602, %v608
    %v612 = vmul.f32 %v603, %v608
    %v613 = vld [vmem:[#allocation8 + $0x1] sm:$0x1]
    %v614 = vlaneseq
    %v615 = vshrl.u32 %v614, 7
    %v616 = vsub.s32 0, %v615
    %v617 = vrot.slane %v613, %v616
    %v618 = vadd.f32 %v609, %v617
    %v619 = vadd.f32 %v610, %v617
    %v620 = vadd.f32 %v611, %v617
    %v621 = vadd.f32 %v612, %v617
    %vm622 = vcmp.ge.f32.partialorder %v618, 0.0
    %vm623 = vcmp.ge.f32.partialorder %v619, 0.0
    %vm624 = vcmp.ge.f32.partialorder %v620, 0.0
    %vm625 = vcmp.ge.f32.partialorder %v621, 0.0
    %s626 = sld [smem:[#allocation13 + $0x1]]
    %v627 = vstv %s626
    %v628 = vmul.f32 %v627, %v618
    %v629 = vmul.f32 %v627, %v619
    %v630 = vmul.f32 %v627, %v620
    %v631 = vmul.f32 %v627, %v621
    %v632 = vsel %vm622, %v618, %v628
    %v633 = vsel %vm623, %v619, %v629
    %v634 = vsel %vm624, %v620, %v630
    %v635 = vsel %vm625, %v621, %v631
    %s636 = scalar_lea.vmem [#allocation10], 128
    %v637 = vld [vmem:[%s636] sm:$0xff]
    %v638 = vld [vmem:[%s636 + $0x8] sm:$0xff]
    %v639 = vld [vmem:[%s636 + $0x10] sm:$0xff]
    %v640 = vld [vmem:[%s636 + $0x18] sm:$0xff]
    %v641 = vld [vmem:[%s636 + $0x20] sm:$0xff]
    %v642 = vld [vmem:[%s636 + $0x28] sm:$0xff]
    %v643 = vld [vmem:[%s636 + $0x30] sm:$0xff]
    %v644 = vld [vmem:[%s636 + $0x38] sm:$0xff]
    %v645 = vld [vmem:[%s636 + $0x40] sm:$0xff]
    %v646 = vld [vmem:[%s636 + $0x48] sm:$0xff]
    %v647 = vld [vmem:[%s636 + $0x50] sm:$0xff]
    %v648 = vld [vmem:[%s636 + $0x58] sm:$0xff]
    %v649 = vld [vmem:[%s636 + $0x60] sm:$0xff]
    %v650 = vld [vmem:[%s636 + $0x68] sm:$0xff]
    %v651 = vld [vmem:[%s636 + $0x70] sm:$0xff]
    %v652 = vld [vmem:[%s636 + $0x78] sm:$0xff]
    %v653 = vld [vmem:[#allocation11 + $0x1] sm:$0x1]
    %654 = vmatprep.subr.mxu0 0.0
    %655 = vmatpush1.msra.mxu0 %v637
    %656 = vmatprep.subr.mxu0 0.0
    %657 = vmatpush1.msra.mxu0 %v638
    %658 = vmatprep.subr.mxu0 0.0
    %659 = vmatpush1.msra.mxu0 %v639
    %660 = vmatprep.subr.mxu0 0.0
    %661 = vmatpush1.msra.mxu0 %v640
    %662 = vmatprep.subr.mxu0 0.0
    %663 = vmatpush1.msra.mxu0 %v641
    %664 = vmatprep.subr.mxu0 0.0
    %665 = vmatpush1.msra.mxu0 %v642
    %666 = vmatprep.subr.mxu0 0.0
    %667 = vmatpush1.msra.mxu0 %v643
    %668 = vmatprep.subr.mxu0 0.0
    %669 = vmatpush1.msra.mxu0 %v644
    %670 = vmatprep.subr.mxu0 0.0
    %671 = vmatpush1.msra.mxu0 %v645
    %672 = vmatprep.subr.mxu0 0.0
    %673 = vmatpush1.msra.mxu0 %v646
    %674 = vmatprep.subr.mxu0 0.0
    %675 = vmatpush1.msra.mxu0 %v647
    %676 = vmatprep.subr.mxu0 0.0
    %677 = vmatpush1.msra.mxu0 %v648
    %678 = vmatprep.subr.mxu0 0.0
    %679 = vmatpush1.msra.mxu0 %v649
    %680 = vmatprep.subr.mxu0 0.0
    %681 = vmatpush1.msra.mxu0 %v650
    %682 = vmatprep.subr.mxu0 0.0
    %683 = vmatpush1.msra.mxu0 %v651
    %684 = vmatprep.subr.mxu0 0.0
    %685 = vmatpush1.msra.mxu0 %v652
    %686 = vmatprep.subr.mxu0 0.0
    %687 = vmatpush1.msra.mxu0 0.0
    %688 = vmatprep.subr.mxu0 0.0
    %689 = vmatpush1.msra.mxu0 0.0
    %690 = vmatprep.subr.mxu0 0.0
    %691 = vmatpush1.msra.mxu0 0.0
    %692 = vmatprep.subr.mxu0 0.0
    %693 = vmatpush1.msra.mxu0 0.0
    %694 = vmatprep.subr.mxu0 0.0
    %695 = vmatpush1.msra.mxu0 0.0
    %696 = vmatprep.subr.mxu0 0.0
    %697 = vmatpush1.msra.mxu0 0.0
    %698 = vmatprep.subr.mxu0 0.0
    %699 = vmatpush1.msra.mxu0 0.0
    %700 = vmatprep.subr.mxu0 0.0
    %701 = vmatpush1.msra.mxu0 0.0
    %702 = vmatprep.subr.mxu0 0.0
    %703 = vmatpush1.msra.mxu0 0.0
    %704 = vmatprep.subr.mxu0 0.0
    %705 = vmatpush1.msra.mxu0 0.0
    %706 = vmatprep.subr.mxu0 0.0
    %707 = vmatpush1.msra.mxu0 0.0
    %708 = vmatprep.subr.mxu0 0.0
    %709 = vmatpush1.msra.mxu0 0.0
    %710 = vmatprep.subr.mxu0 0.0
    %711 = vmatpush1.msra.mxu0 0.0
    %712 = vmatprep.subr.mxu0 0.0
    %713 = vmatpush1.msra.mxu0 0.0
    %714 = vmatprep.subr.mxu0 0.0
    %715 = vmatpush1.msra.mxu0 0.0
    %716 = vmatprep.subr.mxu0 0.0
    %717 = vmatpush1.msra.mxu0 0.0
    %718 = vmatprep.mubr.f32.mxu0 0.0
    %719 = vmatmul.mubr.f32.gmra.mrb[0].mxu0 %v632
    %v720 = vpop.f32.mrb[0].mxu0
    %v721 = vadd.f32 0.0, %v720
    %v722 = vpop.f32.mrb[0].mxu0
    %723 = vmatprep.mubr.f32.mxu0 0.0
    %724 = vmatmul.mubr.f32.gmra.mrb[0].mxu0 %v633
    %v725 = vpop.f32.mrb[0].mxu0
    %v726 = vadd.f32 0.0, %v725
    %v727 = vpop.f32.mrb[0].mxu0
    %728 = vmatprep.mubr.f32.mxu0 0.0
    %729 = vmatmul.mubr.f32.gmra.mrb[0].mxu0 %v634
    %v730 = vpop.f32.mrb[0].mxu0
    %v731 = vadd.f32 0.0, %v730
    %v732 = vpop.f32.mrb[0].mxu0
    %733 = vmatprep.mubr.f32.mxu0 0.0
    %734 = vmatmul.mubr.f32.gmra.mrb[0].mxu0 %v635
    %v735 = vpop.f32.mrb[0].mxu0
    %v736 = vadd.f32 0.0, %v735
    %v737 = vpop.f32.mrb[0].mxu0
    %738 = vdwg.mxu0
    %739 = vrot.lane.b32.xlu0 %v721, 64
    %v740 = vpop.permute.xlu0 %739
    %741 = vrot.lane.b32.xlu0 %v726, 64
    %v742 = vpop.permute.xlu0 %741
    %743 = vrot.lane.b32.xlu0 %v731, 64
    %v744 = vpop.permute.xlu0 %743
    %745 = vrot.lane.b32.xlu0 %v736, 64
    %v746 = vpop.permute.xlu0 %745
    %v747 = vrot.slane %v740, 6
    %v748 = vrot.slane %v742, 6
    %v749 = vrot.slane %v744, 6
    %v750 = vrot.slane %v746, 6
    %vm751 = vcmp.lt.s32.totalorder %v115, 2
    %v752 = vsel %vm751, %v749, %v750
    %v753 = vsel %vm751, %v748, %v749
    %v754 = vsel %vm751, %v747, %v748
    %v755 = vsel %vm751, %v750, %v747
    %v756 = vsel %vm171, 1, 0
    %v757 = vsel %vm172, 1, 0
    %v758 = vsel %vm173, 1, 0
    %v759 = vsel %vm174, 1, 0
    %vm760 = vcmp.eq.s32.totalorder %v756, 1
    %vm761 = vcmp.eq.s32.totalorder %v757, 1
    %vm762 = vcmp.eq.s32.totalorder %v758, 1
    %vm763 = vcmp.eq.s32.totalorder %v759, 1
    %v764 = vsel %vm760, %v755, 0.0
    %v765 = vsel %vm761, %v754, 0.0
    %v766 = vsel %vm762, %v753, 0.0
    %v767 = vsel %vm763, %v752, 0.0
    %768 = vrot.lane.b32.xlu0 %v721, 32
    %v769 = vpop.permute.xlu0 %768
    %770 = vrot.lane.b32.xlu0 %v726, 32
    %v771 = vpop.permute.xlu0 %770
    %772 = vrot.lane.b32.xlu0 %v731, 32
    %v773 = vpop.permute.xlu0 %772
    %774 = vrot.lane.b32.xlu0 %v736, 32
    %v775 = vpop.permute.xlu0 %774
    %v776 = vrot.slane %v721, 2
    %v777 = vrot.slane %v726, 2
    %v778 = vrot.slane %v731, 2
    %v779 = vrot.slane %v736, 2
    %vm780 = vcmp.lt.s32.totalorder %v115, 6
    %v781 = vsel %vm780, %v778, %v779
    %v782 = vsel %vm780, %v777, %v778
    %v783 = vsel %vm780, %v776, %v777
    %v784 = vsel %vm780, %v779, %v776
    %v785 = vsel %vm183, 1, 0
    %v786 = vsel %vm184, 1, 0
    %v787 = vsel %vm185, 1, 0
    %v788 = vsel %vm186, 1, 0
    %vm789 = vcmp.eq.s32.totalorder %v785, 1
    %vm790 = vcmp.eq.s32.totalorder %v786, 1
    %vm791 = vcmp.eq.s32.totalorder %v787, 1
    %vm792 = vcmp.eq.s32.totalorder %v788, 1
    %v793 = vsel %vm789, %v783, 0.0
    %v794 = vsel %vm790, %v782, 0.0
    %v795 = vsel %vm791, %v781, 0.0
    %v796 = vsel %vm792, %v784, 0.0
    %vm797 = vcmp.ge.s32.totalorder %v192, 64
    %vm798 = vcmp.lt.s32.totalorder %v192, 96
    %vm799 = vmand %vm797, %vm798
    %v800 = vadd.f32 %v764, %v769
    %v801 = vadd.f32 %v765, %v771
    %v802 = vadd.f32 %v766, %v773
    %v803 = vadd.f32 %v767, %v775
    %v804 = vadd.f32 %v800, %v793
    %v805 = vadd.f32 %v801, %v794
    %v806 = vadd.f32 %v802, %v795
    %v807 = vadd.f32 %v803, %v796
    %v808 = vsel %vm799, 1, 0
    %vm809 = vcmp.eq.s32.totalorder %v808, 1
    %v810 = vsel %vm809, %v804, 0.0
    %v811 = vsel %vm809, %v805, 0.0
    %v812 = vsel %vm809, %v806, 0.0
    %v813 = vsel %vm809, %v807, 0.0
    %v814 = vlaneseq
    %v815 = vshrl.u32 %v814, 7
    %v816 = vsub.s32 0, %v815
    %v817 = vrot.slane %v653, %v816
    %v818 = vadd.f32 %v810, %v817
    %v819 = vadd.f32 %v811, %v817
    %v820 = vadd.f32 %v812, %v817
    %v821 = vadd.f32 %v813, %v817
    %v822 = vadd.f32 %v600, %v818
    %v823 = vadd.f32 %v601, %v819
    %v824 = vadd.f32 %v602, %v820
    %v825 = vadd.f32 %v603, %v821
    %v826 = vld [vmem:[#allocation7 + $0x2] sm:$0x1]
    %v827 = vlaneseq
    %v828 = vshrl.u32 %v827, 7
    %v829 = vsub.s32 0, %v828
    %v830 = vrot.slane %v826, %v829
    %v831 = vmul.f32 %v822, %v830
    %v832 = vmul.f32 %v823, %v830
    %v833 = vmul.f32 %v824, %v830
    %v834 = vmul.f32 %v825, %v830
    %v835 = vld [vmem:[#allocation8 + $0x2] sm:$0x1]
    %v836 = vlaneseq
    %v837 = vshrl.u32 %v836, 7
    %v838 = vsub.s32 0, %v837
    %v839 = vrot.slane %v835, %v838
    %v840 = vadd.f32 %v831, %v839
    %v841 = vadd.f32 %v832, %v839
    %v842 = vadd.f32 %v833, %v839
    %v843 = vadd.f32 %v834, %v839
    %vm844 = vcmp.ge.f32.partialorder %v840, 0.0
    %vm845 = vcmp.ge.f32.partialorder %v841, 0.0
    %vm846 = vcmp.ge.f32.partialorder %v842, 0.0
    %vm847 = vcmp.ge.f32.partialorder %v843, 0.0
    %s848 = sld [smem:[#allocation13 + $0x2]]
    %v849 = vstv %s848
    %v850 = vmul.f32 %v849, %v840
    %v851 = vmul.f32 %v849, %v841
    %v852 = vmul.f32 %v849, %v842
    %v853 = vmul.f32 %v849, %v843
    %v854 = vsel %vm844, %v840, %v850
    %v855 = vsel %vm845, %v841, %v851
    %v856 = vsel %vm846, %v842, %v852
    %v857 = vsel %vm847, %v843, %v853
    %s858 = scalar_lea.vmem [#allocation10], 256
    %v859 = vld [vmem:[%s858] sm:$0xff]
    %v860 = vld [vmem:[%s858 + $0x8] sm:$0xff]
    %v861 = vld [vmem:[%s858 + $0x10] sm:$0xff]
    %v862 = vld [vmem:[%s858 + $0x18] sm:$0xff]
    %v863 = vld [vmem:[%s858 + $0x20] sm:$0xff]
    %v864 = vld [vmem:[%s858 + $0x28] sm:$0xff]
    %v865 = vld [vmem:[%s858 + $0x30] sm:$0xff]
    %v866 = vld [vmem:[%s858 + $0x38] sm:$0xff]
    %v867 = vld [vmem:[%s858 + $0x40] sm:$0xff]
    %v868 = vld [vmem:[%s858 + $0x48] sm:$0xff]
    %v869 = vld [vmem:[%s858 + $0x50] sm:$0xff]
    %v870 = vld [vmem:[%s858 + $0x58] sm:$0xff]
    %v871 = vld [vmem:[%s858 + $0x60] sm:$0xff]
    %v872 = vld [vmem:[%s858 + $0x68] sm:$0xff]
    %v873 = vld [vmem:[%s858 + $0x70] sm:$0xff]
    %v874 = vld [vmem:[%s858 + $0x78] sm:$0xff]
    %v875 = vld [vmem:[#allocation11 + $0x2] sm:$0x1]
    %876 = vmatprep.subr.mxu0 0.0
    %877 = vmatpush1.msra.mxu0 %v859
    %878 = vmatprep.subr.mxu0 0.0
    %879 = vmatpush1.msra.mxu0 %v860
    %880 = vmatprep.subr.mxu0 0.0
    %881 = vmatpush1.msra.mxu0 %v861
    %882 = vmatprep.subr.mxu0 0.0
    %883 = vmatpush1.msra.mxu0 %v862
    %884 = vmatprep.subr.mxu0 0.0
    %885 = vmatpush1.msra.mxu0 %v863
    %886 = vmatprep.subr.mxu0 0.0
    %887 = vmatpush1.msra.mxu0 %v864
    %888 = vmatprep.subr.mxu0 0.0
    %889 = vmatpush1.msra.mxu0 %v865
    %890 = vmatprep.subr.mxu0 0.0
    %891 = vmatpush1.msra.mxu0 %v866
    %892 = vmatprep.subr.mxu0 0.0
    %893 = vmatpush1.msra.mxu0 %v867
    %894 = vmatprep.subr.mxu0 0.0
    %895 = vmatpush1.msra.mxu0 %v868
    %896 = vmatprep.subr.mxu0 0.0
    %897 = vmatpush1.msra.mxu0 %v869
    %898 = vmatprep.subr.mxu0 0.0
    %899 = vmatpush1.msra.mxu0 %v870
    %900 = vmatprep.subr.mxu0 0.0
    %901 = vmatpush1.msra.mxu0 %v871
    %902 = vmatprep.subr.mxu0 0.0
    %903 = vmatpush1.msra.mxu0 %v872
    %904 = vmatprep.subr.mxu0 0.0
    %905 = vmatpush1.msra.mxu0 %v873
    %906 = vmatprep.subr.mxu0 0.0
    %907 = vmatpush1.msra.mxu0 %v874
    %908 = vmatprep.subr.mxu0 0.0
    %909 = vmatpush1.msra.mxu0 0.0
    %910 = vmatprep.subr.mxu0 0.0
    %911 = vmatpush1.msra.mxu0 0.0
    %912 = vmatprep.subr.mxu0 0.0
    %913 = vmatpush1.msra.mxu0 0.0
    %914 = vmatprep.subr.mxu0 0.0
    %915 = vmatpush1.msra.mxu0 0.0
    %916 = vmatprep.subr.mxu0 0.0
    %917 = vmatpush1.msra.mxu0 0.0
    %918 = vmatprep.subr.mxu0 0.0
    %919 = vmatpush1.msra.mxu0 0.0
    %920 = vmatprep.subr.mxu0 0.0
    %921 = vmatpush1.msra.mxu0 0.0
    %922 = vmatprep.subr.mxu0 0.0
    %923 = vmatpush1.msra.mxu0 0.0
    %924 = vmatprep.subr.mxu0 0.0
    %925 = vmatpush1.msra.mxu0 0.0
    %926 = vmatprep.subr.mxu0 0.0
    %927 = vmatpush1.msra.mxu0 0.0
    %928 = vmatprep.subr.mxu0 0.0
    %929 = vmatpush1.msra.mxu0 0.0
    %930 = vmatprep.subr.mxu0 0.0
    %931 = vmatpush1.msra.mxu0 0.0
    %932 = vmatprep.subr.mxu0 0.0
    %933 = vmatpush1.msra.mxu0 0.0
    %934 = vmatprep.subr.mxu0 0.0
    %935 = vmatpush1.msra.mxu0 0.0
    %936 = vmatprep.subr.mxu0 0.0
    %937 = vmatpush1.msra.mxu0 0.0
    %938 = vmatprep.subr.mxu0 0.0
    %939 = vmatpush1.msra.mxu0 0.0
    %940 = vmatprep.mubr.f32.mxu0 0.0
    %941 = vmatmul.mubr.f32.gmra.mrb[0].mxu0 %v854
    %v942 = vpop.f32.mrb[0].mxu0
    %v943 = vadd.f32 0.0, %v942
    %v944 = vpop.f32.mrb[0].mxu0
    %945 = vmatprep.mubr.f32.mxu0 0.0
    %946 = vmatmul.mubr.f32.gmra.mrb[0].mxu0 %v855
    %v947 = vpop.f32.mrb[0].mxu0
    %v948 = vadd.f32 0.0, %v947
    %v949 = vpop.f32.mrb[0].mxu0
    %950 = vmatprep.mubr.f32.mxu0 0.0
    %951 = vmatmul.mubr.f32.gmra.mrb[0].mxu0 %v856
    %v952 = vpop.f32.mrb[0].mxu0
    %v953 = vadd.f32 0.0, %v952
    %v954 = vpop.f32.mrb[0].mxu0
    %955 = vmatprep.mubr.f32.mxu0 0.0
    %956 = vmatmul.mubr.f32.gmra.mrb[0].mxu0 %v857
    %v957 = vpop.f32.mrb[0].mxu0
    %v958 = vadd.f32 0.0, %v957
    %v959 = vpop.f32.mrb[0].mxu0
    %960 = vdwg.mxu0
    %961 = vrot.lane.b32.xlu0 %v943, 96
    %v962 = vpop.permute.xlu0 %961
    %963 = vrot.lane.b32.xlu0 %v948, 96
    %v964 = vpop.permute.xlu0 %963
    %965 = vrot.lane.b32.xlu0 %v953, 96
    %v966 = vpop.permute.xlu0 %965
    %967 = vrot.lane.b32.xlu0 %v958, 96
    %v968 = vpop.permute.xlu0 %967
    %v969 = vrot.slane %v962, 4
    %v970 = vrot.slane %v964, 4
    %v971 = vrot.slane %v966, 4
    %v972 = vrot.slane %v968, 4
    %vm973 = vcmp.lt.s32.totalorder %v115, 4
    %v974 = vsel %vm973, %v971, %v972
    %v975 = vsel %vm973, %v970, %v971
    %v976 = vsel %vm973, %v969, %v970
    %v977 = vsel %vm973, %v972, %v969
    %v978 = vsel %vm175, 1, 0
    %v979 = vsel %vm176, 1, 0
    %v980 = vsel %vm177, 1, 0
    %v981 = vsel %vm178, 1, 0
    %vm982 = vcmp.eq.s32.totalorder %v978, 1
    %vm983 = vcmp.eq.s32.totalorder %v979, 1
    %vm984 = vcmp.eq.s32.totalorder %v980, 1
    %vm985 = vcmp.eq.s32.totalorder %v981, 1
    %v986 = vsel %vm982, %v977, 0.0
    %v987 = vsel %vm983, %v976, 0.0
    %v988 = vsel %vm984, %v975, 0.0
    %v989 = vsel %vm985, %v974, 0.0
    %990 = vrot.lane.b32.xlu0 %v943, 64
    %v991 = vpop.permute.xlu0 %990
    %992 = vrot.lane.b32.xlu0 %v948, 64
    %v993 = vpop.permute.xlu0 %992
    %994 = vrot.lane.b32.xlu0 %v953, 64
    %v995 = vpop.permute.xlu0 %994
    %996 = vrot.lane.b32.xlu0 %v958, 64
    %v997 = vpop.permute.xlu0 %996
    %998 = vrot.lane.b32.xlu0 %v943, 32
    %v999 = vpop.permute.xlu0 %998
    %1000 = vrot.lane.b32.xlu0 %v948, 32
    %v1001 = vpop.permute.xlu0 %1000
    %1002 = vrot.lane.b32.xlu0 %v953, 32
    %v1003 = vpop.permute.xlu0 %1002
    %1004 = vrot.lane.b32.xlu0 %v958, 32
    %v1005 = vpop.permute.xlu0 %1004
    %v1006 = vrot.slane %v999, 4
    %v1007 = vrot.slane %v1001, 4
    %v1008 = vrot.slane %v1003, 4
    %v1009 = vrot.slane %v1005, 4
    %v1010 = vsel %vm973, %v1008, %v1009
    %v1011 = vsel %vm973, %v1007, %v1008
    %v1012 = vsel %vm973, %v1006, %v1007
    %v1013 = vsel %vm973, %v1009, %v1006
    %v1014 = vsel %vm187, 1, 0
    %v1015 = vsel %vm188, 1, 0
    %v1016 = vsel %vm189, 1, 0
    %v1017 = vsel %vm190, 1, 0
    %vm1018 = vcmp.eq.s32.totalorder %v1014, 1
    %vm1019 = vcmp.eq.s32.totalorder %v1015, 1
    %vm1020 = vcmp.eq.s32.totalorder %v1016, 1
    %vm1021 = vcmp.eq.s32.totalorder %v1017, 1
    %v1022 = vsel %vm1018, %v1012, 0.0
    %v1023 = vsel %vm1019, %v1011, 0.0
    %v1024 = vsel %vm1020, %v1010, 0.0
    %v1025 = vsel %vm1021, %v1013, 0.0
    %vm1026 = vcmp.ge.s32.totalorder %v192, 96
    %vm1027 = vcmp.lt.s32.totalorder %v192, 128
    %vm1028 = vmand %vm1026, %vm1027
    %v1029 = vadd.f32 %v986, %v991
    %v1030 = vadd.f32 %v987, %v993
    %v1031 = vadd.f32 %v988, %v995
    %v1032 = vadd.f32 %v989, %v997
    %v1033 = vadd.f32 %v1029, %v1022
    %v1034 = vadd.f32 %v1030, %v1023
    %v1035 = vadd.f32 %v1031, %v1024
    %v1036 = vadd.f32 %v1032, %v1025
    %v1037 = vsel %vm1028, 1, 0
    %vm1038 = vcmp.eq.s32.totalorder %v1037, 1
    %v1039 = vsel %vm1038, %v1033, 0.0
    %v1040 = vsel %vm1038, %v1034, 0.0
    %v1041 = vsel %vm1038, %v1035, 0.0
    %v1042 = vsel %vm1038, %v1036, 0.0
    %v1043 = vlaneseq
    %v1044 = vshrl.u32 %v1043, 7
    %v1045 = vsub.s32 0, %v1044
    %v1046 = vrot.slane %v875, %v1045
    %v1047 = vadd.f32 %v1039, %v1046
    %v1048 = vadd.f32 %v1040, %v1046
    %v1049 = vadd.f32 %v1041, %v1046
    %v1050 = vadd.f32 %v1042, %v1046
    %v1051 = vadd.f32 %v822, %v1047
    %v1052 = vadd.f32 %v823, %v1048
    %v1053 = vadd.f32 %v824, %v1049
    %v1054 = vadd.f32 %v825, %v1050
    %v1055 = vld [vmem:[#allocation7 + $0x3] sm:$0x1]
    %v1056 = vlaneseq
    %v1057 = vshrl.u32 %v1056, 7
    %v1058 = vsub.s32 0, %v1057
    %v1059 = vrot.slane %v1055, %v1058
    %v1060 = vmul.f32 %v1051, %v1059
    %v1061 = vmul.f32 %v1052, %v1059
    %v1062 = vmul.f32 %v1053, %v1059
    %v1063 = vmul.f32 %v1054, %v1059
    %v1064 = vld [vmem:[#allocation8 + $0x3] sm:$0x1]
    %v1065 = vlaneseq
    %v1066 = vshrl.u32 %v1065, 7
    %v1067 = vsub.s32 0, %v1066
    %v1068 = vrot.slane %v1064, %v1067
    %v1069 = vadd.f32 %v1060, %v1068
    %v1070 = vadd.f32 %v1061, %v1068
    %v1071 = vadd.f32 %v1062, %v1068
    %v1072 = vadd.f32 %v1063, %v1068
    %vm1073 = vcmp.ge.f32.partialorder %v1069, 0.0
    %vm1074 = vcmp.ge.f32.partialorder %v1070, 0.0
    %vm1075 = vcmp.ge.f32.partialorder %v1071, 0.0
    %vm1076 = vcmp.ge.f32.partialorder %v1072, 0.0
    %s1077 = sld [smem:[#allocation13 + $0x3]]
    %v1078 = vstv %s1077
    %v1079 = vmul.f32 %v1078, %v1069
    %v1080 = vmul.f32 %v1078, %v1070
    %v1081 = vmul.f32 %v1078, %v1071
    %v1082 = vmul.f32 %v1078, %v1072
    %v1083 = vsel %vm1073, %v1069, %v1079
    %v1084 = vsel %vm1074, %v1070, %v1080
    %v1085 = vsel %vm1075, %v1071, %v1081
    %v1086 = vsel %vm1076, %v1072, %v1082
    %v1087 = vmax.f32 %v1083, %v1084
    %v1088 = vrot.slane %v1087, 4
    %v1089 = vmax.f32 %v1087, %v1088
    %v1090 = vrot.slane %v1089, 2
    %v1091 = vmax.f32 %v1089, %v1090
    %v1092 = vrot.slane %v1091, 1
    %v1093 = vmax.f32 %v1091, %v1092
    %v1094 = vmax.f32 %v1085, %v1086
    %v1095 = vrot.slane %v1094, 4
    %v1096 = vmax.f32 %v1094, %v1095
    %v1097 = vrot.slane %v1096, 2
    %v1098 = vmax.f32 %v1096, %v1097
    %v1099 = vrot.slane %v1098, 1
    %v1100 = vmax.f32 %v1098, %v1099
    %vm1103 = vcmask 1041409
    %v1104 = vsel %vm1103, %v1100, %v1093
    %1106 = vst [vmem:[%s8] sm:$0x3] %v1104
    // Predicated region
    $region62: #{forward.5} parent=1 // pred_check
      _
    $region63: #{forward.5} parent=1 // pred_check_branch
      %1108 = sbr.rel (0) target = $region65
    $region64: #{forward.5} parent=1 // pred_region
      _
    $region65: #{forward.5} parent=1 // pred_fallthru
      _
    // Predicated region
    $region66: #{forward.5} parent=1 // pred_check
      _
    $region67: #{forward.5} parent=1 // pred_check_branch
      %1110 = sbr.rel (0) target = $region69
    $region68: #{forward.5} parent=1 // pred_region
      _
    $region69: #{forward.5} parent=1 // pred_fallthru
      _
    %1111 = vsyncpa [#allocation3], 1
    %1112 = vsyncpa [#allocation6], 1
    %1113 = vsyncpa [#allocation9], 1
    %1114 = vsyncpa [#allocation12], 1
    %1115 = vsyncpa [#allocation4], 1

// kernel: forward.4
$region0: #{forward.4}
  #allocation0 [shape = 'u32[]', space=smem, size = 0x4, offset = 0x4, fixed_abs, tag = 'smem constant byte address 0x4 - core index']
  #allocation1 [shape = 'u32[144,128]{1,0:T(1,128)}', space=vmem, size = 0x12000, scoped, tag = 'internal scratch']
  %s0 = inlined_call_operand.vmem [shape: f32[32,32], index: 0, kind: input, shape index: {}]
  %s1 = inlined_call_operand.hbm [shape: f32[32,128], index: 1, kind: input, shape index: {}]
  %s2 = inlined_call_operand.hbm [shape: f32[3,128], index: 2, kind: input, shape index: {}]
  %s3 = inlined_call_operand.hbm [shape: f32[5,128], index: 3, kind: input, shape index: {}]
  %s4 = inlined_call_operand.hbm [shape: f32[5,128], index: 4, kind: input, shape index: {}]
  %s5 = inlined_call_operand.vmem [shape: f32[4,128,128], index: 5, kind: input, shape index: {}]
  %s6 = inlined_call_operand.hbm [shape: f32[4,128], index: 6, kind: input, shape index: {}]
  %s7 = inlined_call_operand.hbm [shape: f32[5], index: 7, kind: input, shape index: {}]
  %s8 = inlined_call_operand.vmem [shape: f32[2,128], index: 8, kind: output, shape index: {}]
  %s9 = sld [smem:[#allocation0]]
  $region66: #{forward.4} parent=0
    _
  %s11 = ssub.s32 1, %s9
  %s12 = scalar_select 0, %s11, %s9
  $region1: #{forward.4} parent=0
    #allocation2 [shape = 'u8[16384]{0}', space=vmem, size = 0x4000, scoped, tag = 'input window, operand 1, single buffered']
    #allocation3 [shape = 's32[1]{0}', space=sflag, size = 0x4, scoped, tag = 'scoped memory for forward.4']
    #allocation4 [shape = 's32[1]{0}', space=sflag, size = 0x4, scoped, tag = 'scoped memory for forward.4']
    #allocation5 [shape = 'u8[2048]{0}', space=vmem, size = 0x800, scoped, tag = 'input window, operand 2, single buffered']
    #allocation6 [shape = 's32[1]{0}', space=sflag, size = 0x4, scoped, tag = 'scoped memory for forward.4']
    #allocation7 [shape = 'u8[4096]{0}', space=vmem, size = 0x1000, scoped, tag = 'input window, operand 3, single buffered']
    #allocation8 [shape = 'u8[4096]{0}', space=vmem, size = 0x1000, scoped, tag = 'input window, operand 4, single buffered']
    #allocation9 [shape = 's32[1]{0}', space=sflag, size = 0x4, scoped, tag = 'scoped memory for forward.4']
    #allocation10 [shape = 'u8[2048]{0}', space=vmem, size = 0x800, scoped, tag = 'input window, operand 6, single buffered']
    #allocation11 [shape = 'u8[512]{0}', space=smem, size = 0x200, scoped, tag = 'input window, operand 7, single buffered']
    %13 = vsyncpa [#allocation3], 0
    %14 = vsyncpa [#allocation6], 0
    %15 = vsyncpa [#allocation9], 0
    %16 = vsyncpa [#allocation4], 0
    // Predicated region
    $region2: #{forward.4} parent=1 // pred_check
      _
    $region3: #{forward.4} parent=1 // pred_check_branch
      %18 = sbr.rel (0) target = $region5
    $region4: #{forward.4} parent=1 // pred_region
      _
    $region5: #{forward.4} parent=1 // pred_fallthru
      _
    // Predicated region
    $region6: #{forward.4} parent=1 // pred_check
      _
    $region7: #{forward.4} parent=1 // pred_check_branch
      %20 = sbr.rel (0) target = $region9
    $region8: #{forward.4} parent=1 // pred_region
      %s22 = ssub.s32 512, 512
      %23 = vsyncadd [#allocation3], %s22
      %s24 = sshll.u32 [#allocation2], 4
      %s25 = int_to_ptr.vmem [resolvable:$true] %s24
      %30 = dma.hbm_to_vmem [thread:$0]  %s1, 512, %s25, [#allocation3], 128, 128, 8
    $region9: #{forward.4} parent=1 // pred_fallthru
      _
    // Predicated region
    $region10: #{forward.4} parent=1 // pred_check
      _
    $region11: #{forward.4} parent=1 // pred_check_branch
      %32 = sbr.rel (0) target = $region13
    $region12: #{forward.4} parent=1 // pred_region
      %s34 = ssub.s32 64, 64
      %35 = vsyncadd [#allocation6], %s34
      %s37 = sshll.u32 [#allocation5], 4
      %s38 = int_to_ptr.vmem [resolvable:$true] %s37
      %40 = dma.hbm_to_vmem [thread:$0]  %s2, 64, %s38, [#allocation6]
    $region13: #{forward.4} parent=1 // pred_fallthru
      _
    // Predicated region
    $region14: #{forward.4} parent=1 // pred_check
      _
    $region15: #{forward.4} parent=1 // pred_check_branch
      %42 = sbr.rel (0) target = $region17
    $region16: #{forward.4} parent=1 // pred_region
      %s44 = ssub.s32 128, 128
      %45 = vsyncadd [#allocation6], %s44
      %s47 = sshll.u32 [#allocation7], 4
      %s48 = int_to_ptr.vmem [resolvable:$true] %s47
      %50 = dma.hbm_to_vmem [thread:$0]  %s3, 128, %s48, [#allocation6]
    $region17: #{forward.4} parent=1 // pred_fallthru
      _
    // Predicated region
    $region18: #{forward.4} parent=1 // pred_check
      _
    $region19: #{forward.4} parent=1 // pred_check_branch
      %52 = sbr.rel (0) target = $region21
    $region20: #{forward.4} parent=1 // pred_region
      %s54 = ssub.s32 128, 128
      %55 = vsyncadd [#allocation9], %s54
      %s57 = sshll.u32 [#allocation8], 4
      %s58 = int_to_ptr.vmem [resolvable:$true] %s57
      %60 = dma.hbm_to_vmem [thread:$0]  %s4, 128, %s58, [#allocation9]
    $region21: #{forward.4} parent=1 // pred_fallthru
      _
    // Predicated region
    $region22: #{forward.4} parent=1 // pred_check
      _
    $region23: #{forward.4} parent=1 // pred_check_branch
      %62 = sbr.rel (0) target = $region25
    $region24: #{forward.4} parent=1 // pred_region
      _
    $region25: #{forward.4} parent=1 // pred_fallthru
      _
    // Predicated region
    $region26: #{forward.4} parent=1 // pred_check
      _
    $region27: #{forward.4} parent=1 // pred_check_branch
      %64 = sbr.rel (0) target = $region29
    $region28: #{forward.4} parent=1 // pred_region
      %s66 = ssub.s32 64, 64
      %67 = vsyncadd [#allocation9], %s66
      %s69 = sshll.u32 [#allocation10], 4
      %s70 = int_to_ptr.vmem [resolvable:$true] %s69
      %72 = dma.hbm_to_vmem [thread:$0]  %s6, 64, %s70, [#allocation9]
    $region29: #{forward.4} parent=1 // pred_fallthru
      _
    // Predicated region
    $region30: #{forward.4} parent=1 // pred_check
      _
    $region31: #{forward.4} parent=1 // pred_check_branch
      %74 = sbr.rel (0) target = $region33
    $region32: #{forward.4} parent=1 // pred_region
      %s76 = ssub.s32 16, 16
      %77 = vsyncadd [#allocation4], %s76
      %80 = dma.hbm_to_smem %s7, 16, [#allocation11], [#allocation4]
    $region33: #{forward.4} parent=1 // pred_fallthru
      _
    // Predicated region
    $region34: #{forward.4} parent=1 // pred_check
      _
    $region35: #{forward.4} parent=1 // pred_check_branch
      %82 = sbr.rel (0) target = $region37
    $region36: #{forward.4} parent=1 // pred_region
      %83 = dma.done [#allocation3], 512
    $region37: #{forward.4} parent=1 // pred_fallthru
      _
    // Predicated region
    $region38: #{forward.4} parent=1 // pred_check
      _
    $region39: #{forward.4} parent=1 // pred_check_branch
      %85 = sbr.rel (0) target = $region41
    $region40: #{forward.4} parent=1 // pred_region
      %86 = dma.done [#allocation6], 64
    $region41: #{forward.4} parent=1 // pred_fallthru
      _
    // Predicated region
    $region42: #{forward.4} parent=1 // pred_check
      _
    $region43: #{forward.4} parent=1 // pred_check_branch
      %88 = sbr.rel (0) target = $region45
    $region44: #{forward.4} parent=1 // pred_region
      %89 = dma.done [#allocation6], 128
    $region45: #{forward.4} parent=1 // pred_fallthru
      _
    // Predicated region
    $region46: #{forward.4} parent=1 // pred_check
      _
    $region47: #{forward.4} parent=1 // pred_check_branch
      %91 = sbr.rel (0) target = $region49
    $region48: #{forward.4} parent=1 // pred_region
      %92 = dma.done [#allocation9], 128
    $region49: #{forward.4} parent=1 // pred_fallthru
      _
    // Predicated region
    $region50: #{forward.4} parent=1 // pred_check
      _
    $region51: #{forward.4} parent=1 // pred_check_branch
      %94 = sbr.rel (0) target = $region53
    $region52: #{forward.4} parent=1 // pred_region
      %95 = dma.done [#allocation9], 64
    $region53: #{forward.4} parent=1 // pred_fallthru
      _
    // Predicated region
    $region54: #{forward.4} parent=1 // pred_check
      _
    $region55: #{forward.4} parent=1 // pred_check_branch
      %97 = sbr.rel (0) target = $region57
    $region56: #{forward.4} parent=1 // pred_region
      %98 = dma.done [#allocation4], 16
    $region57: #{forward.4} parent=1 // pred_fallthru
      _
    %99 = sfence
    %v100 = vlaneseq
    %v101 = vshrl.u32 %v100, 7
    %v102 = vadd.s32 %v101, 8
    %v103 = vadd.s32 %v101, 16
    %v104 = vadd.s32 %v101, 24
    %vm105 = vcmp.lt.s32.totalorder %v101, 0
    %v106 = vsub.s32 0, %v101
    %v107 = vsel %vm105, %v106, %v101
    %v108 = vshrl.u32 %v107, 4
    %v109 = vand.u32 %v107, 15
    %v110 = vsub.s32 0, %v109
    %v111 = vsel %vm105, %v110, %v109
    %vm112 = vcmp.lt.s32.totalorder %v102, 0
    %v113 = vsub.s32 0, %v102
    %v114 = vsel %vm112, %v113, %v102
    %v115 = vshrl.u32 %v114, 4
    %v116 = vand.u32 %v114, 15
    %v117 = vsub.s32 0, %v116
    %v118 = vsel %vm112, %v117, %v116
    %vm119 = vcmp.lt.s32.totalorder %v103, 0
    %v120 = vsub.s32 0, %v103
    %v121 = vsel %vm119, %v120, %v103
    %v122 = vshrl.u32 %v121, 4
    %v123 = vand.u32 %v121, 15
    %v124 = vsub.s32 0, %v123
    %v125 = vsel %vm119, %v124, %v123
    %vm126 = vcmp.lt.s32.totalorder %v104, 0
    %v127 = vsub.s32 0, %v104
    %v128 = vsel %vm126, %v127, %v104
    %v129 = vshrl.u32 %v128, 4
    %v130 = vand.u32 %v128, 15
    %v131 = vsub.s32 0, %v130
    %v132 = vsel %vm126, %v131, %v130
    %vm133 = vcmp.ne.s32.totalorder %v111, 0
    %vm134 = vcmp.ne.s32.totalorder %v118, 0
    %vm135 = vcmp.ne.s32.totalorder %v125, 0
    %vm136 = vcmp.ne.s32.totalorder %v132, 0
    %vm137 = vcmp.lt.s32.totalorder %v111, 0
    %vm138 = vcmp.lt.s32.totalorder %v118, 0
    %vm139 = vcmp.lt.s32.totalorder %v125, 0
    %vm140 = vcmp.lt.s32.totalorder %v132, 0
    %vm141 = vmand %vm137, %vm133
    %vm142 = vmand %vm138, %vm134
    %vm143 = vmand %vm139, %vm135
    %vm144 = vmand %vm140, %vm136
    %v145 = vadd.s32 %v111, 16
    %v146 = vadd.s32 %v118, 16
    %v147 = vadd.s32 %v125, 16
    %v148 = vadd.s32 %v132, 16
    %v149 = vsel %vm141, %v145, %v111
    %v150 = vsel %vm142, %v146, %v118
    %v151 = vsel %vm143, %v147, %v125
    %v152 = vsel %vm144, %v148, %v132
    %vm153 = vcmp.ge.s32.totalorder %v149, 1
    %vm154 = vcmp.ge.s32.totalorder %v150, 1
    %vm155 = vcmp.ge.s32.totalorder %v151, 1
    %vm156 = vcmp.ge.s32.totalorder %v152, 1
    %vm157 = vcmp.ge.s32.totalorder %v149, 2
    %vm158 = vcmp.ge.s32.totalorder %v150, 2
    %vm159 = vcmp.ge.s32.totalorder %v151, 2
    %vm160 = vcmp.ge.s32.totalorder %v152, 2
    %vm161 = vcmp.ge.s32.totalorder %v149, 4
    %vm162 = vcmp.ge.s32.totalorder %v150, 4
    %vm163 = vcmp.ge.s32.totalorder %v151, 4
    %vm164 = vcmp.ge.s32.totalorder %v152, 4
    %vm165 = vcmp.ge.s32.totalorder %v149, 8
    %vm166 = vcmp.ge.s32.totalorder %v150, 8
    %vm167 = vcmp.ge.s32.totalorder %v151, 8
    %vm168 = vcmp.ge.s32.totalorder %v152, 8
    %vm169 = vcmp.lt.s32.totalorder %v149, 15
    %vm170 = vcmp.lt.s32.totalorder %v150, 15
    %vm171 = vcmp.lt.s32.totalorder %v151, 15
    %vm172 = vcmp.lt.s32.totalorder %v152, 15
    %vm173 = vcmp.lt.s32.totalorder %v149, 14
    %vm174 = vcmp.lt.s32.totalorder %v150, 14
    %vm175 = vcmp.lt.s32.totalorder %v151, 14
    %vm176 = vcmp.lt.s32.totalorder %v152, 14
    %vm177 = vcmp.lt.s32.totalorder %v149, 12
    %vm178 = vcmp.lt.s32.totalorder %v150, 12
    %vm179 = vcmp.lt.s32.totalorder %v151, 12
    %vm180 = vcmp.lt.s32.totalorder %v152, 12
    %vm181 = vcmp.lt.s32.totalorder %v149, 8
    %vm182 = vcmp.lt.s32.totalorder %v150, 8
    %vm183 = vcmp.lt.s32.totalorder %v151, 8
    %vm184 = vcmp.lt.s32.totalorder %v152, 8
    %v185 = vlaneseq
    %v186 = vand.u32 %v185, 127
    %v187 = vld [vmem:[%s0] sm:$0xff]
    %v188 = vld [vmem:[%s0 + $0x8] sm:$0xff]
    %v189 = vld [vmem:[%s0 + $0x10] sm:$0xff]
    %v190 = vld [vmem:[%s0 + $0x18] sm:$0xff]
    %v191 = vld [vmem:[#allocation2] sm:$0xff]
    %v192 = vld [vmem:[#allocation2 + $0x8] sm:$0xff]
    %v193 = vld [vmem:[#allocation2 + $0x10] sm:$0xff]
    %v194 = vld [vmem:[#allocation2 + $0x18] sm:$0xff]
    %v195 = vld [vmem:[#allocation5] sm:$0x1]
    %v196 = vld [vmem:[#allocation5 + $0x1] sm:$0x1]
    %v197 = vld [vmem:[#allocation5 + $0x2] sm:$0x1]
    %vm198 = vcmask 261120
    %v200 = vsel %vm198, %v187, 0
    %v203 = vsel %vm198, %v188, 0
    %v206 = vsel %vm198, %v189, 0
    %v209 = vsel %vm198, %v190, 0
    %211 = vmatprep.subr.mxu0 0.0
    %212 = vmatpush1.msra.mxu0 %v191
    %213 = vmatprep.subr.mxu0 0.0
    %214 = vmatpush1.msra.mxu0 %v192
    %215 = vmatprep.subr.mxu0 0.0
    %216 = vmatpush1.msra.mxu0 %v193
    %217 = vmatprep.subr.mxu0 0.0
    %218 = vmatpush1.msra.mxu0 %v194
    %219 = vmatprep.subr.mxu0 0.0
    %220 = vmatpush1.msra.mxu0 0.0
    %221 = vmatprep.subr.mxu0 0.0
    %222 = vmatpush1.msra.mxu0 0.0
    %223 = vmatprep.subr.mxu0 0.0
    %224 = vmatpush1.msra.mxu0 0.0
    %225 = vmatprep.subr.mxu0 0.0
    %226 = vmatpush1.msra.mxu0 0.0
    %227 = vmatprep.subr.mxu0 0.0
    %228 = vmatpush1.msra.mxu0 0.0
    %229 = vmatprep.subr.mxu0 0.0
    %230 = vmatpush1.msra.mxu0 0.0
    %231 = vmatprep.subr.mxu0 0.0
    %232 = vmatpush1.msra.mxu0 0.0
    %233 = vmatprep.subr.mxu0 0.0
    %234 = vmatpush1.msra.mxu0 0.0
    %235 = vmatprep.subr.mxu0 0.0
    %236 = vmatpush1.msra.mxu0 0.0
    %237 = vmatprep.subr.mxu0 0.0
    %238 = vmatpush1.msra.mxu0 0.0
    %239 = vmatprep.subr.mxu0 0.0
    %240 = vmatpush1.msra.mxu0 0.0
    %241 = vmatprep.subr.mxu0 0.0
    %242 = vmatpush1.msra.mxu0 0.0
    %243 = vmatprep.subr.mxu0 0.0
    %244 = vmatpush1.msra.mxu0 0.0
    %245 = vmatprep.subr.mxu0 0.0
    %246 = vmatpush1.msra.mxu0 0.0
    %247 = vmatprep.subr.mxu0 0.0
    %248 = vmatpush1.msra.mxu0 0.0
    %249 = vmatprep.subr.mxu0 0.0
    %250 = vmatpush1.msra.mxu0 0.0
    %251 = vmatprep.subr.mxu0 0.0
    %252 = vmatpush1.msra.mxu0 0.0
    %253 = vmatprep.subr.mxu0 0.0
    %254 = vmatpush1.msra.mxu0 0.0
    %255 = vmatprep.subr.mxu0 0.0
    %256 = vmatpush1.msra.mxu0 0.0
    %257 = vmatprep.subr.mxu0 0.0
    %258 = vmatpush1.msra.mxu0 0.0
    %259 = vmatprep.subr.mxu0 0.0
    %260 = vmatpush1.msra.mxu0 0.0
    %261 = vmatprep.subr.mxu0 0.0
    %262 = vmatpush1.msra.mxu0 0.0
    %263 = vmatprep.subr.mxu0 0.0
    %264 = vmatpush1.msra.mxu0 0.0
    %265 = vmatprep.subr.mxu0 0.0
    %266 = vmatpush1.msra.mxu0 0.0
    %267 = vmatprep.subr.mxu0 0.0
    %268 = vmatpush1.msra.mxu0 0.0
    %269 = vmatprep.subr.mxu0 0.0
    %270 = vmatpush1.msra.mxu0 0.0
    %271 = vmatprep.subr.mxu0 0.0
    %272 = vmatpush1.msra.mxu0 0.0
    %273 = vmatprep.subr.mxu0 0.0
    %274 = vmatpush1.msra.mxu0 0.0
    %275 = vmatprep.mubr.f32.mxu0 0.0
    %276 = vmatmul.mubr.f32.gmra.mrb[0].mxu0 %v200
    %v277 = vpop.f32.mrb[0].mxu0
    %v278 = vadd.f32 0.0, %v277
    %v279 = vpop.f32.mrb[0].mxu0
    %280 = vmatprep.mubr.f32.mxu0 0.0
    %281 = vmatmul.mubr.f32.gmra.mrb[0].mxu0 %v203
    %v282 = vpop.f32.mrb[0].mxu0
    %v283 = vadd.f32 0.0, %v282
    %v284 = vpop.f32.mrb[0].mxu0
    %285 = vmatprep.mubr.f32.mxu0 0.0
    %286 = vmatmul.mubr.f32.gmra.mrb[0].mxu0 %v206
    %v287 = vpop.f32.mrb[0].mxu0
    %v288 = vadd.f32 0.0, %v287
    %v289 = vpop.f32.mrb[0].mxu0
    %290 = vmatprep.mubr.f32.mxu0 0.0
    %291 = vmatmul.mubr.f32.gmra.mrb[0].mxu0 %v209
    %v292 = vpop.f32.mrb[0].mxu0
    %v293 = vadd.f32 0.0, %v292
    %v294 = vpop.f32.mrb[0].mxu0
    %295 = vdwg.mxu0
    %v296 = vrot.slane %v278, 7
    %v297 = vrot.slane %v283, 7
    %v298 = vrot.slane %v288, 7
    %v299 = vrot.slane %v293, 7
    %vm300 = vcmp.lt.s32.totalorder %v101, 1
    %v301 = vsel %vm300, %v298, %v299
    %v302 = vsel %vm300, %v297, %v298
    %v303 = vsel %vm300, %v296, %v297
    %v304 = vsel %vm300, %v299, %v296
    %v305 = vlaneseq
    %v306 = vshrl.u32 %v305, 7
    %v307 = vsub.s32 0, %v306
    %v308 = vrot.slane %v195, %v307
    %v309 = vadd.f32 %v304, %v308
    %v310 = vadd.f32 %v303, %v308
    %v311 = vadd.f32 %v302, %v308
    %v312 = vadd.f32 %v301, %v308
    %v313 = vsel %vm153, 1, 0
    %v314 = vsel %vm154, 1, 0
    %v315 = vsel %vm155, 1, 0
    %v316 = vsel %vm156, 1, 0
    %vm317 = vcmp.eq.s32.totalorder %v313, 1
    %vm318 = vcmp.eq.s32.totalorder %v314, 1
    %vm319 = vcmp.eq.s32.totalorder %v315, 1
    %vm320 = vcmp.eq.s32.totalorder %v316, 1
    %v321 = vsel %vm317, %v309, 0.0
    %v322 = vsel %vm318, %v310, 0.0
    %v323 = vsel %vm319, %v311, 0.0
    %v324 = vsel %vm320, %v312, 0.0
    %325 = vrot.lane.b32.xlu0 %v278, 96
    %v326 = vpop.permute.xlu0 %325
    %327 = vrot.lane.b32.xlu0 %v283, 96
    %v328 = vpop.permute.xlu0 %327
    %329 = vrot.lane.b32.xlu0 %v288, 96
    %v330 = vpop.permute.xlu0 %329
    %331 = vrot.lane.b32.xlu0 %v293, 96
    %v332 = vpop.permute.xlu0 %331
    %333 = vrot.lane.b32.xlu0 %v278, 64
    %v334 = vpop.permute.xlu0 %333
    %335 = vrot.lane.b32.xlu0 %v283, 64
    %v336 = vpop.permute.xlu0 %335
    %337 = vrot.lane.b32.xlu0 %v288, 64
    %v338 = vpop.permute.xlu0 %337
    %339 = vrot.lane.b32.xlu0 %v293, 64
    %v340 = vpop.permute.xlu0 %339
    %v341 = vrot.slane %v334, 1
    %v342 = vrot.slane %v336, 1
    %v343 = vrot.slane %v338, 1
    %v344 = vrot.slane %v340, 1
    %vm345 = vcmp.lt.s32.totalorder %v101, 7
    %v346 = vsel %vm345, %v343, %v344
    %v347 = vsel %vm345, %v342, %v343
    %v348 = vsel %vm345, %v341, %v342
    %v349 = vsel %vm345, %v344, %v341
    %v350 = vlaneseq
    %v351 = vshrl.u32 %v350, 7
    %v352 = vsub.s32 0, %v351
    %v353 = vrot.slane %v197, %v352
    %v354 = vadd.f32 %v348, %v353
    %v355 = vadd.f32 %v347, %v353
    %v356 = vadd.f32 %v346, %v353
    %v357 = vadd.f32 %v349, %v353
    %v358 = vsel %vm169, 1, 0
    %v359 = vsel %vm170, 1, 0
    %v360 = vsel %vm171, 1, 0
    %v361 = vsel %vm172, 1, 0
    %vm362 = vcmp.eq.s32.totalorder %v358, 1
    %vm363 = vcmp.eq.s32.totalorder %v359, 1
    %vm364 = vcmp.eq.s32.totalorder %v360, 1
    %vm365 = vcmp.eq.s32.totalorder %v361, 1
    %v366 = vsel %vm362, %v354, 0.0
    %v367 = vsel %vm363, %v355, 0.0
    %v368 = vsel %vm364, %v356, 0.0
    %v369 = vsel %vm365, %v357, 0.0
    %vm370 = vcmp.ge.s32.totalorder %v186, 0
    %vm371 = vcmp.lt.s32.totalorder %v186, 32
    %vm372 = vmand %vm370, %vm371
    %v373 = vadd.f32 %v321, %v326
    %v374 = vadd.f32 %v322, %v328
    %v375 = vadd.f32 %v323, %v330
    %v376 = vadd.f32 %v324, %v332
    %v377 = vadd.f32 %v373, %v366
    %v378 = vadd.f32 %v374, %v367
    %v379 = vadd.f32 %v375, %v368
    %v380 = vadd.f32 %v376, %v369
    %v381 = vsel %vm372, 1, 0
    %vm382 = vcmp.eq.s32.totalorder %v381, 1
    %v383 = vsel %vm382, %v377, 0.0
    %v384 = vsel %vm382, %v378, 0.0
    %v385 = vsel %vm382, %v379, 0.0
    %v386 = vsel %vm382, %v380, 0.0
    %v387 = vlaneseq
    %v388 = vshrl.u32 %v387, 7
    %v389 = vsub.s32 0, %v388
    %v390 = vrot.slane %v196, %v389
    %v391 = vadd.f32 %v383, %v390
    %v392 = vadd.f32 %v384, %v390
    %v393 = vadd.f32 %v385, %v390
    %v394 = vadd.f32 %v386, %v390
    %v395 = vld [vmem:[#allocation7] sm:$0x1]
    %v396 = vlaneseq
    %v397 = vshrl.u32 %v396, 7
    %v398 = vsub.s32 0, %v397
    %v399 = vrot.slane %v395, %v398
    %v400 = vmul.f32 %v391, %v399
    %v401 = vmul.f32 %v392, %v399
    %v402 = vmul.f32 %v393, %v399
    %v403 = vmul.f32 %v394, %v399
    %v404 = vld [vmem:[#allocation8] sm:$0x1]
    %v405 = vlaneseq
    %v406 = vshrl.u32 %v405, 7
    %v407 = vsub.s32 0, %v406
    %v408 = vrot.slane %v404, %v407
    %v409 = vadd.f32 %v400, %v408
    %v410 = vadd.f32 %v401, %v408
    %v411 = vadd.f32 %v402, %v408
    %v412 = vadd.f32 %v403, %v408
    %vm413 = vcmp.ge.f32.partialorder %v409, 0.0
    %vm414 = vcmp.ge.f32.partialorder %v410, 0.0
    %vm415 = vcmp.ge.f32.partialorder %v411, 0.0
    %vm416 = vcmp.ge.f32.partialorder %v412, 0.0
    %s417 = sld [smem:[#allocation11]]
    %v418 = vstv %s417
    %v419 = vmul.f32 %v418, %v409
    %v420 = vmul.f32 %v418, %v410
    %v421 = vmul.f32 %v418, %v411
    %v422 = vmul.f32 %v418, %v412
    %v423 = vsel %vm413, %v409, %v419
    %v424 = vsel %vm414, %v410, %v420
    %v425 = vsel %vm415, %v411, %v421
    %v426 = vsel %vm416, %v412, %v422
    %v427 = vld [vmem:[%s5] sm:$0xff]
    %v428 = vld [vmem:[%s5 + $0x8] sm:$0xff]
    %v429 = vld [vmem:[%s5 + $0x10] sm:$0xff]
    %v430 = vld [vmem:[%s5 + $0x18] sm:$0xff]
    %v431 = vld [vmem:[%s5 + $0x20] sm:$0xff]
    %v432 = vld [vmem:[%s5 + $0x28] sm:$0xff]
    %v433 = vld [vmem:[%s5 + $0x30] sm:$0xff]
    %v434 = vld [vmem:[%s5 + $0x38] sm:$0xff]
    %v435 = vld [vmem:[%s5 + $0x40] sm:$0xff]
    %v436 = vld [vmem:[%s5 + $0x48] sm:$0xff]
    %v437 = vld [vmem:[%s5 + $0x50] sm:$0xff]
    %v438 = vld [vmem:[%s5 + $0x58] sm:$0xff]
    %v439 = vld [vmem:[%s5 + $0x60] sm:$0xff]
    %v440 = vld [vmem:[%s5 + $0x68] sm:$0xff]
    %v441 = vld [vmem:[%s5 + $0x70] sm:$0xff]
    %v442 = vld [vmem:[%s5 + $0x78] sm:$0xff]
    %v443 = vld [vmem:[#allocation10] sm:$0x1]
    %444 = vmatprep.subr.mxu0 0.0
    %445 = vmatpush1.msra.mxu0 %v427
    %446 = vmatprep.subr.mxu0 0.0
    %447 = vmatpush1.msra.mxu0 %v428
    %448 = vmatprep.subr.mxu0 0.0
    %449 = vmatpush1.msra.mxu0 %v429
    %450 = vmatprep.subr.mxu0 0.0
    %451 = vmatpush1.msra.mxu0 %v430
    %452 = vmatprep.subr.mxu0 0.0
    %453 = vmatpush1.msra.mxu0 %v431
    %454 = vmatprep.subr.mxu0 0.0
    %455 = vmatpush1.msra.mxu0 %v432
    %456 = vmatprep.subr.mxu0 0.0
    %457 = vmatpush1.msra.mxu0 %v433
    %458 = vmatprep.subr.mxu0 0.0
    %459 = vmatpush1.msra.mxu0 %v434
    %460 = vmatprep.subr.mxu0 0.0
    %461 = vmatpush1.msra.mxu0 %v435
    %462 = vmatprep.subr.mxu0 0.0
    %463 = vmatpush1.msra.mxu0 %v436
    %464 = vmatprep.subr.mxu0 0.0
    %465 = vmatpush1.msra.mxu0 %v437
    %466 = vmatprep.subr.mxu0 0.0
    %467 = vmatpush1.msra.mxu0 %v438
    %468 = vmatprep.subr.mxu0 0.0
    %469 = vmatpush1.msra.mxu0 %v439
    %470 = vmatprep.subr.mxu0 0.0
    %471 = vmatpush1.msra.mxu0 %v440
    %472 = vmatprep.subr.mxu0 0.0
    %473 = vmatpush1.msra.mxu0 %v441
    %474 = vmatprep.subr.mxu0 0.0
    %475 = vmatpush1.msra.mxu0 %v442
    %476 = vmatprep.subr.mxu0 0.0
    %477 = vmatpush1.msra.mxu0 0.0
    %478 = vmatprep.subr.mxu0 0.0
    %479 = vmatpush1.msra.mxu0 0.0
    %480 = vmatprep.subr.mxu0 0.0
    %481 = vmatpush1.msra.mxu0 0.0
    %482 = vmatprep.subr.mxu0 0.0
    %483 = vmatpush1.msra.mxu0 0.0
    %484 = vmatprep.subr.mxu0 0.0
    %485 = vmatpush1.msra.mxu0 0.0
    %486 = vmatprep.subr.mxu0 0.0
    %487 = vmatpush1.msra.mxu0 0.0
    %488 = vmatprep.subr.mxu0 0.0
    %489 = vmatpush1.msra.mxu0 0.0
    %490 = vmatprep.subr.mxu0 0.0
    %491 = vmatpush1.msra.mxu0 0.0
    %492 = vmatprep.subr.mxu0 0.0
    %493 = vmatpush1.msra.mxu0 0.0
    %494 = vmatprep.subr.mxu0 0.0
    %495 = vmatpush1.msra.mxu0 0.0
    %496 = vmatprep.subr.mxu0 0.0
    %497 = vmatpush1.msra.mxu0 0.0
    %498 = vmatprep.subr.mxu0 0.0
    %499 = vmatpush1.msra.mxu0 0.0
    %500 = vmatprep.subr.mxu0 0.0
    %501 = vmatpush1.msra.mxu0 0.0
    %502 = vmatprep.subr.mxu0 0.0
    %503 = vmatpush1.msra.mxu0 0.0
    %504 = vmatprep.subr.mxu0 0.0
    %505 = vmatpush1.msra.mxu0 0.0
    %506 = vmatprep.subr.mxu0 0.0
    %507 = vmatpush1.msra.mxu0 0.0
    %508 = vmatprep.mubr.f32.mxu0 0.0
    %509 = vmatmul.mubr.f32.gmra.mrb[0].mxu0 %v423
    %v510 = vpop.f32.mrb[0].mxu0
    %v511 = vadd.f32 0.0, %v510
    %v512 = vpop.f32.mrb[0].mxu0
    %513 = vmatprep.mubr.f32.mxu0 0.0
    %514 = vmatmul.mubr.f32.gmra.mrb[0].mxu0 %v424
    %v515 = vpop.f32.mrb[0].mxu0
    %v516 = vadd.f32 0.0, %v515
    %v517 = vpop.f32.mrb[0].mxu0
    %518 = vmatprep.mubr.f32.mxu0 0.0
    %519 = vmatmul.mubr.f32.gmra.mrb[0].mxu0 %v425
    %v520 = vpop.f32.mrb[0].mxu0
    %v521 = vadd.f32 0.0, %v520
    %v522 = vpop.f32.mrb[0].mxu0
    %523 = vmatprep.mubr.f32.mxu0 0.0
    %524 = vmatmul.mubr.f32.gmra.mrb[0].mxu0 %v426
    %v525 = vpop.f32.mrb[0].mxu0
    %v526 = vadd.f32 0.0, %v525
    %v527 = vpop.f32.mrb[0].mxu0
    %528 = vdwg.mxu0
    %529 = vrot.lane.b32.xlu0 %v511, 32
    %v530 = vpop.permute.xlu0 %529
    %531 = vrot.lane.b32.xlu0 %v516, 32
    %v532 = vpop.permute.xlu0 %531
    %533 = vrot.lane.b32.xlu0 %v521, 32
    %v534 = vpop.permute.xlu0 %533
    %535 = vrot.lane.b32.xlu0 %v526, 32
    %v536 = vpop.permute.xlu0 %535
    %v537 = vrot.slane %v530, 7
    %v538 = vrot.slane %v532, 7
    %v539 = vrot.slane %v534, 7
    %v540 = vrot.slane %v536, 7
    %v541 = vsel %vm300, %v539, %v540
    %v542 = vsel %vm300, %v538, %v539
    %v543 = vsel %vm300, %v537, %v538
    %v544 = vsel %vm300, %v540, %v537
    %v545 = vsel %vm317, %v544, 0.0
    %v546 = vsel %vm318, %v543, 0.0
    %v547 = vsel %vm319, %v542, 0.0
    %v548 = vsel %vm320, %v541, 0.0
    %549 = vrot.lane.b32.xlu0 %v511, 8
    %v550 = vpop.permute.xlu0 %549
    %551 = vrot.lane.b32.xlu0 %v516, 8
    %v552 = vpop.permute.xlu0 %551
    %553 = vrot.lane.b32.xlu0 %v521, 8
    %v554 = vpop.permute.xlu0 %553
    %555 = vrot.lane.b32.xlu0 %v526, 8
    %v556 = vpop.permute.xlu0 %555
    %557 = vrot.lane.b32.xlu0 %v511, 112
    %v558 = vpop.permute.xlu0 %557
    %559 = vrot.lane.b32.xlu0 %v516, 112
    %v560 = vpop.permute.xlu0 %559
    %561 = vrot.lane.b32.xlu0 %v521, 112
    %v562 = vpop.permute.xlu0 %561
    %563 = vrot.lane.b32.xlu0 %v526, 112
    %v564 = vpop.permute.xlu0 %563
    %v565 = vrot.slane %v558, 1
    %v566 = vrot.slane %v560, 1
    %v567 = vrot.slane %v562, 1
    %v568 = vrot.slane %v564, 1
    %v569 = vsel %vm345, %v567, %v568
    %v570 = vsel %vm345, %v566, %v567
    %v571 = vsel %vm345, %v565, %v566
    %v572 = vsel %vm345, %v568, %v565
    %v573 = vsel %vm362, %v571, 0.0
    %v574 = vsel %vm363, %v570, 0.0
    %v575 = vsel %vm364, %v569, 0.0
    %v576 = vsel %vm365, %v572, 0.0
    %vm577 = vcmp.ge.s32.totalorder %v186, 32
    %vm578 = vcmp.lt.s32.totalorder %v186, 56
    %vm579 = vmand %vm577, %vm578
    %v580 = vadd.f32 %v545, %v550
    %v581 = vadd.f32 %v546, %v552
    %v582 = vadd.f32 %v547, %v554
    %v583 = vadd.f32 %v548, %v556
    %v584 = vadd.f32 %v580, %v573
    %v585 = vadd.f32 %v581, %v574
    %v586 = vadd.f32 %v582, %v575
    %v587 = vadd.f32 %v583, %v576
    %v588 = vsel %vm579, 1, 0
    %vm589 = vcmp.eq.s32.totalorder %v588, 1
    %v590 = vsel %vm589, %v584, 0.0
    %v591 = vsel %vm589, %v585, 0.0
    %v592 = vsel %vm589, %v586, 0.0
    %v593 = vsel %vm589, %v587, 0.0
    %v594 = vlaneseq
    %v595 = vshrl.u32 %v594, 7
    %v596 = vsub.s32 0, %v595
    %v597 = vrot.slane %v443, %v596
    %v598 = vadd.f32 %v590, %v597
    %v599 = vadd.f32 %v591, %v597
    %v600 = vadd.f32 %v592, %v597
    %v601 = vadd.f32 %v593, %v597
    %v602 = vadd.f32 %v391, %v598
    %v603 = vadd.f32 %v392, %v599
    %v604 = vadd.f32 %v393, %v600
    %v605 = vadd.f32 %v394, %v601
    %v606 = vld [vmem:[#allocation7 + $0x1] sm:$0x1]
    %v607 = vlaneseq
    %v608 = vshrl.u32 %v607, 7
    %v609 = vsub.s32 0, %v608
    %v610 = vrot.slane %v606, %v609
    %v611 = vmul.f32 %v602, %v610
    %v612 = vmul.f32 %v603, %v610
    %v613 = vmul.f32 %v604, %v610
    %v614 = vmul.f32 %v605, %v610
    %v615 = vld [vmem:[#allocation8 + $0x1] sm:$0x1]
    %v616 = vlaneseq
    %v617 = vshrl.u32 %v616, 7
    %v618 = vsub.s32 0, %v617
    %v619 = vrot.slane %v615, %v618
    %v620 = vadd.f32 %v611, %v619
    %v621 = vadd.f32 %v612, %v619
    %v622 = vadd.f32 %v613, %v619
    %v623 = vadd.f32 %v614, %v619
    %vm624 = vcmp.ge.f32.partialorder %v620, 0.0
    %vm625 = vcmp.ge.f32.partialorder %v621, 0.0
    %vm626 = vcmp.ge.f32.partialorder %v622, 0.0
    %vm627 = vcmp.ge.f32.partialorder %v623, 0.0
    %s628 = sld [smem:[#allocation11 + $0x1]]
    %v629 = vstv %s628
    %v630 = vmul.f32 %v629, %v620
    %v631 = vmul.f32 %v629, %v621
    %v632 = vmul.f32 %v629, %v622
    %v633 = vmul.f32 %v629, %v623
    %v634 = vsel %vm624, %v620, %v630
    %v635 = vsel %vm625, %v621, %v631
    %v636 = vsel %vm626, %v622, %v632
    %v637 = vsel %vm627, %v623, %v633
    %s638 = scalar_lea.vmem %s5, 128
    %v639 = vld [vmem:[%s638] sm:$0xff]
    %v640 = vld [vmem:[%s638 + $0x8] sm:$0xff]
    %v641 = vld [vmem:[%s638 + $0x10] sm:$0xff]
    %v642 = vld [vmem:[%s638 + $0x18] sm:$0xff]
    %v643 = vld [vmem:[%s638 + $0x20] sm:$0xff]
    %v644 = vld [vmem:[%s638 + $0x28] sm:$0xff]
    %v645 = vld [vmem:[%s638 + $0x30] sm:$0xff]
    %v646 = vld [vmem:[%s638 + $0x38] sm:$0xff]
    %v647 = vld [vmem:[%s638 + $0x40] sm:$0xff]
    %v648 = vld [vmem:[%s638 + $0x48] sm:$0xff]
    %v649 = vld [vmem:[%s638 + $0x50] sm:$0xff]
    %v650 = vld [vmem:[%s638 + $0x58] sm:$0xff]
    %v651 = vld [vmem:[%s638 + $0x60] sm:$0xff]
    %v652 = vld [vmem:[%s638 + $0x68] sm:$0xff]
    %v653 = vld [vmem:[%s638 + $0x70] sm:$0xff]
    %v654 = vld [vmem:[%s638 + $0x78] sm:$0xff]
    %v655 = vld [vmem:[#allocation10 + $0x1] sm:$0x1]
    %656 = vmatprep.subr.mxu0 0.0
    %657 = vmatpush1.msra.mxu0 %v639
    %658 = vmatprep.subr.mxu0 0.0
    %659 = vmatpush1.msra.mxu0 %v640
    %660 = vmatprep.subr.mxu0 0.0
    %661 = vmatpush1.msra.mxu0 %v641
    %662 = vmatprep.subr.mxu0 0.0
    %663 = vmatpush1.msra.mxu0 %v642
    %664 = vmatprep.subr.mxu0 0.0
    %665 = vmatpush1.msra.mxu0 %v643
    %666 = vmatprep.subr.mxu0 0.0
    %667 = vmatpush1.msra.mxu0 %v644
    %668 = vmatprep.subr.mxu0 0.0
    %669 = vmatpush1.msra.mxu0 %v645
    %670 = vmatprep.subr.mxu0 0.0
    %671 = vmatpush1.msra.mxu0 %v646
    %672 = vmatprep.subr.mxu0 0.0
    %673 = vmatpush1.msra.mxu0 %v647
    %674 = vmatprep.subr.mxu0 0.0
    %675 = vmatpush1.msra.mxu0 %v648
    %676 = vmatprep.subr.mxu0 0.0
    %677 = vmatpush1.msra.mxu0 %v649
    %678 = vmatprep.subr.mxu0 0.0
    %679 = vmatpush1.msra.mxu0 %v650
    %680 = vmatprep.subr.mxu0 0.0
    %681 = vmatpush1.msra.mxu0 %v651
    %682 = vmatprep.subr.mxu0 0.0
    %683 = vmatpush1.msra.mxu0 %v652
    %684 = vmatprep.subr.mxu0 0.0
    %685 = vmatpush1.msra.mxu0 %v653
    %686 = vmatprep.subr.mxu0 0.0
    %687 = vmatpush1.msra.mxu0 %v654
    %688 = vmatprep.subr.mxu0 0.0
    %689 = vmatpush1.msra.mxu0 0.0
    %690 = vmatprep.subr.mxu0 0.0
    %691 = vmatpush1.msra.mxu0 0.0
    %692 = vmatprep.subr.mxu0 0.0
    %693 = vmatpush1.msra.mxu0 0.0
    %694 = vmatprep.subr.mxu0 0.0
    %695 = vmatpush1.msra.mxu0 0.0
    %696 = vmatprep.subr.mxu0 0.0
    %697 = vmatpush1.msra.mxu0 0.0
    %698 = vmatprep.subr.mxu0 0.0
    %699 = vmatpush1.msra.mxu0 0.0
    %700 = vmatprep.subr.mxu0 0.0
    %701 = vmatpush1.msra.mxu0 0.0
    %702 = vmatprep.subr.mxu0 0.0
    %703 = vmatpush1.msra.mxu0 0.0
    %704 = vmatprep.subr.mxu0 0.0
    %705 = vmatpush1.msra.mxu0 0.0
    %706 = vmatprep.subr.mxu0 0.0
    %707 = vmatpush1.msra.mxu0 0.0
    %708 = vmatprep.subr.mxu0 0.0
    %709 = vmatpush1.msra.mxu0 0.0
    %710 = vmatprep.subr.mxu0 0.0
    %711 = vmatpush1.msra.mxu0 0.0
    %712 = vmatprep.subr.mxu0 0.0
    %713 = vmatpush1.msra.mxu0 0.0
    %714 = vmatprep.subr.mxu0 0.0
    %715 = vmatpush1.msra.mxu0 0.0
    %716 = vmatprep.subr.mxu0 0.0
    %717 = vmatpush1.msra.mxu0 0.0
    %718 = vmatprep.subr.mxu0 0.0
    %719 = vmatpush1.msra.mxu0 0.0
    %720 = vmatprep.mubr.f32.mxu0 0.0
    %721 = vmatmul.mubr.f32.gmra.mrb[0].mxu0 %v634
    %v722 = vpop.f32.mrb[0].mxu0
    %v723 = vadd.f32 0.0, %v722
    %v724 = vpop.f32.mrb[0].mxu0
    %725 = vmatprep.mubr.f32.mxu0 0.0
    %726 = vmatmul.mubr.f32.gmra.mrb[0].mxu0 %v635
    %v727 = vpop.f32.mrb[0].mxu0
    %v728 = vadd.f32 0.0, %v727
    %v729 = vpop.f32.mrb[0].mxu0
    %730 = vmatprep.mubr.f32.mxu0 0.0
    %731 = vmatmul.mubr.f32.gmra.mrb[0].mxu0 %v636
    %v732 = vpop.f32.mrb[0].mxu0
    %v733 = vadd.f32 0.0, %v732
    %v734 = vpop.f32.mrb[0].mxu0
    %735 = vmatprep.mubr.f32.mxu0 0.0
    %736 = vmatmul.mubr.f32.gmra.mrb[0].mxu0 %v637
    %v737 = vpop.f32.mrb[0].mxu0
    %v738 = vadd.f32 0.0, %v737
    %v739 = vpop.f32.mrb[0].mxu0
    %740 = vdwg.mxu0
    %741 = vrot.lane.b32.xlu0 %v723, 56
    %v742 = vpop.permute.xlu0 %741
    %743 = vrot.lane.b32.xlu0 %v728, 56
    %v744 = vpop.permute.xlu0 %743
    %745 = vrot.lane.b32.xlu0 %v733, 56
    %v746 = vpop.permute.xlu0 %745
    %747 = vrot.lane.b32.xlu0 %v738, 56
    %v748 = vpop.permute.xlu0 %747
    %v749 = vrot.slane %v742, 6
    %v750 = vrot.slane %v744, 6
    %v751 = vrot.slane %v746, 6
    %v752 = vrot.slane %v748, 6
    %vm753 = vcmp.lt.s32.totalorder %v101, 2
    %v754 = vsel %vm753, %v751, %v752
    %v755 = vsel %vm753, %v750, %v751
    %v756 = vsel %vm753, %v749, %v750
    %v757 = vsel %vm753, %v752, %v749
    %v758 = vsel %vm157, 1, 0
    %v759 = vsel %vm158, 1, 0
    %v760 = vsel %vm159, 1, 0
    %v761 = vsel %vm160, 1, 0
    %vm762 = vcmp.eq.s32.totalorder %v758, 1
    %vm763 = vcmp.eq.s32.totalorder %v759, 1
    %vm764 = vcmp.eq.s32.totalorder %v760, 1
    %vm765 = vcmp.eq.s32.totalorder %v761, 1
    %v766 = vsel %vm762, %v757, 0.0
    %v767 = vsel %vm763, %v756, 0.0
    %v768 = vsel %vm764, %v755, 0.0
    %v769 = vsel %vm765, %v754, 0.0
    %770 = vrot.lane.b32.xlu0 %v723, 32
    %v771 = vpop.permute.xlu0 %770
    %772 = vrot.lane.b32.xlu0 %v728, 32
    %v773 = vpop.permute.xlu0 %772
    %774 = vrot.lane.b32.xlu0 %v733, 32
    %v775 = vpop.permute.xlu0 %774
    %776 = vrot.lane.b32.xlu0 %v738, 32
    %v777 = vpop.permute.xlu0 %776
    %778 = vrot.lane.b32.xlu0 %v723, 8
    %v779 = vpop.permute.xlu0 %778
    %780 = vrot.lane.b32.xlu0 %v728, 8
    %v781 = vpop.permute.xlu0 %780
    %782 = vrot.lane.b32.xlu0 %v733, 8
    %v783 = vpop.permute.xlu0 %782
    %784 = vrot.lane.b32.xlu0 %v738, 8
    %v785 = vpop.permute.xlu0 %784
    %v786 = vrot.slane %v779, 2
    %v787 = vrot.slane %v781, 2
    %v788 = vrot.slane %v783, 2
    %v789 = vrot.slane %v785, 2
    %vm790 = vcmp.lt.s32.totalorder %v101, 6
    %v791 = vsel %vm790, %v788, %v789
    %v792 = vsel %vm790, %v787, %v788
    %v793 = vsel %vm790, %v786, %v787
    %v794 = vsel %vm790, %v789, %v786
    %v795 = vsel %vm173, 1, 0
    %v796 = vsel %vm174, 1, 0
    %v797 = vsel %vm175, 1, 0
    %v798 = vsel %vm176, 1, 0
    %vm799 = vcmp.eq.s32.totalorder %v795, 1
    %vm800 = vcmp.eq.s32.totalorder %v796, 1
    %vm801 = vcmp.eq.s32.totalorder %v797, 1
    %vm802 = vcmp.eq.s32.totalorder %v798, 1
    %v803 = vsel %vm799, %v793, 0.0
    %v804 = vsel %vm800, %v792, 0.0
    %v805 = vsel %vm801, %v791, 0.0
    %v806 = vsel %vm802, %v794, 0.0
    %vm807 = vcmp.ge.s32.totalorder %v186, 56
    %vm808 = vcmp.lt.s32.totalorder %v186, 80
    %vm809 = vmand %vm807, %vm808
    %v810 = vadd.f32 %v766, %v771
    %v811 = vadd.f32 %v767, %v773
    %v812 = vadd.f32 %v768, %v775
    %v813 = vadd.f32 %v769, %v777
    %v814 = vadd.f32 %v810, %v803
    %v815 = vadd.f32 %v811, %v804
    %v816 = vadd.f32 %v812, %v805
    %v817 = vadd.f32 %v813, %v806
    %v818 = vsel %vm809, 1, 0
    %vm819 = vcmp.eq.s32.totalorder %v818, 1
    %v820 = vsel %vm819, %v814, 0.0
    %v821 = vsel %vm819, %v815, 0.0
    %v822 = vsel %vm819, %v816, 0.0
    %v823 = vsel %vm819, %v817, 0.0
    %v824 = vlaneseq
    %v825 = vshrl.u32 %v824, 7
    %v826 = vsub.s32 0, %v825
    %v827 = vrot.slane %v655, %v826
    %v828 = vadd.f32 %v820, %v827
    %v829 = vadd.f32 %v821, %v827
    %v830 = vadd.f32 %v822, %v827
    %v831 = vadd.f32 %v823, %v827
    %v832 = vadd.f32 %v602, %v828
    %v833 = vadd.f32 %v603, %v829
    %v834 = vadd.f32 %v604, %v830
    %v835 = vadd.f32 %v605, %v831
    %v836 = vld [vmem:[#allocation7 + $0x2] sm:$0x1]
    %v837 = vlaneseq
    %v838 = vshrl.u32 %v837, 7
    %v839 = vsub.s32 0, %v838
    %v840 = vrot.slane %v836, %v839
    %v841 = vmul.f32 %v832, %v840
    %v842 = vmul.f32 %v833, %v840
    %v843 = vmul.f32 %v834, %v840
    %v844 = vmul.f32 %v835, %v840
    %v845 = vld [vmem:[#allocation8 + $0x2] sm:$0x1]
    %v846 = vlaneseq
    %v847 = vshrl.u32 %v846, 7
    %v848 = vsub.s32 0, %v847
    %v849 = vrot.slane %v845, %v848
    %v850 = vadd.f32 %v841, %v849
    %v851 = vadd.f32 %v842, %v849
    %v852 = vadd.f32 %v843, %v849
    %v853 = vadd.f32 %v844, %v849
    %vm854 = vcmp.ge.f32.partialorder %v850, 0.0
    %vm855 = vcmp.ge.f32.partialorder %v851, 0.0
    %vm856 = vcmp.ge.f32.partialorder %v852, 0.0
    %vm857 = vcmp.ge.f32.partialorder %v853, 0.0
    %s858 = sld [smem:[#allocation11 + $0x2]]
    %v859 = vstv %s858
    %v860 = vmul.f32 %v859, %v850
    %v861 = vmul.f32 %v859, %v851
    %v862 = vmul.f32 %v859, %v852
    %v863 = vmul.f32 %v859, %v853
    %v864 = vsel %vm854, %v850, %v860
    %v865 = vsel %vm855, %v851, %v861
    %v866 = vsel %vm856, %v852, %v862
    %v867 = vsel %vm857, %v853, %v863
    %s868 = scalar_lea.vmem %s5, 256
    %v869 = vld [vmem:[%s868] sm:$0xff]
    %v870 = vld [vmem:[%s868 + $0x8] sm:$0xff]
    %v871 = vld [vmem:[%s868 + $0x10] sm:$0xff]
    %v872 = vld [vmem:[%s868 + $0x18] sm:$0xff]
    %v873 = vld [vmem:[%s868 + $0x20] sm:$0xff]
    %v874 = vld [vmem:[%s868 + $0x28] sm:$0xff]
    %v875 = vld [vmem:[%s868 + $0x30] sm:$0xff]
    %v876 = vld [vmem:[%s868 + $0x38] sm:$0xff]
    %v877 = vld [vmem:[%s868 + $0x40] sm:$0xff]
    %v878 = vld [vmem:[%s868 + $0x48] sm:$0xff]
    %v879 = vld [vmem:[%s868 + $0x50] sm:$0xff]
    %v880 = vld [vmem:[%s868 + $0x58] sm:$0xff]
    %v881 = vld [vmem:[%s868 + $0x60] sm:$0xff]
    %v882 = vld [vmem:[%s868 + $0x68] sm:$0xff]
    %v883 = vld [vmem:[%s868 + $0x70] sm:$0xff]
    %v884 = vld [vmem:[%s868 + $0x78] sm:$0xff]
    %v885 = vld [vmem:[#allocation10 + $0x2] sm:$0x1]
    %886 = vmatprep.subr.mxu0 0.0
    %887 = vmatpush1.msra.mxu0 %v869
    %888 = vmatprep.subr.mxu0 0.0
    %889 = vmatpush1.msra.mxu0 %v870
    %890 = vmatprep.subr.mxu0 0.0
    %891 = vmatpush1.msra.mxu0 %v871
    %892 = vmatprep.subr.mxu0 0.0
    %893 = vmatpush1.msra.mxu0 %v872
    %894 = vmatprep.subr.mxu0 0.0
    %895 = vmatpush1.msra.mxu0 %v873
    %896 = vmatprep.subr.mxu0 0.0
    %897 = vmatpush1.msra.mxu0 %v874
    %898 = vmatprep.subr.mxu0 0.0
    %899 = vmatpush1.msra.mxu0 %v875
    %900 = vmatprep.subr.mxu0 0.0
    %901 = vmatpush1.msra.mxu0 %v876
    %902 = vmatprep.subr.mxu0 0.0
    %903 = vmatpush1.msra.mxu0 %v877
    %904 = vmatprep.subr.mxu0 0.0
    %905 = vmatpush1.msra.mxu0 %v878
    %906 = vmatprep.subr.mxu0 0.0
    %907 = vmatpush1.msra.mxu0 %v879
    %908 = vmatprep.subr.mxu0 0.0
    %909 = vmatpush1.msra.mxu0 %v880
    %910 = vmatprep.subr.mxu0 0.0
    %911 = vmatpush1.msra.mxu0 %v881
    %912 = vmatprep.subr.mxu0 0.0
    %913 = vmatpush1.msra.mxu0 %v882
    %914 = vmatprep.subr.mxu0 0.0
    %915 = vmatpush1.msra.mxu0 %v883
    %916 = vmatprep.subr.mxu0 0.0
    %917 = vmatpush1.msra.mxu0 %v884
    %918 = vmatprep.subr.mxu0 0.0
    %919 = vmatpush1.msra.mxu0 0.0
    %920 = vmatprep.subr.mxu0 0.0
    %921 = vmatpush1.msra.mxu0 0.0
    %922 = vmatprep.subr.mxu0 0.0
    %923 = vmatpush1.msra.mxu0 0.0
    %924 = vmatprep.subr.mxu0 0.0
    %925 = vmatpush1.msra.mxu0 0.0
    %926 = vmatprep.subr.mxu0 0.0
    %927 = vmatpush1.msra.mxu0 0.0
    %928 = vmatprep.subr.mxu0 0.0
    %929 = vmatpush1.msra.mxu0 0.0
    %930 = vmatprep.subr.mxu0 0.0
    %931 = vmatpush1.msra.mxu0 0.0
    %932 = vmatprep.subr.mxu0 0.0
    %933 = vmatpush1.msra.mxu0 0.0
    %934 = vmatprep.subr.mxu0 0.0
    %935 = vmatpush1.msra.mxu0 0.0
    %936 = vmatprep.subr.mxu0 0.0
    %937 = vmatpush1.msra.mxu0 0.0
    %938 = vmatprep.subr.mxu0 0.0
    %939 = vmatpush1.msra.mxu0 0.0
    %940 = vmatprep.subr.mxu0 0.0
    %941 = vmatpush1.msra.mxu0 0.0
    %942 = vmatprep.subr.mxu0 0.0
    %943 = vmatpush1.msra.mxu0 0.0
    %944 = vmatprep.subr.mxu0 0.0
    %945 = vmatpush1.msra.mxu0 0.0
    %946 = vmatprep.subr.mxu0 0.0
    %947 = vmatpush1.msra.mxu0 0.0
    %948 = vmatprep.subr.mxu0 0.0
    %949 = vmatpush1.msra.mxu0 0.0
    %950 = vmatprep.mubr.f32.mxu0 0.0
    %951 = vmatmul.mubr.f32.gmra.mrb[0].mxu0 %v864
    %v952 = vpop.f32.mrb[0].mxu0
    %v953 = vadd.f32 0.0, %v952
    %v954 = vpop.f32.mrb[0].mxu0
    %955 = vmatprep.mubr.f32.mxu0 0.0
    %956 = vmatmul.mubr.f32.gmra.mrb[0].mxu0 %v865
    %v957 = vpop.f32.mrb[0].mxu0
    %v958 = vadd.f32 0.0, %v957
    %v959 = vpop.f32.mrb[0].mxu0
    %960 = vmatprep.mubr.f32.mxu0 0.0
    %961 = vmatmul.mubr.f32.gmra.mrb[0].mxu0 %v866
    %v962 = vpop.f32.mrb[0].mxu0
    %v963 = vadd.f32 0.0, %v962
    %v964 = vpop.f32.mrb[0].mxu0
    %965 = vmatprep.mubr.f32.mxu0 0.0
    %966 = vmatmul.mubr.f32.gmra.mrb[0].mxu0 %v867
    %v967 = vpop.f32.mrb[0].mxu0
    %v968 = vadd.f32 0.0, %v967
    %v969 = vpop.f32.mrb[0].mxu0
    %970 = vdwg.mxu0
    %971 = vrot.lane.b32.xlu0 %v953, 80
    %v972 = vpop.permute.xlu0 %971
    %973 = vrot.lane.b32.xlu0 %v958, 80
    %v974 = vpop.permute.xlu0 %973
    %975 = vrot.lane.b32.xlu0 %v963, 80
    %v976 = vpop.permute.xlu0 %975
    %977 = vrot.lane.b32.xlu0 %v968, 80
    %v978 = vpop.permute.xlu0 %977
    %v979 = vrot.slane %v972, 4
    %v980 = vrot.slane %v974, 4
    %v981 = vrot.slane %v976, 4
    %v982 = vrot.slane %v978, 4
    %vm983 = vcmp.lt.s32.totalorder %v101, 4
    %v984 = vsel %vm983, %v981, %v982
    %v985 = vsel %vm983, %v980, %v981
    %v986 = vsel %vm983, %v979, %v980
    %v987 = vsel %vm983, %v982, %v979
    %v988 = vsel %vm161, 1, 0
    %v989 = vsel %vm162, 1, 0
    %v990 = vsel %vm163, 1, 0
    %v991 = vsel %vm164, 1, 0
    %vm992 = vcmp.eq.s32.totalorder %v988, 1
    %vm993 = vcmp.eq.s32.totalorder %v989, 1
    %vm994 = vcmp.eq.s32.totalorder %v990, 1
    %vm995 = vcmp.eq.s32.totalorder %v991, 1
    %v996 = vsel %vm992, %v987, 0.0
    %v997 = vsel %vm993, %v986, 0.0
    %v998 = vsel %vm994, %v985, 0.0
    %v999 = vsel %vm995, %v984, 0.0
    %1000 = vrot.lane.b32.xlu0 %v953, 56
    %v1001 = vpop.permute.xlu0 %1000
    %1002 = vrot.lane.b32.xlu0 %v958, 56
    %v1003 = vpop.permute.xlu0 %1002
    %1004 = vrot.lane.b32.xlu0 %v963, 56
    %v1005 = vpop.permute.xlu0 %1004
    %1006 = vrot.lane.b32.xlu0 %v968, 56
    %v1007 = vpop.permute.xlu0 %1006
    %1008 = vrot.lane.b32.xlu0 %v953, 32
    %v1009 = vpop.permute.xlu0 %1008
    %1010 = vrot.lane.b32.xlu0 %v958, 32
    %v1011 = vpop.permute.xlu0 %1010
    %1012 = vrot.lane.b32.xlu0 %v963, 32
    %v1013 = vpop.permute.xlu0 %1012
    %1014 = vrot.lane.b32.xlu0 %v968, 32
    %v1015 = vpop.permute.xlu0 %1014
    %v1016 = vrot.slane %v1009, 4
    %v1017 = vrot.slane %v1011, 4
    %v1018 = vrot.slane %v1013, 4
    %v1019 = vrot.slane %v1015, 4
    %v1020 = vsel %vm983, %v1018, %v1019
    %v1021 = vsel %vm983, %v1017, %v1018
    %v1022 = vsel %vm983, %v1016, %v1017
    %v1023 = vsel %vm983, %v1019, %v1016
    %v1024 = vsel %vm177, 1, 0
    %v1025 = vsel %vm178, 1, 0
    %v1026 = vsel %vm179, 1, 0
    %v1027 = vsel %vm180, 1, 0
    %vm1028 = vcmp.eq.s32.totalorder %v1024, 1
    %vm1029 = vcmp.eq.s32.totalorder %v1025, 1
    %vm1030 = vcmp.eq.s32.totalorder %v1026, 1
    %vm1031 = vcmp.eq.s32.totalorder %v1027, 1
    %v1032 = vsel %vm1028, %v1022, 0.0
    %v1033 = vsel %vm1029, %v1021, 0.0
    %v1034 = vsel %vm1030, %v1020, 0.0
    %v1035 = vsel %vm1031, %v1023, 0.0
    %vm1036 = vcmp.ge.s32.totalorder %v186, 80
    %vm1037 = vcmp.lt.s32.totalorder %v186, 104
    %vm1038 = vmand %vm1036, %vm1037
    %v1039 = vadd.f32 %v996, %v1001
    %v1040 = vadd.f32 %v997, %v1003
    %v1041 = vadd.f32 %v998, %v1005
    %v1042 = vadd.f32 %v999, %v1007
    %v1043 = vadd.f32 %v1039, %v1032
    %v1044 = vadd.f32 %v1040, %v1033
    %v1045 = vadd.f32 %v1041, %v1034
    %v1046 = vadd.f32 %v1042, %v1035
    %v1047 = vsel %vm1038, 1, 0
    %vm1048 = vcmp.eq.s32.totalorder %v1047, 1
    %v1049 = vsel %vm1048, %v1043, 0.0
    %v1050 = vsel %vm1048, %v1044, 0.0
    %v1051 = vsel %vm1048, %v1045, 0.0
    %v1052 = vsel %vm1048, %v1046, 0.0
    %v1053 = vlaneseq
    %v1054 = vshrl.u32 %v1053, 7
    %v1055 = vsub.s32 0, %v1054
    %v1056 = vrot.slane %v885, %v1055
    %v1057 = vadd.f32 %v1049, %v1056
    %v1058 = vadd.f32 %v1050, %v1056
    %v1059 = vadd.f32 %v1051, %v1056
    %v1060 = vadd.f32 %v1052, %v1056
    %v1061 = vadd.f32 %v832, %v1057
    %v1062 = vadd.f32 %v833, %v1058
    %v1063 = vadd.f32 %v834, %v1059
    %v1064 = vadd.f32 %v835, %v1060
    %v1065 = vld [vmem:[#allocation7 + $0x3] sm:$0x1]
    %v1066 = vlaneseq
    %v1067 = vshrl.u32 %v1066, 7
    %v1068 = vsub.s32 0, %v1067
    %v1069 = vrot.slane %v1065, %v1068
    %v1070 = vmul.f32 %v1061, %v1069
    %v1071 = vmul.f32 %v1062, %v1069
    %v1072 = vmul.f32 %v1063, %v1069
    %v1073 = vmul.f32 %v1064, %v1069
    %v1074 = vld [vmem:[#allocation8 + $0x3] sm:$0x1]
    %v1075 = vlaneseq
    %v1076 = vshrl.u32 %v1075, 7
    %v1077 = vsub.s32 0, %v1076
    %v1078 = vrot.slane %v1074, %v1077
    %v1079 = vadd.f32 %v1070, %v1078
    %v1080 = vadd.f32 %v1071, %v1078
    %v1081 = vadd.f32 %v1072, %v1078
    %v1082 = vadd.f32 %v1073, %v1078
    %vm1083 = vcmp.ge.f32.partialorder %v1079, 0.0
    %vm1084 = vcmp.ge.f32.partialorder %v1080, 0.0
    %vm1085 = vcmp.ge.f32.partialorder %v1081, 0.0
    %vm1086 = vcmp.ge.f32.partialorder %v1082, 0.0
    %s1087 = sld [smem:[#allocation11 + $0x3]]
    %v1088 = vstv %s1087
    %v1089 = vmul.f32 %v1088, %v1079
    %v1090 = vmul.f32 %v1088, %v1080
    %v1091 = vmul.f32 %v1088, %v1081
    %v1092 = vmul.f32 %v1088, %v1082
    %v1093 = vsel %vm1083, %v1079, %v1089
    %v1094 = vsel %vm1084, %v1080, %v1090
    %v1095 = vsel %vm1085, %v1081, %v1091
    %v1096 = vsel %vm1086, %v1082, %v1092
    %s1097 = scalar_lea.vmem %s5, 384
    %v1098 = vld [vmem:[%s1097] sm:$0xff]
    %v1099 = vld [vmem:[%s1097 + $0x8] sm:$0xff]
    %v1100 = vld [vmem:[%s1097 + $0x10] sm:$0xff]
    %v1101 = vld [vmem:[%s1097 + $0x18] sm:$0xff]
    %v1102 = vld [vmem:[%s1097 + $0x20] sm:$0xff]
    %v1103 = vld [vmem:[%s1097 + $0x28] sm:$0xff]
    %v1104 = vld [vmem:[%s1097 + $0x30] sm:$0xff]
    %v1105 = vld [vmem:[%s1097 + $0x38] sm:$0xff]
    %v1106 = vld [vmem:[%s1097 + $0x40] sm:$0xff]
    %v1107 = vld [vmem:[%s1097 + $0x48] sm:$0xff]
    %v1108 = vld [vmem:[%s1097 + $0x50] sm:$0xff]
    %v1109 = vld [vmem:[%s1097 + $0x58] sm:$0xff]
    %v1110 = vld [vmem:[%s1097 + $0x60] sm:$0xff]
    %v1111 = vld [vmem:[%s1097 + $0x68] sm:$0xff]
    %v1112 = vld [vmem:[%s1097 + $0x70] sm:$0xff]
    %v1113 = vld [vmem:[%s1097 + $0x78] sm:$0xff]
    %v1114 = vld [vmem:[#allocation10 + $0x3] sm:$0x1]
    %1115 = vmatprep.subr.mxu0 0.0
    %1116 = vmatpush1.msra.mxu0 %v1098
    %1117 = vmatprep.subr.mxu0 0.0
    %1118 = vmatpush1.msra.mxu0 %v1099
    %1119 = vmatprep.subr.mxu0 0.0
    %1120 = vmatpush1.msra.mxu0 %v1100
    %1121 = vmatprep.subr.mxu0 0.0
    %1122 = vmatpush1.msra.mxu0 %v1101
    %1123 = vmatprep.subr.mxu0 0.0
    %1124 = vmatpush1.msra.mxu0 %v1102
    %1125 = vmatprep.subr.mxu0 0.0
    %1126 = vmatpush1.msra.mxu0 %v1103
    %1127 = vmatprep.subr.mxu0 0.0
    %1128 = vmatpush1.msra.mxu0 %v1104
    %1129 = vmatprep.subr.mxu0 0.0
    %1130 = vmatpush1.msra.mxu0 %v1105
    %1131 = vmatprep.subr.mxu0 0.0
    %1132 = vmatpush1.msra.mxu0 %v1106
    %1133 = vmatprep.subr.mxu0 0.0
    %1134 = vmatpush1.msra.mxu0 %v1107
    %1135 = vmatprep.subr.mxu0 0.0
    %1136 = vmatpush1.msra.mxu0 %v1108
    %1137 = vmatprep.subr.mxu0 0.0
    %1138 = vmatpush1.msra.mxu0 %v1109
    %1139 = vmatprep.subr.mxu0 0.0
    %1140 = vmatpush1.msra.mxu0 %v1110
    %1141 = vmatprep.subr.mxu0 0.0
    %1142 = vmatpush1.msra.mxu0 %v1111
    %1143 = vmatprep.subr.mxu0 0.0
    %1144 = vmatpush1.msra.mxu0 %v1112
    %1145 = vmatprep.subr.mxu0 0.0
    %1146 = vmatpush1.msra.mxu0 %v1113
    %1147 = vmatprep.subr.mxu0 0.0
    %1148 = vmatpush1.msra.mxu0 0.0
    %1149 = vmatprep.subr.mxu0 0.0
    %1150 = vmatpush1.msra.mxu0 0.0
    %1151 = vmatprep.subr.mxu0 0.0
    %1152 = vmatpush1.msra.mxu0 0.0
    %1153 = vmatprep.subr.mxu0 0.0
    %1154 = vmatpush1.msra.mxu0 0.0
    %1155 = vmatprep.subr.mxu0 0.0
    %1156 = vmatpush1.msra.mxu0 0.0
    %1157 = vmatprep.subr.mxu0 0.0
    %1158 = vmatpush1.msra.mxu0 0.0
    %1159 = vmatprep.subr.mxu0 0.0
    %1160 = vmatpush1.msra.mxu0 0.0
    %1161 = vmatprep.subr.mxu0 0.0
    %1162 = vmatpush1.msra.mxu0 0.0
    %1163 = vmatprep.subr.mxu0 0.0
    %1164 = vmatpush1.msra.mxu0 0.0
    %1165 = vmatprep.subr.mxu0 0.0
    %1166 = vmatpush1.msra.mxu0 0.0
    %1167 = vmatprep.subr.mxu0 0.0
    %1168 = vmatpush1.msra.mxu0 0.0
    %1169 = vmatprep.subr.mxu0 0.0
    %1170 = vmatpush1.msra.mxu0 0.0
    %1171 = vmatprep.subr.mxu0 0.0
    %1172 = vmatpush1.msra.mxu0 0.0
    %1173 = vmatprep.subr.mxu0 0.0
    %1174 = vmatpush1.msra.mxu0 0.0
    %1175 = vmatprep.subr.mxu0 0.0
    %1176 = vmatpush1.msra.mxu0 0.0
    %1177 = vmatprep.subr.mxu0 0.0
    %1178 = vmatpush1.msra.mxu0 0.0
    %1179 = vmatprep.mubr.f32.mxu0 0.0
    %1180 = vmatmul.mubr.f32.gmra.mrb[0].mxu0 %v1093
    %v1181 = vpop.f32.mrb[0].mxu0
    %v1182 = vadd.f32 0.0, %v1181
    %v1183 = vpop.f32.mrb[0].mxu0
    %1184 = vmatprep.mubr.f32.mxu0 0.0
    %1185 = vmatmul.mubr.f32.gmra.mrb[0].mxu0 %v1094
    %v1186 = vpop.f32.mrb[0].mxu0
    %v1187 = vadd.f32 0.0, %v1186
    %v1188 = vpop.f32.mrb[0].mxu0
    %1189 = vmatprep.mubr.f32.mxu0 0.0
    %1190 = vmatmul.mubr.f32.gmra.mrb[0].mxu0 %v1095
    %v1191 = vpop.f32.mrb[0].mxu0
    %v1192 = vadd.f32 0.0, %v1191
    %v1193 = vpop.f32.mrb[0].mxu0
    %1194 = vmatprep.mubr.f32.mxu0 0.0
    %1195 = vmatmul.mubr.f32.gmra.mrb[0].mxu0 %v1096
    %v1196 = vpop.f32.mrb[0].mxu0
    %v1197 = vadd.f32 0.0, %v1196
    %v1198 = vpop.f32.mrb[0].mxu0
    %1199 = vdwg.mxu0
    %1200 = vrot.lane.b32.xlu0 %v1182, 104
    %v1201 = vpop.permute.xlu0 %1200
    %1202 = vrot.lane.b32.xlu0 %v1187, 104
    %v1203 = vpop.permute.xlu0 %1202
    %1204 = vrot.lane.b32.xlu0 %v1192, 104
    %v1205 = vpop.permute.xlu0 %1204
    %1206 = vrot.lane.b32.xlu0 %v1197, 104
    %v1207 = vpop.permute.xlu0 %1206
    %v1208 = vsel %vm165, 1, 0
    %v1209 = vsel %vm166, 1, 0
    %v1210 = vsel %vm167, 1, 0
    %v1211 = vsel %vm168, 1, 0
    %vm1212 = vcmp.eq.s32.totalorder %v1208, 1
    %vm1213 = vcmp.eq.s32.totalorder %v1209, 1
    %vm1214 = vcmp.eq.s32.totalorder %v1210, 1
    %vm1215 = vcmp.eq.s32.totalorder %v1211, 1
    %v1216 = vsel %vm1212, %v1207, 0.0
    %v1217 = vsel %vm1213, %v1201, 0.0
    %v1218 = vsel %vm1214, %v1203, 0.0
    %v1219 = vsel %vm1215, %v1205, 0.0
    %1220 = vrot.lane.b32.xlu0 %v1182, 80
    %v1221 = vpop.permute.xlu0 %1220
    %1222 = vrot.lane.b32.xlu0 %v1187, 80
    %v1223 = vpop.permute.xlu0 %1222
    %1224 = vrot.lane.b32.xlu0 %v1192, 80
    %v1225 = vpop.permute.xlu0 %1224
    %1226 = vrot.lane.b32.xlu0 %v1197, 80
    %v1227 = vpop.permute.xlu0 %1226
    %1228 = vrot.lane.b32.xlu0 %v1182, 56
    %v1229 = vpop.permute.xlu0 %1228
    %1230 = vrot.lane.b32.xlu0 %v1187, 56
    %v1231 = vpop.permute.xlu0 %1230
    %1232 = vrot.lane.b32.xlu0 %v1192, 56
    %v1233 = vpop.permute.xlu0 %1232
    %1234 = vrot.lane.b32.xlu0 %v1197, 56
    %v1235 = vpop.permute.xlu0 %1234
    %v1236 = vsel %vm181, 1, 0
    %v1237 = vsel %vm182, 1, 0
    %v1238 = vsel %vm183, 1, 0
    %v1239 = vsel %vm184, 1, 0
    %vm1240 = vcmp.eq.s32.totalorder %v1236, 1
    %vm1241 = vcmp.eq.s32.totalorder %v1237, 1
    %vm1242 = vcmp.eq.s32.totalorder %v1238, 1
    %vm1243 = vcmp.eq.s32.totalorder %v1239, 1
    %v1244 = vsel %vm1240, %v1231, 0.0
    %v1245 = vsel %vm1241, %v1233, 0.0
    %v1246 = vsel %vm1242, %v1235, 0.0
    %v1247 = vsel %vm1243, %v1229, 0.0
    %vm1248 = vcmp.ge.s32.totalorder %v186, 104
    %vm1249 = vcmp.lt.s32.totalorder %v186, 128
    %vm1250 = vmand %vm1248, %vm1249
    %v1251 = vadd.f32 %v1216, %v1221
    %v1252 = vadd.f32 %v1217, %v1223
    %v1253 = vadd.f32 %v1218, %v1225
    %v1254 = vadd.f32 %v1219, %v1227
    %v1255 = vadd.f32 %v1251, %v1244
    %v1256 = vadd.f32 %v1252, %v1245
    %v1257 = vadd.f32 %v1253, %v1246
    %v1258 = vadd.f32 %v1254, %v1247
    %v1259 = vsel %vm1250, 1, 0
    %vm1260 = vcmp.eq.s32.totalorder %v1259, 1
    %v1261 = vsel %vm1260, %v1255, 0.0
    %v1262 = vsel %vm1260, %v1256, 0.0
    %v1263 = vsel %vm1260, %v1257, 0.0
    %v1264 = vsel %vm1260, %v1258, 0.0
    %v1265 = vlaneseq
    %v1266 = vshrl.u32 %v1265, 7
    %v1267 = vsub.s32 0, %v1266
    %v1268 = vrot.slane %v1114, %v1267
    %v1269 = vadd.f32 %v1261, %v1268
    %v1270 = vadd.f32 %v1262, %v1268
    %v1271 = vadd.f32 %v1263, %v1268
    %v1272 = vadd.f32 %v1264, %v1268
    %v1273 = vadd.f32 %v1061, %v1269
    %v1274 = vadd.f32 %v1062, %v1270
    %v1275 = vadd.f32 %v1063, %v1271
    %v1276 = vadd.f32 %v1064, %v1272
    %v1277 = vld [vmem:[#allocation7 + $0x4] sm:$0x1]
    %v1278 = vlaneseq
    %v1279 = vshrl.u32 %v1278, 7
    %v1280 = vsub.s32 0, %v1279
    %v1281 = vrot.slane %v1277, %v1280
    %v1282 = vmul.f32 %v1273, %v1281
    %v1283 = vmul.f32 %v1274, %v1281
    %v1284 = vmul.f32 %v1275, %v1281
    %v1285 = vmul.f32 %v1276, %v1281
    %v1286 = vld [vmem:[#allocation8 + $0x4] sm:$0x1]
    %v1287 = vlaneseq
    %v1288 = vshrl.u32 %v1287, 7
    %v1289 = vsub.s32 0, %v1288
    %v1290 = vrot.slane %v1286, %v1289
    %v1291 = vadd.f32 %v1282, %v1290
    %v1292 = vadd.f32 %v1283, %v1290
    %v1293 = vadd.f32 %v1284, %v1290
    %v1294 = vadd.f32 %v1285, %v1290
    %vm1295 = vcmp.ge.f32.partialorder %v1291, 0.0
    %vm1296 = vcmp.ge.f32.partialorder %v1292, 0.0
    %vm1297 = vcmp.ge.f32.partialorder %v1293, 0.0
    %vm1298 = vcmp.ge.f32.partialorder %v1294, 0.0
    %s1299 = sld [smem:[#allocation11 + $0x4]]
    %v1300 = vstv %s1299
    %v1301 = vmul.f32 %v1300, %v1291
    %v1302 = vmul.f32 %v1300, %v1292
    %v1303 = vmul.f32 %v1300, %v1293
    %v1304 = vmul.f32 %v1300, %v1294
    %v1305 = vsel %vm1295, %v1291, %v1301
    %v1306 = vsel %vm1296, %v1292, %v1302
    %v1307 = vsel %vm1297, %v1293, %v1303
    %v1308 = vsel %vm1298, %v1294, %v1304
    %v1309 = vmax.f32 %v1305, %v1306
    %v1310 = vrot.slane %v1309, 4
    %v1311 = vmax.f32 %v1309, %v1310
    %v1312 = vrot.slane %v1311, 2
    %v1313 = vmax.f32 %v1311, %v1312
    %v1314 = vrot.slane %v1313, 1
    %v1315 = vmax.f32 %v1313, %v1314
    %v1316 = vmax.f32 %v1307, %v1308
    %v1317 = vrot.slane %v1316, 4
    %v1318 = vmax.f32 %v1316, %v1317
    %v1319 = vrot.slane %v1318, 2
    %v1320 = vmax.f32 %v1318, %v1319
    %v1321 = vrot.slane %v1320, 1
    %v1322 = vmax.f32 %v1320, %v1321
    %vm1325 = vcmask 1041409
    %v1326 = vsel %vm1325, %v1322, %v1315
    %1328 = vst [vmem:[%s8] sm:$0x3] %v1326
    // Predicated region
    $region58: #{forward.4} parent=1 // pred_check
      _
    $region59: #{forward.4} parent=1 // pred_check_branch
      %1330 = sbr.rel (0) target = $region61
    $region60: #{forward.4} parent=1 // pred_region
      _
    $region61: #{forward.4} parent=1 // pred_fallthru
      _
    // Predicated region
    $region62: #{forward.4} parent=1 // pred_check
      _
    $region63: #{forward.4} parent=1 // pred_check_branch
      %1332 = sbr.rel (0) target = $region65
    $region64: #{forward.4} parent=1 // pred_region
      _
    $region65: #{forward.4} parent=1 // pred_fallthru
      _
    %1333 = vsyncpa [#allocation3], 1
    %1334 = vsyncpa [#allocation6], 1
    %1335 = vsyncpa [#allocation9], 1
    %1336 = vsyncpa [#allocation4], 1

// kernel: forward.7
$region0: #{forward.7}
  #allocation0 [shape = 'u32[]', space=smem, size = 0x4, offset = 0x4, fixed_abs, tag = 'smem constant byte address 0x4 - core index']
  #allocation1 [shape = 'u32[144,128]{1,0:T(1,128)}', space=vmem, size = 0x12000, scoped, tag = 'internal scratch']
  #allocation2 [shape = 'f32[1,1]{1,0:T(1,128)S(1)}', space=vmem, size = 0x200, scoped, tag = 'scoped memory for forward.7']
  %s0 = inlined_call_operand.vmem [shape: f32[2,128], index: 0, kind: input, shape index: {}]
  %s1 = inlined_call_operand.vmem [shape: f32[2,128], index: 1, kind: input, shape index: {}]
  %s2 = inlined_call_operand.vmem [shape: f32[2,128], index: 2, kind: input, shape index: {}]
  %s3 = inlined_call_operand.vmem [shape: f32[128,128], index: 3, kind: input, shape index: {}]
  %s4 = inlined_call_operand.vmem [shape: f32[128,128], index: 4, kind: input, shape index: {}]
  %s5 = inlined_call_operand.vmem [shape: f32[128,128], index: 5, kind: input, shape index: {}]
  %s6 = inlined_call_operand.vmem [shape: f32[1,128], index: 6, kind: input, shape index: {}]
  %s7 = inlined_call_operand.vmem [shape: f32[128,64], index: 7, kind: input, shape index: {}]
  %s8 = inlined_call_operand.vmem [shape: f32[1,64], index: 8, kind: input, shape index: {}]
  %s9 = inlined_call_operand.vmem [shape: f32[64,1], index: 9, kind: input, shape index: {}]
  %s10 = inlined_call_operand.<no memory space> [shape: f32[1,1], index: 10, kind: input, shape index: {}]
  %s11 = inlined_call_operand.vmem [shape: f32[2], index: 11, kind: input, shape index: {}]
  %s12 = inlined_call_operand.vmem [shape: f32[2,1], index: 12, kind: output, shape index: {}]
  %s13 = sld [smem:[#allocation0]]
  $region62: #{forward.7} parent=0
    _
  %s15 = ssub.s32 1, %s13
  %s16 = scalar_select 0, %s15, %s13
  %v17 = vstv %s10
  %18 = vst [vmem:[#allocation2] sm:$0x1] %v17
  $region1: #{forward.7} parent=0
    #allocation3 [shape = 'u8[512]{0}', space=smem, size = 0x200, scoped, tag = 'input window, operand 11, single buffered']
    #allocation4 [shape = 's32[1]{0}', space=sflag, size = 0x4, scoped, tag = 'scoped memory for forward.7']
    %19 = vsyncpa [#allocation4], 0
    // Predicated region
    $region2: #{forward.7} parent=1 // pred_check
      _
    $region3: #{forward.7} parent=1 // pred_check_branch
      %21 = sbr.rel (0) target = $region5
    $region4: #{forward.7} parent=1 // pred_region
      _
    $region5: #{forward.7} parent=1 // pred_fallthru
      _
    // Predicated region
    $region6: #{forward.7} parent=1 // pred_check
      _
    $region7: #{forward.7} parent=1 // pred_check_branch
      %23 = sbr.rel (0) target = $region9
    $region8: #{forward.7} parent=1 // pred_region
      _
    $region9: #{forward.7} parent=1 // pred_fallthru
      _
    // Predicated region
    $region10: #{forward.7} parent=1 // pred_check
      _
    $region11: #{forward.7} parent=1 // pred_check_branch
      %25 = sbr.rel (0) target = $region13
    $region12: #{forward.7} parent=1 // pred_region
      _
    $region13: #{forward.7} parent=1 // pred_fallthru
      _
    // Predicated region
    $region14: #{forward.7} parent=1 // pred_check
      _
    $region15: #{forward.7} parent=1 // pred_check_branch
      %27 = sbr.rel (0) target = $region17
    $region16: #{forward.7} parent=1 // pred_region
      _
    $region17: #{forward.7} parent=1 // pred_fallthru
      _
    // Predicated region
    $region18: #{forward.7} parent=1 // pred_check
      _
    $region19: #{forward.7} parent=1 // pred_check_branch
      %29 = sbr.rel (0) target = $region21
    $region20: #{forward.7} parent=1 // pred_region
      _
    $region21: #{forward.7} parent=1 // pred_fallthru
      _
    // Predicated region
    $region22: #{forward.7} parent=1 // pred_check
      _
    $region23: #{forward.7} parent=1 // pred_check_branch
      %31 = sbr.rel (0) target = $region25
    $region24: #{forward.7} parent=1 // pred_region
      _
    $region25: #{forward.7} parent=1 // pred_fallthru
      _
    // Predicated region
    $region26: #{forward.7} parent=1 // pred_check
      _
    $region27: #{forward.7} parent=1 // pred_check_branch
      %33 = sbr.rel (0) target = $region29
    $region28: #{forward.7} parent=1 // pred_region
      _
    $region29: #{forward.7} parent=1 // pred_fallthru
      _
    // Predicated region
    $region30: #{forward.7} parent=1 // pred_check
      _
    $region31: #{forward.7} parent=1 // pred_check_branch
      %35 = sbr.rel (0) target = $region33
    $region32: #{forward.7} parent=1 // pred_region
      _
    $region33: #{forward.7} parent=1 // pred_fallthru
      _
    // Predicated region
    $region34: #{forward.7} parent=1 // pred_check
      _
    $region35: #{forward.7} parent=1 // pred_check_branch
      %37 = sbr.rel (0) target = $region37
    $region36: #{forward.7} parent=1 // pred_region
      _
    $region37: #{forward.7} parent=1 // pred_fallthru
      _
    // Predicated region
    $region38: #{forward.7} parent=1 // pred_check
      _
    $region39: #{forward.7} parent=1 // pred_check_branch
      %39 = sbr.rel (0) target = $region41
    $region40: #{forward.7} parent=1 // pred_region
      _
    $region41: #{forward.7} parent=1 // pred_fallthru
      _
    // Predicated region
    $region42: #{forward.7} parent=1 // pred_check
      _
    $region43: #{forward.7} parent=1 // pred_check_branch
      %41 = sbr.rel (0) target = $region45
    $region44: #{forward.7} parent=1 // pred_region
      _
    $region45: #{forward.7} parent=1 // pred_fallthru
      _
    // Predicated region
    $region46: #{forward.7} parent=1 // pred_check
      _
    $region47: #{forward.7} parent=1 // pred_check_branch
      %43 = sbr.rel (0) target = $region49
    $region48: #{forward.7} parent=1 // pred_region
      %s45 = ssub.s32 16, 16
      %46 = vsyncadd [#allocation4], %s45
      %s48 = sshll.u32 %s11, 4
      %s49 = int_to_ptr.vmem [resolvable:$true] %s48
      %51 = dma.vmem_to_smem %s49, 16, [#allocation3], [#allocation4]
    $region49: #{forward.7} parent=1 // pred_fallthru
      _
    // Predicated region
    $region50: #{forward.7} parent=1 // pred_check
      _
    $region51: #{forward.7} parent=1 // pred_check_branch
      %53 = sbr.rel (0) target = $region53
    $region52: #{forward.7} parent=1 // pred_region
      %54 = dma.done [#allocation4], 16
    $region53: #{forward.7} parent=1 // pred_fallthru
      _
    %55 = sfence
    %v56 = vld [vmem:[%s0] sm:$0x3]
    %v57 = vld [vmem:[%s3] sm:$0xff]
    %v58 = vld [vmem:[%s3 + $0x8] sm:$0xff]
    %v59 = vld [vmem:[%s3 + $0x10] sm:$0xff]
    %v60 = vld [vmem:[%s3 + $0x18] sm:$0xff]
    %v61 = vld [vmem:[%s3 + $0x20] sm:$0xff]
    %v62 = vld [vmem:[%s3 + $0x28] sm:$0xff]
    %v63 = vld [vmem:[%s3 + $0x30] sm:$0xff]
    %v64 = vld [vmem:[%s3 + $0x38] sm:$0xff]
    %v65 = vld [vmem:[%s3 + $0x40] sm:$0xff]
    %v66 = vld [vmem:[%s3 + $0x48] sm:$0xff]
    %v67 = vld [vmem:[%s3 + $0x50] sm:$0xff]
    %v68 = vld [vmem:[%s3 + $0x58] sm:$0xff]
    %v69 = vld [vmem:[%s3 + $0x60] sm:$0xff]
    %v70 = vld [vmem:[%s3 + $0x68] sm:$0xff]
    %v71 = vld [vmem:[%s3 + $0x70] sm:$0xff]
    %v72 = vld [vmem:[%s3 + $0x78] sm:$0xff]
    %v73 = vld [vmem:[%s1] sm:$0x3]
    %v74 = vld [vmem:[%s4] sm:$0xff]
    %v75 = vld [vmem:[%s4 + $0x8] sm:$0xff]
    %v76 = vld [vmem:[%s4 + $0x10] sm:$0xff]
    %v77 = vld [vmem:[%s4 + $0x18] sm:$0xff]
    %v78 = vld [vmem:[%s4 + $0x20] sm:$0xff]
    %v79 = vld [vmem:[%s4 + $0x28] sm:$0xff]
    %v80 = vld [vmem:[%s4 + $0x30] sm:$0xff]
    %v81 = vld [vmem:[%s4 + $0x38] sm:$0xff]
    %v82 = vld [vmem:[%s4 + $0x40] sm:$0xff]
    %v83 = vld [vmem:[%s4 + $0x48] sm:$0xff]
    %v84 = vld [vmem:[%s4 + $0x50] sm:$0xff]
    %v85 = vld [vmem:[%s4 + $0x58] sm:$0xff]
    %v86 = vld [vmem:[%s4 + $0x60] sm:$0xff]
    %v87 = vld [vmem:[%s4 + $0x68] sm:$0xff]
    %v88 = vld [vmem:[%s4 + $0x70] sm:$0xff]
    %v89 = vld [vmem:[%s4 + $0x78] sm:$0xff]
    %90 = vmatprep.subr.mxu0 0.0
    %91 = vmatpush1.msra.mxu0 %v74
    %92 = vmatprep.subr.mxu0 0.0
    %93 = vmatpush1.msra.mxu0 %v75
    %94 = vmatprep.subr.mxu0 0.0
    %95 = vmatpush1.msra.mxu0 %v76
    %96 = vmatprep.subr.mxu0 0.0
    %97 = vmatpush1.msra.mxu0 %v77
    %98 = vmatprep.subr.mxu0 0.0
    %99 = vmatpush1.msra.mxu0 %v78
    %100 = vmatprep.subr.mxu0 0.0
    %101 = vmatpush1.msra.mxu0 %v79
    %102 = vmatprep.subr.mxu0 0.0
    %103 = vmatpush1.msra.mxu0 %v80
    %104 = vmatprep.subr.mxu0 0.0
    %105 = vmatpush1.msra.mxu0 %v81
    %106 = vmatprep.subr.mxu0 0.0
    %107 = vmatpush1.msra.mxu0 %v82
    %108 = vmatprep.subr.mxu0 0.0
    %109 = vmatpush1.msra.mxu0 %v83
    %110 = vmatprep.subr.mxu0 0.0
    %111 = vmatpush1.msra.mxu0 %v84
    %112 = vmatprep.subr.mxu0 0.0
    %113 = vmatpush1.msra.mxu0 %v85
    %114 = vmatprep.subr.mxu0 0.0
    %115 = vmatpush1.msra.mxu0 %v86
    %116 = vmatprep.subr.mxu0 0.0
    %117 = vmatpush1.msra.mxu0 %v87
    %118 = vmatprep.subr.mxu0 0.0
    %119 = vmatpush1.msra.mxu0 %v88
    %120 = vmatprep.subr.mxu0 0.0
    %121 = vmatpush1.msra.mxu0 %v89
    %122 = vmatprep.subr.mxu0 0.0
    %123 = vmatpush1.msra.mxu0 0.0
    %124 = vmatprep.subr.mxu0 0.0
    %125 = vmatpush1.msra.mxu0 0.0
    %126 = vmatprep.subr.mxu0 0.0
    %127 = vmatpush1.msra.mxu0 0.0
    %128 = vmatprep.subr.mxu0 0.0
    %129 = vmatpush1.msra.mxu0 0.0
    %130 = vmatprep.subr.mxu0 0.0
    %131 = vmatpush1.msra.mxu0 0.0
    %132 = vmatprep.subr.mxu0 0.0
    %133 = vmatpush1.msra.mxu0 0.0
    %134 = vmatprep.subr.mxu0 0.0
    %135 = vmatpush1.msra.mxu0 0.0
    %136 = vmatprep.subr.mxu0 0.0
    %137 = vmatpush1.msra.mxu0 0.0
    %138 = vmatprep.subr.mxu0 0.0
    %139 = vmatpush1.msra.mxu0 0.0
    %140 = vmatprep.subr.mxu0 0.0
    %141 = vmatpush1.msra.mxu0 0.0
    %142 = vmatprep.subr.mxu0 0.0
    %143 = vmatpush1.msra.mxu0 0.0
    %144 = vmatprep.subr.mxu0 0.0
    %145 = vmatpush1.msra.mxu0 0.0
    %146 = vmatprep.subr.mxu0 0.0
    %147 = vmatpush1.msra.mxu0 0.0
    %148 = vmatprep.subr.mxu0 0.0
    %149 = vmatpush1.msra.mxu0 0.0
    %150 = vmatprep.subr.mxu0 0.0
    %151 = vmatpush1.msra.mxu0 0.0
    %152 = vmatprep.subr.mxu0 0.0
    %153 = vmatpush1.msra.mxu0 0.0
    %154 = vmatprep.mubr.f32.mxu0 0.0
    %155 = vmatmul.mubr.f32.gmra.mrb[0].mxu0 %v73
    %v156 = vpop.f32.mrb[0].mxu0
    %v157 = vadd.f32 0.0, %v156
    %v158 = vpop.f32.mrb[0].mxu0
    %159 = vdwg.mxu0
    %160 = vmatprep.subr.mxu0 0.0
    %161 = vmatpush1.msra.mxu0 %v57
    %162 = vmatprep.subr.mxu0 0.0
    %163 = vmatpush1.msra.mxu0 %v58
    %164 = vmatprep.subr.mxu0 0.0
    %165 = vmatpush1.msra.mxu0 %v59
    %166 = vmatprep.subr.mxu0 0.0
    %167 = vmatpush1.msra.mxu0 %v60
    %168 = vmatprep.subr.mxu0 0.0
    %169 = vmatpush1.msra.mxu0 %v61
    %170 = vmatprep.subr.mxu0 0.0
    %171 = vmatpush1.msra.mxu0 %v62
    %172 = vmatprep.subr.mxu0 0.0
    %173 = vmatpush1.msra.mxu0 %v63
    %174 = vmatprep.subr.mxu0 0.0
    %175 = vmatpush1.msra.mxu0 %v64
    %176 = vmatprep.subr.mxu0 0.0
    %177 = vmatpush1.msra.mxu0 %v65
    %178 = vmatprep.subr.mxu0 0.0
    %179 = vmatpush1.msra.mxu0 %v66
    %180 = vmatprep.subr.mxu0 0.0
    %181 = vmatpush1.msra.mxu0 %v67
    %182 = vmatprep.subr.mxu0 0.0
    %183 = vmatpush1.msra.mxu0 %v68
    %184 = vmatprep.subr.mxu0 0.0
    %185 = vmatpush1.msra.mxu0 %v69
    %186 = vmatprep.subr.mxu0 0.0
    %187 = vmatpush1.msra.mxu0 %v70
    %188 = vmatprep.subr.mxu0 0.0
    %189 = vmatpush1.msra.mxu0 %v71
    %190 = vmatprep.subr.mxu0 0.0
    %191 = vmatpush1.msra.mxu0 %v72
    %192 = vmatprep.subr.mxu0 0.0
    %193 = vmatpush1.msra.mxu0 0.0
    %194 = vmatprep.subr.mxu0 0.0
    %195 = vmatpush1.msra.mxu0 0.0
    %196 = vmatprep.subr.mxu0 0.0
    %197 = vmatpush1.msra.mxu0 0.0
    %198 = vmatprep.subr.mxu0 0.0
    %199 = vmatpush1.msra.mxu0 0.0
    %200 = vmatprep.subr.mxu0 0.0
    %201 = vmatpush1.msra.mxu0 0.0
    %202 = vmatprep.subr.mxu0 0.0
    %203 = vmatpush1.msra.mxu0 0.0
    %204 = vmatprep.subr.mxu0 0.0
    %205 = vmatpush1.msra.mxu0 0.0
    %206 = vmatprep.subr.mxu0 0.0
    %207 = vmatpush1.msra.mxu0 0.0
    %208 = vmatprep.subr.mxu0 0.0
    %209 = vmatpush1.msra.mxu0 0.0
    %210 = vmatprep.subr.mxu0 0.0
    %211 = vmatpush1.msra.mxu0 0.0
    %212 = vmatprep.subr.mxu0 0.0
    %213 = vmatpush1.msra.mxu0 0.0
    %214 = vmatprep.subr.mxu0 0.0
    %215 = vmatpush1.msra.mxu0 0.0
    %216 = vmatprep.subr.mxu0 0.0
    %217 = vmatpush1.msra.mxu0 0.0
    %218 = vmatprep.subr.mxu0 0.0
    %219 = vmatpush1.msra.mxu0 0.0
    %220 = vmatprep.subr.mxu0 0.0
    %221 = vmatpush1.msra.mxu0 0.0
    %222 = vmatprep.subr.mxu0 0.0
    %223 = vmatpush1.msra.mxu0 0.0
    %224 = vmatprep.mubr.f32.mxu0 0.0
    %225 = vmatmul.mubr.f32.gmra.mrb[0].mxu0 %v56
    %v226 = vpop.f32.mrb[0].mxu0
    %v227 = vadd.f32 %v157, %v226
    %v228 = vpop.f32.mrb[0].mxu0
    %229 = vdwg.mxu0
    %v230 = vld [vmem:[%s2] sm:$0x3]
    %v231 = vld [vmem:[%s5] sm:$0xff]
    %v232 = vld [vmem:[%s5 + $0x8] sm:$0xff]
    %v233 = vld [vmem:[%s5 + $0x10] sm:$0xff]
    %v234 = vld [vmem:[%s5 + $0x18] sm:$0xff]
    %v235 = vld [vmem:[%s5 + $0x20] sm:$0xff]
    %v236 = vld [vmem:[%s5 + $0x28] sm:$0xff]
    %v237 = vld [vmem:[%s5 + $0x30] sm:$0xff]
    %v238 = vld [vmem:[%s5 + $0x38] sm:$0xff]
    %v239 = vld [vmem:[%s5 + $0x40] sm:$0xff]
    %v240 = vld [vmem:[%s5 + $0x48] sm:$0xff]
    %v241 = vld [vmem:[%s5 + $0x50] sm:$0xff]
    %v242 = vld [vmem:[%s5 + $0x58] sm:$0xff]
    %v243 = vld [vmem:[%s5 + $0x60] sm:$0xff]
    %v244 = vld [vmem:[%s5 + $0x68] sm:$0xff]
    %v245 = vld [vmem:[%s5 + $0x70] sm:$0xff]
    %v246 = vld [vmem:[%s5 + $0x78] sm:$0xff]
    %247 = vmatprep.subr.mxu0 0.0
    %248 = vmatpush1.msra.mxu0 %v231
    %249 = vmatprep.subr.mxu0 0.0
    %250 = vmatpush1.msra.mxu0 %v232
    %251 = vmatprep.subr.mxu0 0.0
    %252 = vmatpush1.msra.mxu0 %v233
    %253 = vmatprep.subr.mxu0 0.0
    %254 = vmatpush1.msra.mxu0 %v234
    %255 = vmatprep.subr.mxu0 0.0
    %256 = vmatpush1.msra.mxu0 %v235
    %257 = vmatprep.subr.mxu0 0.0
    %258 = vmatpush1.msra.mxu0 %v236
    %259 = vmatprep.subr.mxu0 0.0
    %260 = vmatpush1.msra.mxu0 %v237
    %261 = vmatprep.subr.mxu0 0.0
    %262 = vmatpush1.msra.mxu0 %v238
    %263 = vmatprep.subr.mxu0 0.0
    %264 = vmatpush1.msra.mxu0 %v239
    %265 = vmatprep.subr.mxu0 0.0
    %266 = vmatpush1.msra.mxu0 %v240
    %267 = vmatprep.subr.mxu0 0.0
    %268 = vmatpush1.msra.mxu0 %v241
    %269 = vmatprep.subr.mxu0 0.0
    %270 = vmatpush1.msra.mxu0 %v242
    %271 = vmatprep.subr.mxu0 0.0
    %272 = vmatpush1.msra.mxu0 %v243
    %273 = vmatprep.subr.mxu0 0.0
    %274 = vmatpush1.msra.mxu0 %v244
    %275 = vmatprep.subr.mxu0 0.0
    %276 = vmatpush1.msra.mxu0 %v245
    %277 = vmatprep.subr.mxu0 0.0
    %278 = vmatpush1.msra.mxu0 %v246
    %279 = vmatprep.subr.mxu0 0.0
    %280 = vmatpush1.msra.mxu0 0.0
    %281 = vmatprep.subr.mxu0 0.0
    %282 = vmatpush1.msra.mxu0 0.0
    %283 = vmatprep.subr.mxu0 0.0
    %284 = vmatpush1.msra.mxu0 0.0
    %285 = vmatprep.subr.mxu0 0.0
    %286 = vmatpush1.msra.mxu0 0.0
    %287 = vmatprep.subr.mxu0 0.0
    %288 = vmatpush1.msra.mxu0 0.0
    %289 = vmatprep.subr.mxu0 0.0
    %290 = vmatpush1.msra.mxu0 0.0
    %291 = vmatprep.subr.mxu0 0.0
    %292 = vmatpush1.msra.mxu0 0.0
    %293 = vmatprep.subr.mxu0 0.0
    %294 = vmatpush1.msra.mxu0 0.0
    %295 = vmatprep.subr.mxu0 0.0
    %296 = vmatpush1.msra.mxu0 0.0
    %297 = vmatprep.subr.mxu0 0.0
    %298 = vmatpush1.msra.mxu0 0.0
    %299 = vmatprep.subr.mxu0 0.0
    %300 = vmatpush1.msra.mxu0 0.0
    %301 = vmatprep.subr.mxu0 0.0
    %302 = vmatpush1.msra.mxu0 0.0
    %303 = vmatprep.subr.mxu0 0.0
    %304 = vmatpush1.msra.mxu0 0.0
    %305 = vmatprep.subr.mxu0 0.0
    %306 = vmatpush1.msra.mxu0 0.0
    %307 = vmatprep.subr.mxu0 0.0
    %308 = vmatpush1.msra.mxu0 0.0
    %309 = vmatprep.subr.mxu0 0.0
    %310 = vmatpush1.msra.mxu0 0.0
    %311 = vmatprep.mubr.f32.mxu0 0.0
    %312 = vmatmul.mubr.f32.gmra.mrb[0].mxu0 %v230
    %v313 = vpop.f32.mrb[0].mxu0
    %v314 = vadd.f32 0.0, %v313
    %v315 = vpop.f32.mrb[0].mxu0
    %316 = vdwg.mxu0
    %v317 = vadd.f32 %v227, %v314
    %v318 = vld [vmem:[%s6] sm:$0x1]
    %v320 = vlaneseq
    %v321 = vshrl.u32 %v320, 7
    %v322 = vsub.s32 0, %v321
    %v323 = vrot.slane %v318, %v322
    %v325 = vadd.f32 %v317, %v323
    %vm326 = vcmp.ge.f32.partialorder %v325, 0.0
    %s327 = sld [smem:[#allocation3]]
    %v328 = vstv %s327
    %v329 = vmul.f32 %v328, %v325
    %v330 = vsel %vm326, %v325, %v329
    %v331 = vld [vmem:[%s7] sm:$0xff]
    %v332 = vld [vmem:[%s7 + $0x8] sm:$0xff]
    %v333 = vld [vmem:[%s7 + $0x10] sm:$0xff]
    %v334 = vld [vmem:[%s7 + $0x18] sm:$0xff]
    %v335 = vld [vmem:[%s7 + $0x20] sm:$0xff]
    %v336 = vld [vmem:[%s7 + $0x28] sm:$0xff]
    %v337 = vld [vmem:[%s7 + $0x30] sm:$0xff]
    %v338 = vld [vmem:[%s7 + $0x38] sm:$0xff]
    %v339 = vld [vmem:[%s7 + $0x40] sm:$0xff]
    %v340 = vld [vmem:[%s7 + $0x48] sm:$0xff]
    %v341 = vld [vmem:[%s7 + $0x50] sm:$0xff]
    %v342 = vld [vmem:[%s7 + $0x58] sm:$0xff]
    %v343 = vld [vmem:[%s7 + $0x60] sm:$0xff]
    %v344 = vld [vmem:[%s7 + $0x68] sm:$0xff]
    %v345 = vld [vmem:[%s7 + $0x70] sm:$0xff]
    %v346 = vld [vmem:[%s7 + $0x78] sm:$0xff]
    %v347 = vld [vmem:[%s8] sm:$0x1]
    %v349 = vlaneseq
    %v350 = vshrl.u32 %v349, 7
    %v351 = vsub.s32 0, %v350
    %v352 = vrot.slane %v347, %v351
    %354 = vmatprep.subr.mxu0 0.0
    %355 = vmatpush1.msra.mxu0 %v331
    %356 = vmatprep.subr.mxu0 0.0
    %357 = vmatpush1.msra.mxu0 %v332
    %358 = vmatprep.subr.mxu0 0.0
    %359 = vmatpush1.msra.mxu0 %v333
    %360 = vmatprep.subr.mxu0 0.0
    %361 = vmatpush1.msra.mxu0 %v334
    %362 = vmatprep.subr.mxu0 0.0
    %363 = vmatpush1.msra.mxu0 %v335
    %364 = vmatprep.subr.mxu0 0.0
    %365 = vmatpush1.msra.mxu0 %v336
    %366 = vmatprep.subr.mxu0 0.0
    %367 = vmatpush1.msra.mxu0 %v337
    %368 = vmatprep.subr.mxu0 0.0
    %369 = vmatpush1.msra.mxu0 %v338
    %370 = vmatprep.subr.mxu0 0.0
    %371 = vmatpush1.msra.mxu0 %v339
    %372 = vmatprep.subr.mxu0 0.0
    %373 = vmatpush1.msra.mxu0 %v340
    %374 = vmatprep.subr.mxu0 0.0
    %375 = vmatpush1.msra.mxu0 %v341
    %376 = vmatprep.subr.mxu0 0.0
    %377 = vmatpush1.msra.mxu0 %v342
    %378 = vmatprep.subr.mxu0 0.0
    %379 = vmatpush1.msra.mxu0 %v343
    %380 = vmatprep.subr.mxu0 0.0
    %381 = vmatpush1.msra.mxu0 %v344
    %382 = vmatprep.subr.mxu0 0.0
    %383 = vmatpush1.msra.mxu0 %v345
    %384 = vmatprep.subr.mxu0 0.0
    %385 = vmatpush1.msra.mxu0 %v346
    %386 = vmatprep.subr.mxu0 0.0
    %387 = vmatpush1.msra.mxu0 0.0
    %388 = vmatprep.subr.mxu0 0.0
    %389 = vmatpush1.msra.mxu0 0.0
    %390 = vmatprep.subr.mxu0 0.0
    %391 = vmatpush1.msra.mxu0 0.0
    %392 = vmatprep.subr.mxu0 0.0
    %393 = vmatpush1.msra.mxu0 0.0
    %394 = vmatprep.subr.mxu0 0.0
    %395 = vmatpush1.msra.mxu0 0.0
    %396 = vmatprep.subr.mxu0 0.0
    %397 = vmatpush1.msra.mxu0 0.0
    %398 = vmatprep.subr.mxu0 0.0
    %399 = vmatpush1.msra.mxu0 0.0
    %400 = vmatprep.subr.mxu0 0.0
    %401 = vmatpush1.msra.mxu0 0.0
    %402 = vmatprep.subr.mxu0 0.0
    %403 = vmatpush1.msra.mxu0 0.0
    %404 = vmatprep.subr.mxu0 0.0
    %405 = vmatpush1.msra.mxu0 0.0
    %406 = vmatprep.subr.mxu0 0.0
    %407 = vmatpush1.msra.mxu0 0.0
    %408 = vmatprep.subr.mxu0 0.0
    %409 = vmatpush1.msra.mxu0 0.0
    %410 = vmatprep.subr.mxu0 0.0
    %411 = vmatpush1.msra.mxu0 0.0
    %412 = vmatprep.subr.mxu0 0.0
    %413 = vmatpush1.msra.mxu0 0.0
    %414 = vmatprep.subr.mxu0 0.0
    %415 = vmatpush1.msra.mxu0 0.0
    %416 = vmatprep.subr.mxu0 0.0
    %417 = vmatpush1.msra.mxu0 0.0
    %418 = vmatprep.mubr.f32.mxu0 0.0
    %419 = vmatmul.mubr.f32.gmra.mrb[0].mxu0 %v330
    %v420 = vpop.f32.mrb[0].mxu0
    %v421 = vadd.f32 %v352, %v420
    %v422 = vpop.f32.mrb[0].mxu0
    %423 = vdwg.mxu0
    %vm424 = vcmp.ge.f32.partialorder %v421, 0.0
    %s425 = sld [smem:[#allocation3 + $0x1]]
    %v426 = vstv %s425
    %v427 = vmul.f32 %v426, %v421
    %v428 = vsel %vm424, %v421, %v427
    %v429 = vld [vmem:[%s9] sm:$0xff]
    %v430 = vld [vmem:[%s9 + $0x8] sm:$0xff]
    %v431 = vld [vmem:[%s9 + $0x10] sm:$0xff]
    %v432 = vld [vmem:[%s9 + $0x18] sm:$0xff]
    %v433 = vld [vmem:[%s9 + $0x20] sm:$0xff]
    %v434 = vld [vmem:[%s9 + $0x28] sm:$0xff]
    %v435 = vld [vmem:[%s9 + $0x30] sm:$0xff]
    %v436 = vld [vmem:[%s9 + $0x38] sm:$0xff]
    %v437 = vld [vmem:[#allocation2] sm:$0x1]
    %v439 = vlaneseq
    %v440 = vshrl.u32 %v439, 7
    %v441 = vsub.s32 0, %v440
    %v442 = vrot.slane %v437, %v441
    %vm444 = vcmask 523264
    %v446 = vsel %vm444, %v428, 0
    %448 = vmatprep.subr.mxu0 0.0
    %449 = vmatpush1.msra.mxu0 %v429
    %450 = vmatprep.subr.mxu0 0.0
    %451 = vmatpush1.msra.mxu0 %v430
    %452 = vmatprep.subr.mxu0 0.0
    %453 = vmatpush1.msra.mxu0 %v431
    %454 = vmatprep.subr.mxu0 0.0
    %455 = vmatpush1.msra.mxu0 %v432
    %456 = vmatprep.subr.mxu0 0.0
    %457 = vmatpush1.msra.mxu0 %v433
    %458 = vmatprep.subr.mxu0 0.0
    %459 = vmatpush1.msra.mxu0 %v434
    %460 = vmatprep.subr.mxu0 0.0
    %461 = vmatpush1.msra.mxu0 %v435
    %462 = vmatprep.subr.mxu0 0.0
    %463 = vmatpush1.msra.mxu0 %v436
    %464 = vmatprep.subr.mxu0 0.0
    %465 = vmatpush1.msra.mxu0 0.0
    %466 = vmatprep.subr.mxu0 0.0
    %467 = vmatpush1.msra.mxu0 0.0
    %468 = vmatprep.subr.mxu0 0.0
    %469 = vmatpush1.msra.mxu0 0.0
    %470 = vmatprep.subr.mxu0 0.0
    %471 = vmatpush1.msra.mxu0 0.0
    %472 = vmatprep.subr.mxu0 0.0
    %473 = vmatpush1.msra.mxu0 0.0
    %474 = vmatprep.subr.mxu0 0.0
    %475 = vmatpush1.msra.mxu0 0.0
    %476 = vmatprep.subr.mxu0 0.0
    %477 = vmatpush1.msra.mxu0 0.0
    %478 = vmatprep.subr.mxu0 0.0
    %479 = vmatpush1.msra.mxu0 0.0
    %480 = vmatprep.subr.mxu0 0.0
    %481 = vmatpush1.msra.mxu0 0.0
    %482 = vmatprep.subr.mxu0 0.0
    %483 = vmatpush1.msra.mxu0 0.0
    %484 = vmatprep.subr.mxu0 0.0
    %485 = vmatpush1.msra.mxu0 0.0
    %486 = vmatprep.subr.mxu0 0.0
    %487 = vmatpush1.msra.mxu0 0.0
    %488 = vmatprep.subr.mxu0 0.0
    %489 = vmatpush1.msra.mxu0 0.0
    %490 = vmatprep.subr.mxu0 0.0
    %491 = vmatpush1.msra.mxu0 0.0
    %492 = vmatprep.subr.mxu0 0.0
    %493 = vmatpush1.msra.mxu0 0.0
    %494 = vmatprep.subr.mxu0 0.0
    %495 = vmatpush1.msra.mxu0 0.0
    %496 = vmatprep.subr.mxu0 0.0
    %497 = vmatpush1.msra.mxu0 0.0
    %498 = vmatprep.subr.mxu0 0.0
    %499 = vmatpush1.msra.mxu0 0.0
    %500 = vmatprep.subr.mxu0 0.0
    %501 = vmatpush1.msra.mxu0 0.0
    %502 = vmatprep.subr.mxu0 0.0
    %503 = vmatpush1.msra.mxu0 0.0
    %504 = vmatprep.subr.mxu0 0.0
    %505 = vmatpush1.msra.mxu0 0.0
    %506 = vmatprep.subr.mxu0 0.0
    %507 = vmatpush1.msra.mxu0 0.0
    %508 = vmatprep.subr.mxu0 0.0
    %509 = vmatpush1.msra.mxu0 0.0
    %510 = vmatprep.subr.mxu0 0.0
    %511 = vmatpush1.msra.mxu0 0.0
    %512 = vmatprep.mubr.f32.mxu0 0.0
    %513 = vmatmul.mubr.f32.gmra.mrb[0].mxu0 %v446
    %v514 = vpop.f32.mrb[0].mxu0
    %v515 = vadd.f32 %v442, %v514
    %v516 = vpop.f32.mrb[0].mxu0
    %517 = vdwg.mxu0
    %vm518 = vcmask 1024
    %519 = vst.msk [vmem:[%s12] sm:$0x3] %vm518, %v515
    // Predicated region
    $region54: #{forward.7} parent=1 // pred_check
      _
    $region55: #{forward.7} parent=1 // pred_check_branch
      %521 = sbr.rel (0) target = $region57
    $region56: #{forward.7} parent=1 // pred_region
      _
    $region57: #{forward.7} parent=1 // pred_fallthru
      _
    // Predicated region
    $region58: #{forward.7} parent=1 // pred_check
      _
    $region59: #{forward.7} parent=1 // pred_check_branch
      %523 = sbr.rel (0) target = $region61
    $region60: #{forward.7} parent=1 // pred_region
      _
    $region61: #{forward.7} parent=1 // pred_fallthru
      _
    %524 = vsyncpa [#allocation4], 1

// kernel: forward.6
$region0: #{forward.6}
  #allocation0 [shape = 'u32[]', space=smem, size = 0x4, offset = 0x4, fixed_abs, tag = 'smem constant byte address 0x4 - core index']
  #allocation1 [shape = 'u32[144,128]{1,0:T(1,128)}', space=vmem, size = 0x12000, scoped, tag = 'internal scratch']
  %s0 = inlined_call_operand.vmem [shape: s32[16,1], index: 0, kind: input, shape index: {}]
  %s1 = inlined_call_operand.vmem [shape: f32[128,128], index: 1, kind: input, shape index: {}]
  %s2 = inlined_call_operand.vmem [shape: f32[3,128], index: 2, kind: input, shape index: {}]
  %s3 = inlined_call_operand.vmem [shape: f32[4,128], index: 3, kind: input, shape index: {}]
  %s4 = inlined_call_operand.vmem [shape: f32[4,128], index: 4, kind: input, shape index: {}]
  %s5 = inlined_call_operand.vmem [shape: f32[3,128,128], index: 5, kind: input, shape index: {}]
  %s6 = inlined_call_operand.vmem [shape: f32[3,128], index: 6, kind: input, shape index: {}]
  %s7 = inlined_call_operand.vmem [shape: f32[4], index: 7, kind: input, shape index: {}]
  %s8 = inlined_call_operand.vmem [shape: f32[2,128], index: 8, kind: output, shape index: {}]
  %s9 = sld [smem:[#allocation0]]
  $region46: #{forward.6} parent=0
    _
  %s11 = ssub.s32 1, %s9
  %s12 = scalar_select 0, %s11, %s9
  $region1: #{forward.6} parent=0
    #allocation2 [shape = 'u8[512]{0}', space=smem, size = 0x200, scoped, tag = 'input window, operand 7, single buffered']
    #allocation3 [shape = 's32[1]{0}', space=sflag, size = 0x4, scoped, tag = 'scoped memory for forward.6']
    %13 = vsyncpa [#allocation3], 0
    // Predicated region
    $region2: #{forward.6} parent=1 // pred_check
      _
    $region3: #{forward.6} parent=1 // pred_check_branch
      %15 = sbr.rel (0) target = $region5
    $region4: #{forward.6} parent=1 // pred_region
      _
    $region5: #{forward.6} parent=1 // pred_fallthru
      _
    // Predicated region
    $region6: #{forward.6} parent=1 // pred_check
      _
    $region7: #{forward.6} parent=1 // pred_check_branch
      %17 = sbr.rel (0) target = $region9
    $region8: #{forward.6} parent=1 // pred_region
      _
    $region9: #{forward.6} parent=1 // pred_fallthru
      _
    // Predicated region
    $region10: #{forward.6} parent=1 // pred_check
      _
    $region11: #{forward.6} parent=1 // pred_check_branch
      %19 = sbr.rel (0) target = $region13
    $region12: #{forward.6} parent=1 // pred_region
      _
    $region13: #{forward.6} parent=1 // pred_fallthru
      _
    // Predicated region
    $region14: #{forward.6} parent=1 // pred_check
      _
    $region15: #{forward.6} parent=1 // pred_check_branch
      %21 = sbr.rel (0) target = $region17
    $region16: #{forward.6} parent=1 // pred_region
      _
    $region17: #{forward.6} parent=1 // pred_fallthru
      _
    // Predicated region
    $region18: #{forward.6} parent=1 // pred_check
      _
    $region19: #{forward.6} parent=1 // pred_check_branch
      %23 = sbr.rel (0) target = $region21
    $region20: #{forward.6} parent=1 // pred_region
      _
    $region21: #{forward.6} parent=1 // pred_fallthru
      _
    // Predicated region
    $region22: #{forward.6} parent=1 // pred_check
      _
    $region23: #{forward.6} parent=1 // pred_check_branch
      %25 = sbr.rel (0) target = $region25
    $region24: #{forward.6} parent=1 // pred_region
      _
    $region25: #{forward.6} parent=1 // pred_fallthru
      _
    // Predicated region
    $region26: #{forward.6} parent=1 // pred_check
      _
    $region27: #{forward.6} parent=1 // pred_check_branch
      %27 = sbr.rel (0) target = $region29
    $region28: #{forward.6} parent=1 // pred_region
      _
    $region29: #{forward.6} parent=1 // pred_fallthru
      _
    // Predicated region
    $region30: #{forward.6} parent=1 // pred_check
      _
    $region31: #{forward.6} parent=1 // pred_check_branch
      %29 = sbr.rel (0) target = $region33
    $region32: #{forward.6} parent=1 // pred_region
      %s31 = ssub.s32 16, 16
      %32 = vsyncadd [#allocation3], %s31
      %s34 = sshll.u32 %s7, 4
      %s35 = int_to_ptr.vmem [resolvable:$true] %s34
      %37 = dma.vmem_to_smem %s35, 16, [#allocation2], [#allocation3]
    $region33: #{forward.6} parent=1 // pred_fallthru
      _
    // Predicated region
    $region34: #{forward.6} parent=1 // pred_check
      _
    $region35: #{forward.6} parent=1 // pred_check_branch
      %39 = sbr.rel (0) target = $region37
    $region36: #{forward.6} parent=1 // pred_region
      %40 = dma.done [#allocation3], 16
    $region37: #{forward.6} parent=1 // pred_fallthru
      _
    %41 = sfence
    %v42 = vlaneseq
    %v43 = vshrl.u32 %v42, 7
    %v44 = vadd.s32 %v43, 8
    %vm45 = vcmp.lt.s32.totalorder %v43, 0
    %v46 = vsub.s32 0, %v43
    %v47 = vsel %vm45, %v46, %v43
    %v48 = vshrl.u32 %v47, 3
    %v49 = vand.u32 %v47, 7
    %v50 = vsub.s32 0, %v49
    %v51 = vsel %vm45, %v50, %v49
    %vm52 = vcmp.lt.s32.totalorder %v44, 0
    %v53 = vsub.s32 0, %v44
    %v54 = vsel %vm52, %v53, %v44
    %v55 = vshrl.u32 %v54, 3
    %v56 = vand.u32 %v54, 7
    %v57 = vsub.s32 0, %v56
    %v58 = vsel %vm52, %v57, %v56
    %vm59 = vcmp.ne.s32.totalorder %v51, 0
    %vm60 = vcmp.ne.s32.totalorder %v58, 0
    %vm61 = vcmp.lt.s32.totalorder %v51, 0
    %vm62 = vcmp.lt.s32.totalorder %v58, 0
    %vm63 = vmand %vm61, %vm59
    %vm64 = vmand %vm62, %vm60
    %v65 = vadd.s32 %v51, 8
    %v66 = vadd.s32 %v58, 8
    %v67 = vsel %vm63, %v65, %v51
    %v68 = vsel %vm64, %v66, %v58
    %vm69 = vcmp.ge.s32.totalorder %v67, 1
    %vm70 = vcmp.ge.s32.totalorder %v68, 1
    %vm71 = vcmp.ge.s32.totalorder %v67, 2
    %vm72 = vcmp.ge.s32.totalorder %v68, 2
    %vm73 = vcmp.ge.s32.totalorder %v67, 4
    %vm74 = vcmp.ge.s32.totalorder %v68, 4
    %vm75 = vcmp.lt.s32.totalorder %v67, 7
    %vm76 = vcmp.lt.s32.totalorder %v68, 7
    %vm77 = vcmp.lt.s32.totalorder %v67, 6
    %vm78 = vcmp.lt.s32.totalorder %v68, 6
    %vm79 = vcmp.lt.s32.totalorder %v67, 4
    %vm80 = vcmp.lt.s32.totalorder %v68, 4
    %v81 = vlaneseq
    %v82 = vand.u32 %v81, 127
    %v83 = vld [vmem:[%s0] sm:$0xff]
    %v84 = vld [vmem:[%s0 + $0x8] sm:$0xff]
    %85 = vset.pattern.permute.xlu0 0
    %86 = vperm.xlu0 %85, %v83
    %v87 = vpop.permute.xlu0 %86
    %88 = vset.pattern.permute.xlu0 0
    %89 = vperm.xlu0 %88, %v84
    %v90 = vpop.permute.xlu0 %89
    %vm91 = vcmp.eq.s32.totalorder %v87, %v82
    %vm92 = vcmp.eq.s32.totalorder %v90, %v82
    %v93 = vsel %vm91, 1, 0
    %v94 = vsel %vm92, 1, 0
    %v95 = vcvt.s32.f32 %v93
    %v96 = vcvt.s32.f32 %v94
    %v97 = vld [vmem:[%s1] sm:$0xff]
    %v98 = vld [vmem:[%s1 + $0x8] sm:$0xff]
    %v99 = vld [vmem:[%s1 + $0x10] sm:$0xff]
    %v100 = vld [vmem:[%s1 + $0x18] sm:$0xff]
    %v101 = vld [vmem:[%s1 + $0x20] sm:$0xff]
    %v102 = vld [vmem:[%s1 + $0x28] sm:$0xff]
    %v103 = vld [vmem:[%s1 + $0x30] sm:$0xff]
    %v104 = vld [vmem:[%s1 + $0x38] sm:$0xff]
    %v105 = vld [vmem:[%s1 + $0x40] sm:$0xff]
    %v106 = vld [vmem:[%s1 + $0x48] sm:$0xff]
    %v107 = vld [vmem:[%s1 + $0x50] sm:$0xff]
    %v108 = vld [vmem:[%s1 + $0x58] sm:$0xff]
    %v109 = vld [vmem:[%s1 + $0x60] sm:$0xff]
    %v110 = vld [vmem:[%s1 + $0x68] sm:$0xff]
    %v111 = vld [vmem:[%s1 + $0x70] sm:$0xff]
    %v112 = vld [vmem:[%s1 + $0x78] sm:$0xff]
    %v113 = vld [vmem:[%s2] sm:$0x1]
    %v114 = vld [vmem:[%s2 + $0x1] sm:$0x1]
    %v115 = vld [vmem:[%s2 + $0x2] sm:$0x1]
    %116 = vmatprep.subr.mxu0 0.0
    %117 = vmatpush1.msra.mxu0 %v97
    %118 = vmatprep.subr.mxu0 0.0
    %119 = vmatpush1.msra.mxu0 %v98
    %120 = vmatprep.subr.mxu0 0.0
    %121 = vmatpush1.msra.mxu0 %v99
    %122 = vmatprep.subr.mxu0 0.0
    %123 = vmatpush1.msra.mxu0 %v100
    %124 = vmatprep.subr.mxu0 0.0
    %125 = vmatpush1.msra.mxu0 %v101
    %126 = vmatprep.subr.mxu0 0.0
    %127 = vmatpush1.msra.mxu0 %v102
    %128 = vmatprep.subr.mxu0 0.0
    %129 = vmatpush1.msra.mxu0 %v103
    %130 = vmatprep.subr.mxu0 0.0
    %131 = vmatpush1.msra.mxu0 %v104
    %132 = vmatprep.subr.mxu0 0.0
    %133 = vmatpush1.msra.mxu0 %v105
    %134 = vmatprep.subr.mxu0 0.0
    %135 = vmatpush1.msra.mxu0 %v106
    %136 = vmatprep.subr.mxu0 0.0
    %137 = vmatpush1.msra.mxu0 %v107
    %138 = vmatprep.subr.mxu0 0.0
    %139 = vmatpush1.msra.mxu0 %v108
    %140 = vmatprep.subr.mxu0 0.0
    %141 = vmatpush1.msra.mxu0 %v109
    %142 = vmatprep.subr.mxu0 0.0
    %143 = vmatpush1.msra.mxu0 %v110
    %144 = vmatprep.subr.mxu0 0.0
    %145 = vmatpush1.msra.mxu0 %v111
    %146 = vmatprep.subr.mxu0 0.0
    %147 = vmatpush1.msra.mxu0 %v112
    %148 = vmatprep.subr.mxu0 0.0
    %149 = vmatpush1.msra.mxu0 0.0
    %150 = vmatprep.subr.mxu0 0.0
    %151 = vmatpush1.msra.mxu0 0.0
    %152 = vmatprep.subr.mxu0 0.0
    %153 = vmatpush1.msra.mxu0 0.0
    %154 = vmatprep.subr.mxu0 0.0
    %155 = vmatpush1.msra.mxu0 0.0
    %156 = vmatprep.subr.mxu0 0.0
    %157 = vmatpush1.msra.mxu0 0.0
    %158 = vmatprep.subr.mxu0 0.0
    %159 = vmatpush1.msra.mxu0 0.0
    %160 = vmatprep.subr.mxu0 0.0
    %161 = vmatpush1.msra.mxu0 0.0
    %162 = vmatprep.subr.mxu0 0.0
    %163 = vmatpush1.msra.mxu0 0.0
    %164 = vmatprep.subr.mxu0 0.0
    %165 = vmatpush1.msra.mxu0 0.0
    %166 = vmatprep.subr.mxu0 0.0
    %167 = vmatpush1.msra.mxu0 0.0
    %168 = vmatprep.subr.mxu0 0.0
    %169 = vmatpush1.msra.mxu0 0.0
    %170 = vmatprep.subr.mxu0 0.0
    %171 = vmatpush1.msra.mxu0 0.0
    %172 = vmatprep.subr.mxu0 0.0
    %173 = vmatpush1.msra.mxu0 0.0
    %174 = vmatprep.subr.mxu0 0.0
    %175 = vmatpush1.msra.mxu0 0.0
    %176 = vmatprep.subr.mxu0 0.0
    %177 = vmatpush1.msra.mxu0 0.0
    %178 = vmatprep.subr.mxu0 0.0
    %179 = vmatpush1.msra.mxu0 0.0
    %180 = vmatprep.mubr.f32.mxu0 0.0
    %181 = vmatmul.mubr.f32.gmra.mrb[0].mxu0 %v95
    %v182 = vpop.f32.mrb[0].mxu0
    %v183 = vadd.f32 0.0, %v182
    %v184 = vpop.f32.mrb[0].mxu0
    %185 = vmatprep.mubr.f32.mxu0 0.0
    %186 = vmatmul.mubr.f32.gmra.mrb[0].mxu0 %v96
    %v187 = vpop.f32.mrb[0].mxu0
    %v188 = vadd.f32 0.0, %v187
    %v189 = vpop.f32.mrb[0].mxu0
    %190 = vdwg.mxu0
    %v191 = vrot.slane %v183, 7
    %v192 = vrot.slane %v188, 7
    %vm193 = vcmp.lt.s32.totalorder %v43, 1
    %v194 = vsel %vm193, %v191, %v192
    %v195 = vsel %vm193, %v192, %v191
    %v196 = vlaneseq
    %v197 = vshrl.u32 %v196, 7
    %v198 = vsub.s32 0, %v197
    %v199 = vrot.slane %v113, %v198
    %v200 = vadd.f32 %v195, %v199
    %v201 = vadd.f32 %v194, %v199
    %v202 = vsel %vm69, 1, 0
    %v203 = vsel %vm70, 1, 0
    %vm204 = vcmp.eq.s32.totalorder %v202, 1
    %vm205 = vcmp.eq.s32.totalorder %v203, 1
    %v206 = vsel %vm204, %v200, 0.0
    %v207 = vsel %vm205, %v201, 0.0
    %208 = vrot.lane.b32.xlu0 %v183, 96
    %v209 = vpop.permute.xlu0 %208
    %210 = vrot.lane.b32.xlu0 %v188, 96
    %v211 = vpop.permute.xlu0 %210
    %212 = vrot.lane.b32.xlu0 %v183, 64
    %v213 = vpop.permute.xlu0 %212
    %214 = vrot.lane.b32.xlu0 %v188, 64
    %v215 = vpop.permute.xlu0 %214
    %v216 = vrot.slane %v213, 1
    %v217 = vrot.slane %v215, 1
    %vm218 = vcmp.lt.s32.totalorder %v43, 7
    %v219 = vsel %vm218, %v216, %v217
    %v220 = vsel %vm218, %v217, %v216
    %v221 = vlaneseq
    %v222 = vshrl.u32 %v221, 7
    %v223 = vsub.s32 0, %v222
    %v224 = vrot.slane %v115, %v223
    %v225 = vadd.f32 %v219, %v224
    %v226 = vadd.f32 %v220, %v224
    %v227 = vsel %vm75, 1, 0
    %v228 = vsel %vm76, 1, 0
    %vm229 = vcmp.eq.s32.totalorder %v227, 1
    %vm230 = vcmp.eq.s32.totalorder %v228, 1
    %v231 = vsel %vm229, %v225, 0.0
    %v232 = vsel %vm230, %v226, 0.0
    %vm233 = vcmp.ge.s32.totalorder %v82, 0
    %vm234 = vcmp.lt.s32.totalorder %v82, 32
    %vm235 = vmand %vm233, %vm234
    %v236 = vadd.f32 %v206, %v209
    %v237 = vadd.f32 %v207, %v211
    %v238 = vadd.f32 %v236, %v231
    %v239 = vadd.f32 %v237, %v232
    %v240 = vsel %vm235, 1, 0
    %vm241 = vcmp.eq.s32.totalorder %v240, 1
    %v242 = vsel %vm241, %v238, 0.0
    %v243 = vsel %vm241, %v239, 0.0
    %v244 = vlaneseq
    %v245 = vshrl.u32 %v244, 7
    %v246 = vsub.s32 0, %v245
    %v247 = vrot.slane %v114, %v246
    %v248 = vadd.f32 %v242, %v247
    %v249 = vadd.f32 %v243, %v247
    %v250 = vld [vmem:[%s3] sm:$0x1]
    %v251 = vlaneseq
    %v252 = vshrl.u32 %v251, 7
    %v253 = vsub.s32 0, %v252
    %v254 = vrot.slane %v250, %v253
    %v255 = vmul.f32 %v248, %v254
    %v256 = vmul.f32 %v249, %v254
    %v257 = vld [vmem:[%s4] sm:$0x1]
    %v258 = vlaneseq
    %v259 = vshrl.u32 %v258, 7
    %v260 = vsub.s32 0, %v259
    %v261 = vrot.slane %v257, %v260
    %v262 = vadd.f32 %v255, %v261
    %v263 = vadd.f32 %v256, %v261
    %vm264 = vcmp.ge.f32.partialorder %v262, 0.0
    %vm265 = vcmp.ge.f32.partialorder %v263, 0.0
    %s266 = sld [smem:[#allocation2]]
    %v267 = vstv %s266
    %v268 = vmul.f32 %v267, %v262
    %v269 = vmul.f32 %v267, %v263
    %v270 = vsel %vm264, %v262, %v268
    %v271 = vsel %vm265, %v263, %v269
    %v272 = vld [vmem:[%s5] sm:$0xff]
    %v273 = vld [vmem:[%s5 + $0x8] sm:$0xff]
    %v274 = vld [vmem:[%s5 + $0x10] sm:$0xff]
    %v275 = vld [vmem:[%s5 + $0x18] sm:$0xff]
    %v276 = vld [vmem:[%s5 + $0x20] sm:$0xff]
    %v277 = vld [vmem:[%s5 + $0x28] sm:$0xff]
    %v278 = vld [vmem:[%s5 + $0x30] sm:$0xff]
    %v279 = vld [vmem:[%s5 + $0x38] sm:$0xff]
    %v280 = vld [vmem:[%s5 + $0x40] sm:$0xff]
    %v281 = vld [vmem:[%s5 + $0x48] sm:$0xff]
    %v282 = vld [vmem:[%s5 + $0x50] sm:$0xff]
    %v283 = vld [vmem:[%s5 + $0x58] sm:$0xff]
    %v284 = vld [vmem:[%s5 + $0x60] sm:$0xff]
    %v285 = vld [vmem:[%s5 + $0x68] sm:$0xff]
    %v286 = vld [vmem:[%s5 + $0x70] sm:$0xff]
    %v287 = vld [vmem:[%s5 + $0x78] sm:$0xff]
    %v288 = vld [vmem:[%s6] sm:$0x1]
    %289 = vmatprep.subr.mxu0 0.0
    %290 = vmatpush1.msra.mxu0 %v272
    %291 = vmatprep.subr.mxu0 0.0
    %292 = vmatpush1.msra.mxu0 %v273
    %293 = vmatprep.subr.mxu0 0.0
    %294 = vmatpush1.msra.mxu0 %v274
    %295 = vmatprep.subr.mxu0 0.0
    %296 = vmatpush1.msra.mxu0 %v275
    %297 = vmatprep.subr.mxu0 0.0
    %298 = vmatpush1.msra.mxu0 %v276
    %299 = vmatprep.subr.mxu0 0.0
    %300 = vmatpush1.msra.mxu0 %v277
    %301 = vmatprep.subr.mxu0 0.0
    %302 = vmatpush1.msra.mxu0 %v278
    %303 = vmatprep.subr.mxu0 0.0
    %304 = vmatpush1.msra.mxu0 %v279
    %305 = vmatprep.subr.mxu0 0.0
    %306 = vmatpush1.msra.mxu0 %v280
    %307 = vmatprep.subr.mxu0 0.0
    %308 = vmatpush1.msra.mxu0 %v281
    %309 = vmatprep.subr.mxu0 0.0
    %310 = vmatpush1.msra.mxu0 %v282
    %311 = vmatprep.subr.mxu0 0.0
    %312 = vmatpush1.msra.mxu0 %v283
    %313 = vmatprep.subr.mxu0 0.0
    %314 = vmatpush1.msra.mxu0 %v284
    %315 = vmatprep.subr.mxu0 0.0
    %316 = vmatpush1.msra.mxu0 %v285
    %317 = vmatprep.subr.mxu0 0.0
    %318 = vmatpush1.msra.mxu0 %v286
    %319 = vmatprep.subr.mxu0 0.0
    %320 = vmatpush1.msra.mxu0 %v287
    %321 = vmatprep.subr.mxu0 0.0
    %322 = vmatpush1.msra.mxu0 0.0
    %323 = vmatprep.subr.mxu0 0.0
    %324 = vmatpush1.msra.mxu0 0.0
    %325 = vmatprep.subr.mxu0 0.0
    %326 = vmatpush1.msra.mxu0 0.0
    %327 = vmatprep.subr.mxu0 0.0
    %328 = vmatpush1.msra.mxu0 0.0
    %329 = vmatprep.subr.mxu0 0.0
    %330 = vmatpush1.msra.mxu0 0.0
    %331 = vmatprep.subr.mxu0 0.0
    %332 = vmatpush1.msra.mxu0 0.0
    %333 = vmatprep.subr.mxu0 0.0
    %334 = vmatpush1.msra.mxu0 0.0
    %335 = vmatprep.subr.mxu0 0.0
    %336 = vmatpush1.msra.mxu0 0.0
    %337 = vmatprep.subr.mxu0 0.0
    %338 = vmatpush1.msra.mxu0 0.0
    %339 = vmatprep.subr.mxu0 0.0
    %340 = vmatpush1.msra.mxu0 0.0
    %341 = vmatprep.subr.mxu0 0.0
    %342 = vmatpush1.msra.mxu0 0.0
    %343 = vmatprep.subr.mxu0 0.0
    %344 = vmatpush1.msra.mxu0 0.0
    %345 = vmatprep.subr.mxu0 0.0
    %346 = vmatpush1.msra.mxu0 0.0
    %347 = vmatprep.subr.mxu0 0.0
    %348 = vmatpush1.msra.mxu0 0.0
    %349 = vmatprep.subr.mxu0 0.0
    %350 = vmatpush1.msra.mxu0 0.0
    %351 = vmatprep.subr.mxu0 0.0
    %352 = vmatpush1.msra.mxu0 0.0
    %353 = vmatprep.mubr.f32.mxu0 0.0
    %354 = vmatmul.mubr.f32.gmra.mrb[0].mxu0 %v270
    %v355 = vpop.f32.mrb[0].mxu0
    %v356 = vadd.f32 0.0, %v355
    %v357 = vpop.f32.mrb[0].mxu0
    %358 = vmatprep.mubr.f32.mxu0 0.0
    %359 = vmatmul.mubr.f32.gmra.mrb[0].mxu0 %v271
    %v360 = vpop.f32.mrb[0].mxu0
    %v361 = vadd.f32 0.0, %v360
    %v362 = vpop.f32.mrb[0].mxu0
    %363 = vdwg.mxu0
    %364 = vrot.lane.b32.xlu0 %v356, 32
    %v365 = vpop.permute.xlu0 %364
    %366 = vrot.lane.b32.xlu0 %v361, 32
    %v367 = vpop.permute.xlu0 %366
    %v368 = vrot.slane %v365, 7
    %v369 = vrot.slane %v367, 7
    %v370 = vsel %vm193, %v368, %v369
    %v371 = vsel %vm193, %v369, %v368
    %v372 = vsel %vm204, %v371, 0.0
    %v373 = vsel %vm205, %v370, 0.0
    %374 = vrot.lane.b32.xlu0 %v356, 96
    %v375 = vpop.permute.xlu0 %374
    %376 = vrot.lane.b32.xlu0 %v361, 96
    %v377 = vpop.permute.xlu0 %376
    %v378 = vrot.slane %v375, 1
    %v379 = vrot.slane %v377, 1
    %v380 = vsel %vm218, %v378, %v379
    %v381 = vsel %vm218, %v379, %v378
    %v382 = vsel %vm229, %v380, 0.0
    %v383 = vsel %vm230, %v381, 0.0
    %vm384 = vcmp.ge.s32.totalorder %v82, 32
    %vm385 = vcmp.lt.s32.totalorder %v82, 64
    %vm386 = vmand %vm384, %vm385
    %v387 = vadd.f32 %v372, %v356
    %v388 = vadd.f32 %v373, %v361
    %v389 = vadd.f32 %v387, %v382
    %v390 = vadd.f32 %v388, %v383
    %v391 = vsel %vm386, 1, 0
    %vm392 = vcmp.eq.s32.totalorder %v391, 1
    %v393 = vsel %vm392, %v389, 0.0
    %v394 = vsel %vm392, %v390, 0.0
    %v395 = vlaneseq
    %v396 = vshrl.u32 %v395, 7
    %v397 = vsub.s32 0, %v396
    %v398 = vrot.slane %v288, %v397
    %v399 = vadd.f32 %v393, %v398
    %v400 = vadd.f32 %v394, %v398
    %v401 = vadd.f32 %v248, %v399
    %v402 = vadd.f32 %v249, %v400
    %v403 = vld [vmem:[%s3 + $0x1] sm:$0x1]
    %v404 = vlaneseq
    %v405 = vshrl.u32 %v404, 7
    %v406 = vsub.s32 0, %v405
    %v407 = vrot.slane %v403, %v406
    %v408 = vmul.f32 %v401, %v407
    %v409 = vmul.f32 %v402, %v407
    %v410 = vld [vmem:[%s4 + $0x1] sm:$0x1]
    %v411 = vlaneseq
    %v412 = vshrl.u32 %v411, 7
    %v413 = vsub.s32 0, %v412
    %v414 = vrot.slane %v410, %v413
    %v415 = vadd.f32 %v408, %v414
    %v416 = vadd.f32 %v409, %v414
    %vm417 = vcmp.ge.f32.partialorder %v415, 0.0
    %vm418 = vcmp.ge.f32.partialorder %v416, 0.0
    %s419 = sld [smem:[#allocation2 + $0x1]]
    %v420 = vstv %s419
    %v421 = vmul.f32 %v420, %v415
    %v422 = vmul.f32 %v420, %v416
    %v423 = vsel %vm417, %v415, %v421
    %v424 = vsel %vm418, %v416, %v422
    %s425 = scalar_lea.vmem %s5, 128
    %v426 = vld [vmem:[%s425] sm:$0xff]
    %v427 = vld [vmem:[%s425 + $0x8] sm:$0xff]
    %v428 = vld [vmem:[%s425 + $0x10] sm:$0xff]
    %v429 = vld [vmem:[%s425 + $0x18] sm:$0xff]
    %v430 = vld [vmem:[%s425 + $0x20] sm:$0xff]
    %v431 = vld [vmem:[%s425 + $0x28] sm:$0xff]
    %v432 = vld [vmem:[%s425 + $0x30] sm:$0xff]
    %v433 = vld [vmem:[%s425 + $0x38] sm:$0xff]
    %v434 = vld [vmem:[%s425 + $0x40] sm:$0xff]
    %v435 = vld [vmem:[%s425 + $0x48] sm:$0xff]
    %v436 = vld [vmem:[%s425 + $0x50] sm:$0xff]
    %v437 = vld [vmem:[%s425 + $0x58] sm:$0xff]
    %v438 = vld [vmem:[%s425 + $0x60] sm:$0xff]
    %v439 = vld [vmem:[%s425 + $0x68] sm:$0xff]
    %v440 = vld [vmem:[%s425 + $0x70] sm:$0xff]
    %v441 = vld [vmem:[%s425 + $0x78] sm:$0xff]
    %v442 = vld [vmem:[%s6 + $0x1] sm:$0x1]
    %443 = vmatprep.subr.mxu0 0.0
    %444 = vmatpush1.msra.mxu0 %v426
    %445 = vmatprep.subr.mxu0 0.0
    %446 = vmatpush1.msra.mxu0 %v427
    %447 = vmatprep.subr.mxu0 0.0
    %448 = vmatpush1.msra.mxu0 %v428
    %449 = vmatprep.subr.mxu0 0.0
    %450 = vmatpush1.msra.mxu0 %v429
    %451 = vmatprep.subr.mxu0 0.0
    %452 = vmatpush1.msra.mxu0 %v430
    %453 = vmatprep.subr.mxu0 0.0
    %454 = vmatpush1.msra.mxu0 %v431
    %455 = vmatprep.subr.mxu0 0.0
    %456 = vmatpush1.msra.mxu0 %v432
    %457 = vmatprep.subr.mxu0 0.0
    %458 = vmatpush1.msra.mxu0 %v433
    %459 = vmatprep.subr.mxu0 0.0
    %460 = vmatpush1.msra.mxu0 %v434
    %461 = vmatprep.subr.mxu0 0.0
    %462 = vmatpush1.msra.mxu0 %v435
    %463 = vmatprep.subr.mxu0 0.0
    %464 = vmatpush1.msra.mxu0 %v436
    %465 = vmatprep.subr.mxu0 0.0
    %466 = vmatpush1.msra.mxu0 %v437
    %467 = vmatprep.subr.mxu0 0.0
    %468 = vmatpush1.msra.mxu0 %v438
    %469 = vmatprep.subr.mxu0 0.0
    %470 = vmatpush1.msra.mxu0 %v439
    %471 = vmatprep.subr.mxu0 0.0
    %472 = vmatpush1.msra.mxu0 %v440
    %473 = vmatprep.subr.mxu0 0.0
    %474 = vmatpush1.msra.mxu0 %v441
    %475 = vmatprep.subr.mxu0 0.0
    %476 = vmatpush1.msra.mxu0 0.0
    %477 = vmatprep.subr.mxu0 0.0
    %478 = vmatpush1.msra.mxu0 0.0
    %479 = vmatprep.subr.mxu0 0.0
    %480 = vmatpush1.msra.mxu0 0.0
    %481 = vmatprep.subr.mxu0 0.0
    %482 = vmatpush1.msra.mxu0 0.0
    %483 = vmatprep.subr.mxu0 0.0
    %484 = vmatpush1.msra.mxu0 0.0
    %485 = vmatprep.subr.mxu0 0.0
    %486 = vmatpush1.msra.mxu0 0.0
    %487 = vmatprep.subr.mxu0 0.0
    %488 = vmatpush1.msra.mxu0 0.0
    %489 = vmatprep.subr.mxu0 0.0
    %490 = vmatpush1.msra.mxu0 0.0
    %491 = vmatprep.subr.mxu0 0.0
    %492 = vmatpush1.msra.mxu0 0.0
    %493 = vmatprep.subr.mxu0 0.0
    %494 = vmatpush1.msra.mxu0 0.0
    %495 = vmatprep.subr.mxu0 0.0
    %496 = vmatpush1.msra.mxu0 0.0
    %497 = vmatprep.subr.mxu0 0.0
    %498 = vmatpush1.msra.mxu0 0.0
    %499 = vmatprep.subr.mxu0 0.0
    %500 = vmatpush1.msra.mxu0 0.0
    %501 = vmatprep.subr.mxu0 0.0
    %502 = vmatpush1.msra.mxu0 0.0
    %503 = vmatprep.subr.mxu0 0.0
    %504 = vmatpush1.msra.mxu0 0.0
    %505 = vmatprep.subr.mxu0 0.0
    %506 = vmatpush1.msra.mxu0 0.0
    %507 = vmatprep.mubr.f32.mxu0 0.0
    %508 = vmatmul.mubr.f32.gmra.mrb[0].mxu0 %v423
    %v509 = vpop.f32.mrb[0].mxu0
    %v510 = vadd.f32 0.0, %v509
    %v511 = vpop.f32.mrb[0].mxu0
    %512 = vmatprep.mubr.f32.mxu0 0.0
    %513 = vmatmul.mubr.f32.gmra.mrb[0].mxu0 %v424
    %v514 = vpop.f32.mrb[0].mxu0
    %v515 = vadd.f32 0.0, %v514
    %v516 = vpop.f32.mrb[0].mxu0
    %517 = vdwg.mxu0
    %518 = vrot.lane.b32.xlu0 %v510, 64
    %v519 = vpop.permute.xlu0 %518
    %520 = vrot.lane.b32.xlu0 %v515, 64
    %v521 = vpop.permute.xlu0 %520
    %v522 = vrot.slane %v519, 6
    %v523 = vrot.slane %v521, 6
    %vm524 = vcmp.lt.s32.totalorder %v43, 2
    %v525 = vsel %vm524, %v522, %v523
    %v526 = vsel %vm524, %v523, %v522
    %v527 = vsel %vm71, 1, 0
    %v528 = vsel %vm72, 1, 0
    %vm529 = vcmp.eq.s32.totalorder %v527, 1
    %vm530 = vcmp.eq.s32.totalorder %v528, 1
    %v531 = vsel %vm529, %v526, 0.0
    %v532 = vsel %vm530, %v525, 0.0
    %533 = vrot.lane.b32.xlu0 %v510, 32
    %v534 = vpop.permute.xlu0 %533
    %535 = vrot.lane.b32.xlu0 %v515, 32
    %v536 = vpop.permute.xlu0 %535
    %v537 = vrot.slane %v510, 2
    %v538 = vrot.slane %v515, 2
    %vm539 = vcmp.lt.s32.totalorder %v43, 6
    %v540 = vsel %vm539, %v537, %v538
    %v541 = vsel %vm539, %v538, %v537
    %v542 = vsel %vm77, 1, 0
    %v543 = vsel %vm78, 1, 0
    %vm544 = vcmp.eq.s32.totalorder %v542, 1
    %vm545 = vcmp.eq.s32.totalorder %v543, 1
    %v546 = vsel %vm544, %v540, 0.0
    %v547 = vsel %vm545, %v541, 0.0
    %vm548 = vcmp.ge.s32.totalorder %v82, 64
    %vm549 = vcmp.lt.s32.totalorder %v82, 96
    %vm550 = vmand %vm548, %vm549
    %v551 = vadd.f32 %v531, %v534
    %v552 = vadd.f32 %v532, %v536
    %v553 = vadd.f32 %v551, %v546
    %v554 = vadd.f32 %v552, %v547
    %v555 = vsel %vm550, 1, 0
    %vm556 = vcmp.eq.s32.totalorder %v555, 1
    %v557 = vsel %vm556, %v553, 0.0
    %v558 = vsel %vm556, %v554, 0.0
    %v559 = vlaneseq
    %v560 = vshrl.u32 %v559, 7
    %v561 = vsub.s32 0, %v560
    %v562 = vrot.slane %v442, %v561
    %v563 = vadd.f32 %v557, %v562
    %v564 = vadd.f32 %v558, %v562
    %v565 = vadd.f32 %v401, %v563
    %v566 = vadd.f32 %v402, %v564
    %v567 = vld [vmem:[%s3 + $0x2] sm:$0x1]
    %v568 = vlaneseq
    %v569 = vshrl.u32 %v568, 7
    %v570 = vsub.s32 0, %v569
    %v571 = vrot.slane %v567, %v570
    %v572 = vmul.f32 %v565, %v571
    %v573 = vmul.f32 %v566, %v571
    %v574 = vld [vmem:[%s4 + $0x2] sm:$0x1]
    %v575 = vlaneseq
    %v576 = vshrl.u32 %v575, 7
    %v577 = vsub.s32 0, %v576
    %v578 = vrot.slane %v574, %v577
    %v579 = vadd.f32 %v572, %v578
    %v580 = vadd.f32 %v573, %v578
    %vm581 = vcmp.ge.f32.partialorder %v579, 0.0
    %vm582 = vcmp.ge.f32.partialorder %v580, 0.0
    %s583 = sld [smem:[#allocation2 + $0x2]]
    %v584 = vstv %s583
    %v585 = vmul.f32 %v584, %v579
    %v586 = vmul.f32 %v584, %v580
    %v587 = vsel %vm581, %v579, %v585
    %v588 = vsel %vm582, %v580, %v586
    %s589 = scalar_lea.vmem %s5, 256
    %v590 = vld [vmem:[%s589] sm:$0xff]
    %v591 = vld [vmem:[%s589 + $0x8] sm:$0xff]
    %v592 = vld [vmem:[%s589 + $0x10] sm:$0xff]
    %v593 = vld [vmem:[%s589 + $0x18] sm:$0xff]
    %v594 = vld [vmem:[%s589 + $0x20] sm:$0xff]
    %v595 = vld [vmem:[%s589 + $0x28] sm:$0xff]
    %v596 = vld [vmem:[%s589 + $0x30] sm:$0xff]
    %v597 = vld [vmem:[%s589 + $0x38] sm:$0xff]
    %v598 = vld [vmem:[%s589 + $0x40] sm:$0xff]
    %v599 = vld [vmem:[%s589 + $0x48] sm:$0xff]
    %v600 = vld [vmem:[%s589 + $0x50] sm:$0xff]
    %v601 = vld [vmem:[%s589 + $0x58] sm:$0xff]
    %v602 = vld [vmem:[%s589 + $0x60] sm:$0xff]
    %v603 = vld [vmem:[%s589 + $0x68] sm:$0xff]
    %v604 = vld [vmem:[%s589 + $0x70] sm:$0xff]
    %v605 = vld [vmem:[%s589 + $0x78] sm:$0xff]
    %v606 = vld [vmem:[%s6 + $0x2] sm:$0x1]
    %607 = vmatprep.subr.mxu0 0.0
    %608 = vmatpush1.msra.mxu0 %v590
    %609 = vmatprep.subr.mxu0 0.0
    %610 = vmatpush1.msra.mxu0 %v591
    %611 = vmatprep.subr.mxu0 0.0
    %612 = vmatpush1.msra.mxu0 %v592
    %613 = vmatprep.subr.mxu0 0.0
    %614 = vmatpush1.msra.mxu0 %v593
    %615 = vmatprep.subr.mxu0 0.0
    %616 = vmatpush1.msra.mxu0 %v594
    %617 = vmatprep.subr.mxu0 0.0
    %618 = vmatpush1.msra.mxu0 %v595
    %619 = vmatprep.subr.mxu0 0.0
    %620 = vmatpush1.msra.mxu0 %v596
    %621 = vmatprep.subr.mxu0 0.0
    %622 = vmatpush1.msra.mxu0 %v597
    %623 = vmatprep.subr.mxu0 0.0
    %624 = vmatpush1.msra.mxu0 %v598
    %625 = vmatprep.subr.mxu0 0.0
    %626 = vmatpush1.msra.mxu0 %v599
    %627 = vmatprep.subr.mxu0 0.0
    %628 = vmatpush1.msra.mxu0 %v600
    %629 = vmatprep.subr.mxu0 0.0
    %630 = vmatpush1.msra.mxu0 %v601
    %631 = vmatprep.subr.mxu0 0.0
    %632 = vmatpush1.msra.mxu0 %v602
    %633 = vmatprep.subr.mxu0 0.0
    %634 = vmatpush1.msra.mxu0 %v603
    %635 = vmatprep.subr.mxu0 0.0
    %636 = vmatpush1.msra.mxu0 %v604
    %637 = vmatprep.subr.mxu0 0.0
    %638 = vmatpush1.msra.mxu0 %v605
    %639 = vmatprep.subr.mxu0 0.0
    %640 = vmatpush1.msra.mxu0 0.0
    %641 = vmatprep.subr.mxu0 0.0
    %642 = vmatpush1.msra.mxu0 0.0
    %643 = vmatprep.subr.mxu0 0.0
    %644 = vmatpush1.msra.mxu0 0.0
    %645 = vmatprep.subr.mxu0 0.0
    %646 = vmatpush1.msra.mxu0 0.0
    %647 = vmatprep.subr.mxu0 0.0
    %648 = vmatpush1.msra.mxu0 0.0
    %649 = vmatprep.subr.mxu0 0.0
    %650 = vmatpush1.msra.mxu0 0.0
    %651 = vmatprep.subr.mxu0 0.0
    %652 = vmatpush1.msra.mxu0 0.0
    %653 = vmatprep.subr.mxu0 0.0
    %654 = vmatpush1.msra.mxu0 0.0
    %655 = vmatprep.subr.mxu0 0.0
    %656 = vmatpush1.msra.mxu0 0.0
    %657 = vmatprep.subr.mxu0 0.0
    %658 = vmatpush1.msra.mxu0 0.0
    %659 = vmatprep.subr.mxu0 0.0
    %660 = vmatpush1.msra.mxu0 0.0
    %661 = vmatprep.subr.mxu0 0.0
    %662 = vmatpush1.msra.mxu0 0.0
    %663 = vmatprep.subr.mxu0 0.0
    %664 = vmatpush1.msra.mxu0 0.0
    %665 = vmatprep.subr.mxu0 0.0
    %666 = vmatpush1.msra.mxu0 0.0
    %667 = vmatprep.subr.mxu0 0.0
    %668 = vmatpush1.msra.mxu0 0.0
    %669 = vmatprep.subr.mxu0 0.0
    %670 = vmatpush1.msra.mxu0 0.0
    %671 = vmatprep.mubr.f32.mxu0 0.0
    %672 = vmatmul.mubr.f32.gmra.mrb[0].mxu0 %v587
    %v673 = vpop.f32.mrb[0].mxu0
    %v674 = vadd.f32 0.0, %v673
    %v675 = vpop.f32.mrb[0].mxu0
    %676 = vmatprep.mubr.f32.mxu0 0.0
    %677 = vmatmul.mubr.f32.gmra.mrb[0].mxu0 %v588
    %v678 = vpop.f32.mrb[0].mxu0
    %v679 = vadd.f32 0.0, %v678
    %v680 = vpop.f32.mrb[0].mxu0
    %681 = vdwg.mxu0
    %682 = vrot.lane.b32.xlu0 %v674, 96
    %v683 = vpop.permute.xlu0 %682
    %684 = vrot.lane.b32.xlu0 %v679, 96
    %v685 = vpop.permute.xlu0 %684
    %v686 = vrot.slane %v683, 4
    %v687 = vrot.slane %v685, 4
    %vm688 = vcmp.lt.s32.totalorder %v43, 4
    %v689 = vsel %vm688, %v686, %v687
    %v690 = vsel %vm688, %v687, %v686
    %v691 = vsel %vm73, 1, 0
    %v692 = vsel %vm74, 1, 0
    %vm693 = vcmp.eq.s32.totalorder %v691, 1
    %vm694 = vcmp.eq.s32.totalorder %v692, 1
    %v695 = vsel %vm693, %v690, 0.0
    %v696 = vsel %vm694, %v689, 0.0
    %697 = vrot.lane.b32.xlu0 %v674, 64
    %v698 = vpop.permute.xlu0 %697
    %699 = vrot.lane.b32.xlu0 %v679, 64
    %v700 = vpop.permute.xlu0 %699
    %701 = vrot.lane.b32.xlu0 %v674, 32
    %v702 = vpop.permute.xlu0 %701
    %703 = vrot.lane.b32.xlu0 %v679, 32
    %v704 = vpop.permute.xlu0 %703
    %v705 = vrot.slane %v702, 4
    %v706 = vrot.slane %v704, 4
    %v707 = vsel %vm688, %v705, %v706
    %v708 = vsel %vm688, %v706, %v705
    %v709 = vsel %vm79, 1, 0
    %v710 = vsel %vm80, 1, 0
    %vm711 = vcmp.eq.s32.totalorder %v709, 1
    %vm712 = vcmp.eq.s32.totalorder %v710, 1
    %v713 = vsel %vm711, %v707, 0.0
    %v714 = vsel %vm712, %v708, 0.0
    %vm715 = vcmp.ge.s32.totalorder %v82, 96
    %vm716 = vcmp.lt.s32.totalorder %v82, 128
    %vm717 = vmand %vm715, %vm716
    %v718 = vadd.f32 %v695, %v698
    %v719 = vadd.f32 %v696, %v700
    %v720 = vadd.f32 %v718, %v713
    %v721 = vadd.f32 %v719, %v714
    %v722 = vsel %vm717, 1, 0
    %vm723 = vcmp.eq.s32.totalorder %v722, 1
    %v724 = vsel %vm723, %v720, 0.0
    %v725 = vsel %vm723, %v721, 0.0
    %v726 = vlaneseq
    %v727 = vshrl.u32 %v726, 7
    %v728 = vsub.s32 0, %v727
    %v729 = vrot.slane %v606, %v728
    %v730 = vadd.f32 %v724, %v729
    %v731 = vadd.f32 %v725, %v729
    %v732 = vadd.f32 %v565, %v730
    %v733 = vadd.f32 %v566, %v731
    %v734 = vld [vmem:[%s3 + $0x3] sm:$0x1]
    %v735 = vlaneseq
    %v736 = vshrl.u32 %v735, 7
    %v737 = vsub.s32 0, %v736
    %v738 = vrot.slane %v734, %v737
    %v739 = vmul.f32 %v732, %v738
    %v740 = vmul.f32 %v733, %v738
    %v741 = vld [vmem:[%s4 + $0x3] sm:$0x1]
    %v742 = vlaneseq
    %v743 = vshrl.u32 %v742, 7
    %v744 = vsub.s32 0, %v743
    %v745 = vrot.slane %v741, %v744
    %v746 = vadd.f32 %v739, %v745
    %v747 = vadd.f32 %v740, %v745
    %vm748 = vcmp.ge.f32.partialorder %v746, 0.0
    %vm749 = vcmp.ge.f32.partialorder %v747, 0.0
    %s750 = sld [smem:[#allocation2 + $0x3]]
    %v751 = vstv %s750
    %v752 = vmul.f32 %v751, %v746
    %v753 = vmul.f32 %v751, %v747
    %v754 = vsel %vm748, %v746, %v752
    %v755 = vsel %vm749, %v747, %v753
    %v756 = vrot.slane %v754, 4
    %v757 = vmax.f32 %v754, %v756
    %v758 = vrot.slane %v757, 2
    %v759 = vmax.f32 %v757, %v758
    %v760 = vrot.slane %v759, 1
    %v761 = vmax.f32 %v759, %v760
    %v762 = vrot.slane %v755, 4
    %v763 = vmax.f32 %v755, %v762
    %v764 = vrot.slane %v763, 2
    %v765 = vmax.f32 %v763, %v764
    %v766 = vrot.slane %v765, 1
    %v767 = vmax.f32 %v765, %v766
    %vm770 = vcmask 1041409
    %v771 = vsel %vm770, %v767, %v761
    %773 = vst [vmem:[%s8] sm:$0x3] %v771
    // Predicated region
    $region38: #{forward.6} parent=1 // pred_check
      _
    $region39: #{forward.6} parent=1 // pred_check_branch
      %775 = sbr.rel (0) target = $region41
    $region40: #{forward.6} parent=1 // pred_region
      _
    $region41: #{forward.6} parent=1 // pred_fallthru
      _
    // Predicated region
    $region42: #{forward.6} parent=1 // pred_check
      _
    $region43: #{forward.6} parent=1 // pred_check_branch
      %777 = sbr.rel (0) target = $region45
    $region44: #{forward.6} parent=1 // pred_region
      _
    $region45: #{forward.6} parent=1 // pred_fallthru
      _
    %778 = vsyncpa [#allocation3], 1

</llo_original>
